<compile_context>
chip_gen: v7x
topology: tpu7x:2x2x1
jax: 0.10.0
libtpu: 0.0.40
codegen_flags: <defaults>
</compile_context>

<pallas_src>
import functools
import numpy as np
import jax
import jax.numpy as jnp
from jax import lax
from jax.experimental import pallas as pl
from jax.experimental.pallas import tpu as pltpu

# ----------------------------- configuration ------------------------------
N = 2                       # batch
IN_DIM = 32                 # p_fea channels (module default 256; small here)
HIDDEN = 10                 # hidden_dim (module default)
H = W = 16                  # spatial size
PART_LIST_LIST = [[1, 2, 3, 4], [5, 6]]
NB = len(PART_LIST_LIST)                       # number of Dep_Context branches
ATT_C = [len(p) + 1 for p in PART_LIST_LIST]   # per-branch att channels [5, 3]
MAXC = max(ATT_C)                              # padded att channel count
VAL_DIM = 128                                  # value_conv output channels
QK = HIDDEN + 8                                # query/key channels (18)
QKP = ((QK + 7) // 8) * 8                      # q/k rows padded to sublane mult (24)
QKV_OUT = 2 * QKP + VAL_DIM                    # fused qkv output rows (176)
CIN = IN_DIM + HIDDEN                          # stacked p_fea|hu channels (42)
BN_EPS = 1e-5
BN_SCALE = float(1.0 / np.sqrt(1.0 + BN_EPS))  # folded eval-mode InPlaceABNSync

HP = (H - 3) // 2 + 1       # AvgPool2d(3, stride=2, pad=0) output size (7)
WP = (W - 3) // 2 + 1
S_IN = H * W                # 256
S_P = HP * WP               # 49


# ------------------------ host-built constant matrices ---------------------

def generate_spatial_batch(featmap_H, featmap_W):
    spatial_batch_val = np.zeros((1, featmap_H, featmap_W, 8), dtype=np.float32)
    for h in range(featmap_H):
        for w in range(featmap_W):
            xmin = w / featmap_W * 2 - 1
            xmax = (w + 1) / featmap_W * 2 - 1
            xctr = (xmin + xmax) / 2
            ymin = h / featmap_H * 2 - 1
            ymax = (h + 1) / featmap_H * 2 - 1
            yctr = (ymin + ymax) / 2
            spatial_batch_val[:, h, w, :] = [xmin, ymin, xmax, ymax, xctr, yctr,
                                             1 / featmap_W, 1 / featmap_H]
    return spatial_batch_val


def build_pool_matrix(h, w, hp, wp):
    """AvgPool2d(3, stride=2, pad=0) as a (hp*wp, h*w) matrix."""
    P = np.zeros((hp * wp, h * w), np.float32)
    for oy in range(hp):
        for ox in range(wp):
            for dy in range(3):
                for dx in range(3):
                    P[oy * wp + ox, (2 * oy + dy) * w + (2 * ox + dx)] = 1.0 / 9.0
    return P


def build_interp_matrix(hp, wp, h, w):
    """Bilinear upsample (align_corners=True) (hp,wp)->(h,w) as (h*w, hp*wp)."""
    def axis_mat(out_n, in_n):
        A = np.zeros((out_n, in_n), np.float32)
        if out_n == 1 or in_n == 1:
            A[:, 0] = 1.0
            return A
        scale = (in_n - 1) / (out_n - 1)
        for i in range(out_n):
            src = i * scale
            lo = min(int(np.floor(src)), in_n - 1)
            hi = min(lo + 1, in_n - 1)
            frac = src - lo
            A[i, lo] += 1.0 - frac
            A[i, hi] += frac
        return A

    Ah = axis_mat(h, hp)
    Aw = axis_mat(w, wp)
    M = np.zeros((h * w, hp * wp), np.float32)
    for i in range(h):
        for j in range(w):
            for y in range(hp):
                for x in range(wp):
                    M[i * w + j, y * wp + x] = Ah[i, y] * Aw[j, x]
    return M


# ------------------------------ Pallas kernel -------------------------------

def _contexture_kernel(x_ref, pool_t_ref, interp_t_ref,
                       wqkv_ref, cbias_ref, wproj_ref,
                       watt_ref, batt_ref, mask_ref,
                       fdep_ref, att_ref, attsm_ref):
    dot = functools.partial(jnp.dot, preferred_element_type=jnp.float32)

    Pt = pool_t_ref[...]        # (S_IN, S_P)    pool matrix (transposed)
    Mt = interp_t_ref[...]      # (S_P, S_IN)    bilinear upsample (transposed)
    wqkv = wqkv_ref[0]          # (QKV_OUT, CIN) fused q|k|v weight (pad rows = 0)
    cb = cbias_ref[0]           # (QKV_OUT, S_P) coord contributions (precomputed)
    wproj = wproj_ref[0]        # (HIDDEN, VAL_DIM)  project conv (BN folded)
    watt = watt_ref[0]          # (MAXC, HIDDEN)     att head (pad rows = 0)
    batt = batt_ref[0]          # (MAXC, 1)
    mask = mask_ref[0]          # (MAXC, 1)          -1e9 on padded channels

    # N=2: tiny static unroll; all arrays are a few KB so live ranges are moot.
    for b in range(N):
        x = x_ref[0, b]                            # (CIN, S_IN), lane-dense load

        # AvgPool2d(3,2) on [p_fea|hu] as one matmul against the constant Pt.
        x_pool = dot(x, Pt)                        # (CIN, S_P)

        # Fused query|key|value 1x1 convs; the coord concat is folded into cb.
        qkv = dot(wqkv, x_pool) + cb               # (QKV_OUT, S_P)
        q = qkv[0:QKP]                             # (QKP, S_P)  pad rows are 0
        k = qkv[QKP:2 * QKP]                       # (QKP, S_P)  pad rows are 0
        v = jnp.maximum(qkv[2 * QKP:], 0.0)        # (VAL_DIM, S_P) BN-folded+ReLU

        # Spatial attention: softmax_j( q^T k ).
        e = lax.dot_general(q, k, (((0,), (0,)), ((), ())),
                            preferred_element_type=jnp.float32)   # (S_P, S_P)
        e = e - jnp.max(e, axis=-1, keepdims=True)
        pe = jnp.exp(e)
        attn = pe * pl.reciprocal(jnp.sum(pe, axis=-1, keepdims=True), approx=True)

        # ctx[c, i] = sum_j v[c, j] * attn[i, j]
        ctx = lax.dot_general(v, attn, (((1,), (1,)), ((), ())),
                              preferred_element_type=jnp.float32)  # (VAL_DIM, S_P)
        proj = jnp.maximum(dot(wproj, ctx), 0.0)                   # (HIDDEN, S_P)

        # Bilinear upsample as matmul -> lane-dense (HIDDEN, S_IN).
        fdepT = dot(proj, Mt)

        # Per-branch attention head + channel softmax (reduce over sublanes).
        attT = dot(watt, fdepT) + batt                             # (MAXC, S_IN)
        am = attT + mask
        am = am - jnp.max(am, axis=0, keepdims=True)
        ae = jnp.exp(am)
        attsmT = ae * pl.reciprocal(jnp.sum(ae, axis=0, keepdims=True), approx=True)

        fdep_ref[0, b] = fdepT
        att_ref[0, b] = attT
        attsm_ref[0, b] = attsmT


# -------------------------------- forward -----------------------------------

def contexture_forward(params, xp_list, p_fea):
    """Contexture.forward.  Inputs NCHW; outputs NCHW (PyTorch convention)."""
    # Channels-first: NCHW -> (N, C, H*W) are pure reshapes (no transposes).
    pfea_cf = p_fea.reshape(N, IN_DIM, S_IN)
    x_all = jnp.stack(
        [jnp.concatenate([pfea_cf, hu.reshape(N, HIDDEN, S_IN)], axis=1)
         for hu in xp_list], axis=0)                       # (NB, N, CIN, S_IN)

    bs = pl.BlockSpec
    grid_spec = pltpu.PrefetchScalarGridSpec(
        num_scalar_prefetch=0,
        grid=(NB,),
        in_specs=[
            bs((1, N, CIN, S_IN), lambda i: (i, 0, 0, 0)),      # [p_fea|hu] stack
            bs((S_IN, S_P), lambda i: (0, 0)),                  # pool matrix^T
            bs((S_P, S_IN), lambda i: (0, 0)),                  # interp matrix^T
            bs((1, QKV_OUT, CIN), lambda i: (i, 0, 0)),         # fused qkv weight
            bs((1, QKV_OUT, S_P), lambda i: (i, 0, 0)),         # coord bias
            bs((1, HIDDEN, VAL_DIM), lambda i: (i, 0, 0)),      # Wproj (BN folded)
            bs((1, MAXC, HIDDEN), lambda i: (i, 0, 0)),         # Watt (padded)
            bs((1, MAXC, 1), lambda i: (i, 0, 0)),              # att bias (padded)
            bs((1, MAXC, 1), lambda i: (i, 0, 0)),              # softmax pad mask
        ],
        out_specs=[
            bs((1, N, HIDDEN, S_IN), lambda i: (i, 0, 0, 0)),   # F_dep (lane-dense)
            bs((1, N, MAXC, S_IN), lambda i: (i, 0, 0, 0)),     # att logits
            bs((1, N, MAXC, S_IN), lambda i: (i, 0, 0, 0)),     # att softmax
        ],
    )

    fdep, att, attsm = pl.pallas_call(
        _contexture_kernel,
        out_shape=(
            jax.ShapeDtypeStruct((NB, N, HIDDEN, S_IN), jnp.float32),
            jax.ShapeDtypeStruct((NB, N, MAXC, S_IN), jnp.float32),
            jax.ShapeDtypeStruct((NB, N, MAXC, S_IN), jnp.float32),
        ),
        grid_spec=grid_spec,
        compiler_params=pltpu.CompilerParams(
            dimension_semantics=("parallel",)),    # one branch per TC on v7x
    )(x_all, params["pool_t"], params["interp_t"],
      params["wqkv"], params["coord_bias"], params["wproj"],
      params["watt"], params["batt"], params["att_mask"])

    F_dep_list, att_list, att_list_list = [], [], []
    for i, c_i in enumerate(ATT_C):
        F_dep_list.append(fdep[i].reshape(N, HIDDEN, H, W))
        att_i = att[i, :, :c_i].reshape(N, c_i, H, W)
        attsm_i = attsm[i, :, :c_i].reshape(N, c_i, H, W)
        att_list.append(att_i)
        att_list_list.append([attsm_i[:, j:j + 1] for j in range(c_i)])
    return F_dep_list, att_list_list, att_list


# ----------------------------- parameter setup ------------------------------

def build_params(seed=0):
    key = jax.random.PRNGKey(seed)

    def nxt():
        nonlocal key
        key, k = jax.random.split(key)
        return k

    def kaiming(shape, fan_in):
        return np.asarray(jax.random.normal(nxt(), shape, jnp.float32)) * np.sqrt(2.0 / fan_in)

    coordT = generate_spatial_batch(HP, WP).reshape(S_P, 8).T    # (8, S_P)
    Pt = build_pool_matrix(H, W, HP, WP).T                       # (S_IN, S_P)
    Mt = build_interp_matrix(HP, WP, H, W).T                     # (S_P, S_IN)

    wqkv = np.zeros((NB, QKV_OUT, CIN), np.float32)
    coord_bias = np.zeros((NB, QKV_OUT, S_P), np.float32)
    wproj = np.zeros((NB, HIDDEN, VAL_DIM), np.float32)
    watt = np.zeros((NB, MAXC, HIDDEN), np.float32)
    batt = np.zeros((NB, MAXC, 1), np.float32)
    att_mask = np.zeros((NB, MAXC, 1), np.float32)

    for i, plist in enumerate(PART_LIST_LIST):
        # query_conv: Conv2d(hidden+8 -> hidden+8, 1, bias=False), input [hu|coord]
        wq = kaiming((QK, HIDDEN + 8), HIDDEN + 8)
        # key_conv: Conv2d(in_dim+8 -> hidden+8, 1, bias=False), input [p_fea|coord]
        wk = kaiming((QK, IN_DIM + 8), IN_DIM + 8)
        # value_conv: Conv2d(in_dim -> 128, bias=False) + eval-mode BN folded
        wv = kaiming((VAL_DIM, IN_DIM), IN_DIM) * BN_SCALE
        # project: Conv2d(128 -> hidden, bias=False) + eval-mode BN folded
        wp = kaiming((HIDDEN, VAL_DIM), VAL_DIM) * BN_SCALE
        # att head: Conv2d(hidden -> len(plist)+1, bias=True), padded to MAXC
        c_i = len(plist) + 1
        wa = kaiming((c_i, HIDDEN), HIDDEN)
        ba = np.asarray(jax.random.normal(nxt(), (c_i,), jnp.float32)) * 0.01

        # q rows (read the hu channels of the stacked input), coord folded to bias
        wqkv[i, 0:QK, IN_DIM:CIN] = wq[:, :HIDDEN]
        coord_bias[i, 0:QK, :] = wq[:, HIDDEN:] @ coordT
        # k rows (read the p_fea channels)
        wqkv[i, QKP:QKP + QK, 0:IN_DIM] = wk[:, :IN_DIM]
        coord_bias[i, QKP:QKP + QK, :] = wk[:, IN_DIM:] @ coordT
        # v rows
        wqkv[i, 2 * QKP:2 * QKP + VAL_DIM, 0:IN_DIM] = wv

        wproj[i] = wp
        watt[i, :c_i, :] = wa
        batt[i, :c_i, 0] = ba
        att_mask[i, c_i:, 0] = -1e9

    return dict(
        pool_t=jnp.asarray(Pt), interp_t=jnp.asarray(Mt),
        wqkv=jnp.asarray(wqkv), coord_bias=jnp.asarray(coord_bias),
        wproj=jnp.asarray(wproj), watt=jnp.asarray(watt),
        batt=jnp.asarray(batt), att_mask=jnp.asarray(att_mask),
    )


# ---------------------------------- main ------------------------------------

if __name__ == "__main__":
    key = jax.random.PRNGKey(0)
    keys = jax.random.split(key, NB + 1)
    p_fea = jax.random.normal(keys[0], (N, IN_DIM, H, W), jnp.float32)
    xp_list = [jax.random.normal(keys[i + 1], (N, HIDDEN, H, W), jnp.float32)
               for i in range(NB)]

    params = build_params(0)
    fwd = jax.jit(contexture_forward)
    out = fwd(params, xp_list, p_fea)
    jax.block_until_ready(out)
    print("KERNEL_OK")
</pallas_src>

<mosaic_0001>
module attributes {stable_mosaic.version = 11 : i64} {
  func.func @_contexture_kernel(%arg0: i32, %arg1: memref<1x2x42x256xf32, #tpu.memory_space<vmem>>, %arg2: memref<256x49xf32, #tpu.memory_space<vmem>>, %arg3: memref<49x256xf32, #tpu.memory_space<vmem>>, %arg4: memref<1x176x42xf32, #tpu.memory_space<vmem>>, %arg5: memref<1x176x49xf32, #tpu.memory_space<vmem>>, %arg6: memref<1x10x128xf32, #tpu.memory_space<vmem>>, %arg7: memref<1x5x10xf32, #tpu.memory_space<vmem>>, %arg8: memref<1x5x1xf32, #tpu.memory_space<vmem>>, %arg9: memref<1x5x1xf32, #tpu.memory_space<vmem>>, %arg10: memref<1x2x10x256xf32, #tpu.memory_space<vmem>>, %arg11: memref<1x2x5x256xf32, #tpu.memory_space<vmem>>, %arg12: memref<1x2x5x256xf32, #tpu.memory_space<vmem>>) attributes {dimension_semantics = [#tpu.dimension_semantics<parallel>], iteration_bounds = array<i64: 2>, scalar_prefetch = 0 : i64, scratch_operands = 0 : i64, tpu.core_type = #tpu.core_type<tc>, window_params = [{transform_indices = @transform_0, window_bounds = array<i64: 1, 2, 42, 256>}, {pipeline_mode = #tpu.pipeline_mode<synchronous>, transform_indices = @transform_1, window_bounds = array<i64: 256, 49>}, {pipeline_mode = #tpu.pipeline_mode<synchronous>, transform_indices = @transform_2, window_bounds = array<i64: 49, 256>}, {transform_indices = @transform_3, window_bounds = array<i64: 1, 176, 42>}, {transform_indices = @transform_4, window_bounds = array<i64: 1, 176, 49>}, {transform_indices = @transform_5, window_bounds = array<i64: 1, 10, 128>}, {transform_indices = @transform_6, window_bounds = array<i64: 1, 5, 10>}, {transform_indices = @transform_7, window_bounds = array<i64: 1, 5, 1>}, {transform_indices = @transform_8, window_bounds = array<i64: 1, 5, 1>}, {transform_indices = @transform_9, window_bounds = array<i64: 1, 2, 10, 256>}, {transform_indices = @transform_10, window_bounds = array<i64: 1, 2, 5, 256>}, {transform_indices = @transform_11, window_bounds = array<i64: 1, 2, 5, 256>}]} {
    %c0 = arith.constant 0 : index
    %c0_0 = arith.constant 0 : index
    %0 = vector.load %arg2[%c0, %c0_0] : memref<256x49xf32, #tpu.memory_space<vmem>>, vector<256x49xf32>
    %c0_1 = arith.constant 0 : index
    %c0_2 = arith.constant 0 : index
    %1 = vector.load %arg3[%c0_1, %c0_2] : memref<49x256xf32, #tpu.memory_space<vmem>>, vector<49x256xf32>
    %c0_3 = arith.constant 0 : index
    %c0_4 = arith.constant 0 : index
    %c0_5 = arith.constant 0 : index
    %2 = vector.load %arg4[%c0_3, %c0_4, %c0_5] : memref<1x176x42xf32, #tpu.memory_space<vmem>>, vector<1x176x42xf32>
    %3 = vector.shape_cast %2 : vector<1x176x42xf32> to vector<176x42xf32>
    %c0_6 = arith.constant 0 : index
    %c0_7 = arith.constant 0 : index
    %c0_8 = arith.constant 0 : index
    %4 = vector.load %arg5[%c0_6, %c0_7, %c0_8] : memref<1x176x49xf32, #tpu.memory_space<vmem>>, vector<1x176x49xf32>
    %5 = vector.shape_cast %4 : vector<1x176x49xf32> to vector<176x49xf32>
    %c0_9 = arith.constant 0 : index
    %c0_10 = arith.constant 0 : index
    %c0_11 = arith.constant 0 : index
    %6 = vector.load %arg6[%c0_9, %c0_10, %c0_11] : memref<1x10x128xf32, #tpu.memory_space<vmem>>, vector<1x10x128xf32>
    %7 = vector.shape_cast %6 : vector<1x10x128xf32> to vector<10x128xf32>
    %c0_12 = arith.constant 0 : index
    %c0_13 = arith.constant 0 : index
    %c0_14 = arith.constant 0 : index
    %8 = vector.load %arg7[%c0_12, %c0_13, %c0_14] : memref<1x5x10xf32, #tpu.memory_space<vmem>>, vector<1x5x10xf32>
    %9 = vector.shape_cast %8 : vector<1x5x10xf32> to vector<5x10xf32>
    %c0_15 = arith.constant 0 : index
    %c0_16 = arith.constant 0 : index
    %c0_17 = arith.constant 0 : index
    %10 = vector.load %arg8[%c0_15, %c0_16, %c0_17] : memref<1x5x1xf32, #tpu.memory_space<vmem>>, vector<1x5x1xf32>
    %11 = vector.shape_cast %10 : vector<1x5x1xf32> to vector<5x1xf32>
    %c0_18 = arith.constant 0 : index
    %c0_19 = arith.constant 0 : index
    %c0_20 = arith.constant 0 : index
    %12 = vector.load %arg9[%c0_18, %c0_19, %c0_20] : memref<1x5x1xf32, #tpu.memory_space<vmem>>, vector<1x5x1xf32>
    %13 = vector.shape_cast %12 : vector<1x5x1xf32> to vector<5x1xf32>
    %c0_21 = arith.constant 0 : index
    %c0_22 = arith.constant 0 : index
    %c0_23 = arith.constant 0 : index
    %c0_24 = arith.constant 0 : index
    %14 = vector.load %arg1[%c0_21, %c0_22, %c0_23, %c0_24] : memref<1x2x42x256xf32, #tpu.memory_space<vmem>>, vector<1x1x42x256xf32>
    %15 = vector.shape_cast %14 : vector<1x1x42x256xf32> to vector<42x256xf32>
    %cst = arith.constant dense<0.000000e+00> : vector<42x49xf32>
    %16 = tpu.matmul %15, %0, %cst {dimension_numbers = #tpu.dot_dimension_numbers<[1], [0], [0], [1], [0, 0, 1, 1], [], []>} : vector<42x256xf32>, vector<256x49xf32>, vector<42x49xf32> -> vector<42x49xf32>
    %cst_25 = arith.constant dense<0.000000e+00> : vector<176x49xf32>
    %17 = tpu.matmul %3, %16, %cst_25 {dimension_numbers = #tpu.dot_dimension_numbers<[1], [0], [0], [1], [0, 0, 1, 1], [], []>} : vector<176x42xf32>, vector<42x49xf32>, vector<176x49xf32> -> vector<176x49xf32>
    %18 = arith.addf %17, %5 : vector<176x49xf32>
    %19 = vector.extract_strided_slice %18 {offsets = [0, 0], sizes = [24, 49], strides = [1, 1]} : vector<176x49xf32> to vector<24x49xf32>
    %20 = vector.extract_strided_slice %18 {offsets = [24, 0], sizes = [24, 49], strides = [1, 1]} : vector<176x49xf32> to vector<24x49xf32>
    %21 = vector.extract_strided_slice %18 {offsets = [48, 0], sizes = [128, 49], strides = [1, 1]} : vector<176x49xf32> to vector<128x49xf32>
    %cst_26 = arith.constant 0.000000e+00 : f32
    %22 = vector.broadcast %cst_26 : f32 to vector<128x49xf32>
    %23 = arith.maximumf %21, %22 : vector<128x49xf32>
    %cst_27 = arith.constant dense<0.000000e+00> : vector<49x49xf32>
    %24 = tpu.matmul %19, %20, %cst_27 {dimension_numbers = #tpu.dot_dimension_numbers<[0], [0], [1], [1], [0, 1, 1, 1], [], []>} : vector<24x49xf32>, vector<24x49xf32>, vector<49x49xf32> -> vector<49x49xf32>
    %cst_28 = arith.constant dense<0xFF800000> : vector<49xf32>
    %25 = vector.multi_reduction <maximumf>, %24, %cst_28 [1] : vector<49x49xf32> to vector<49xf32>
    %26 = vector.shape_cast %25 : vector<49xf32> to vector<49x1xf32>
    %27 = vector.broadcast %26 : vector<49x1xf32> to vector<49x49xf32>
    %28 = arith.subf %24, %27 : vector<49x49xf32>
    %29 = math.exp %28 : vector<49x49xf32>
    %cst_29 = arith.constant dense<0.000000e+00> : vector<49xf32>
    %30 = vector.multi_reduction <add>, %29, %cst_29 [1] : vector<49x49xf32> to vector<49xf32>
    %31 = vector.shape_cast %30 : vector<49xf32> to vector<49x1xf32>
    %32 = tpu.reciprocal %31 {approx = true} : vector<49x1xf32> -> vector<49x1xf32>
    %33 = vector.broadcast %32 : vector<49x1xf32> to vector<49x49xf32>
    %34 = arith.mulf %29, %33 : vector<49x49xf32>
    %cst_30 = arith.constant dense<0.000000e+00> : vector<128x49xf32>
    %35 = tpu.matmul %23, %34, %cst_30 {dimension_numbers = #tpu.dot_dimension_numbers<[1], [1], [0], [0], [0, 0, 1, 0], [], []>} : vector<128x49xf32>, vector<49x49xf32>, vector<128x49xf32> -> vector<128x49xf32>
    %cst_31 = arith.constant dense<0.000000e+00> : vector<10x49xf32>
    %36 = tpu.matmul %7, %35, %cst_31 {dimension_numbers = #tpu.dot_dimension_numbers<[1], [0], [0], [1], [0, 0, 1, 1], [], []>} : vector<10x128xf32>, vector<128x49xf32>, vector<10x49xf32> -> vector<10x49xf32>
    %cst_32 = arith.constant 0.000000e+00 : f32
    %37 = vector.broadcast %cst_32 : f32 to vector<10x49xf32>
    %38 = arith.maximumf %36, %37 : vector<10x49xf32>
    %cst_33 = arith.constant dense<0.000000e+00> : vector<10x256xf32>
    %39 = tpu.matmul %38, %1, %cst_33 {dimension_numbers = #tpu.dot_dimension_numbers<[1], [0], [0], [1], [0, 0, 1, 1], [], []>} : vector<10x49xf32>, vector<49x256xf32>, vector<10x256xf32> -> vector<10x256xf32>
    %cst_34 = arith.constant dense<0.000000e+00> : vector<5x256xf32>
    %40 = tpu.matmul %9, %39, %cst_34 {dimension_numbers = #tpu.dot_dimension_numbers<[1], [0], [0], [1], [0, 0, 1, 1], [], []>} : vector<5x10xf32>, vector<10x256xf32>, vector<5x256xf32> -> vector<5x256xf32>
    %41 = vector.broadcast %11 : vector<5x1xf32> to vector<5x256xf32>
    %42 = arith.addf %40, %41 : vector<5x256xf32>
    %43 = vector.broadcast %13 : vector<5x1xf32> to vector<5x256xf32>
    %44 = arith.addf %42, %43 : vector<5x256xf32>
    %cst_35 = arith.constant dense<0xFF800000> : vector<256xf32>
    %45 = vector.multi_reduction <maximumf>, %44, %cst_35 [0] : vector<5x256xf32> to vector<256xf32>
    %46 = vector.shape_cast %45 : vector<256xf32> to vector<1x256xf32>
    %47 = vector.broadcast %46 : vector<1x256xf32> to vector<5x256xf32>
    %48 = arith.subf %44, %47 : vector<5x256xf32>
    %49 = math.exp %48 : vector<5x256xf32>
    %cst_36 = arith.constant dense<0.000000e+00> : vector<256xf32>
    %50 = vector.multi_reduction <add>, %49, %cst_36 [0] : vector<5x256xf32> to vector<256xf32>
    %51 = vector.shape_cast %50 : vector<256xf32> to vector<1x256xf32>
    %52 = tpu.reciprocal %51 {approx = true} : vector<1x256xf32> -> vector<1x256xf32>
    %53 = vector.broadcast %52 : vector<1x256xf32> to vector<5x256xf32>
    %54 = arith.mulf %49, %53 : vector<5x256xf32>
    %c0_37 = arith.constant 0 : index
    %c0_38 = arith.constant 0 : index
    %c0_39 = arith.constant 0 : index
    %c0_40 = arith.constant 0 : index
    %55 = vector.load %arg10[%c0_37, %c0_38, %c0_39, %c0_40] : memref<1x2x10x256xf32, #tpu.memory_space<vmem>>, vector<1x1x10x256xf32>
    %56 = vector.shape_cast %55 : vector<1x1x10x256xf32> to vector<10x256xf32>
    %57 = vector.shape_cast %39 : vector<10x256xf32> to vector<1x1x10x256xf32>
    tpu.vector_store %arg10[%c0_37, %c0_38, %c0_39, %c0_40], %57 {strides = array<i32>} : memref<1x2x10x256xf32, #tpu.memory_space<vmem>>, vector<1x1x10x256xf32>,
    %c0_41 = arith.constant 0 : index
    %c0_42 = arith.constant 0 : index
    %c0_43 = arith.constant 0 : index
    %c0_44 = arith.constant 0 : index
    %58 = vector.load %arg11[%c0_41, %c0_42, %c0_43, %c0_44] : memref<1x2x5x256xf32, #tpu.memory_space<vmem>>, vector<1x1x5x256xf32>
    %59 = vector.shape_cast %58 : vector<1x1x5x256xf32> to vector<5x256xf32>
    %60 = vector.shape_cast %42 : vector<5x256xf32> to vector<1x1x5x256xf32>
    tpu.vector_store %arg11[%c0_41, %c0_42, %c0_43, %c0_44], %60 {strides = array<i32>} : memref<1x2x5x256xf32, #tpu.memory_space<vmem>>, vector<1x1x5x256xf32>,
    %c0_45 = arith.constant 0 : index
    %c0_46 = arith.constant 0 : index
    %c0_47 = arith.constant 0 : index
    %c0_48 = arith.constant 0 : index
    %61 = vector.load %arg12[%c0_45, %c0_46, %c0_47, %c0_48] : memref<1x2x5x256xf32, #tpu.memory_space<vmem>>, vector<1x1x5x256xf32>
    %62 = vector.shape_cast %61 : vector<1x1x5x256xf32> to vector<5x256xf32>
    %63 = vector.shape_cast %54 : vector<5x256xf32> to vector<1x1x5x256xf32>
    tpu.vector_store %arg12[%c0_45, %c0_46, %c0_47, %c0_48], %63 {strides = array<i32>} : memref<1x2x5x256xf32, #tpu.memory_space<vmem>>, vector<1x1x5x256xf32>,
    %c0_49 = arith.constant 0 : index
    %c1 = arith.constant 1 : index
    %c0_50 = arith.constant 0 : index
    %c0_51 = arith.constant 0 : index
    %64 = vector.load %arg1[%c0_49, %c1, %c0_50, %c0_51] : memref<1x2x42x256xf32, #tpu.memory_space<vmem>>, vector<1x1x42x256xf32>
    %65 = vector.shape_cast %64 : vector<1x1x42x256xf32> to vector<42x256xf32>
    %cst_52 = arith.constant dense<0.000000e+00> : vector<42x49xf32>
    %66 = tpu.matmul %65, %0, %cst_52 {dimension_numbers = #tpu.dot_dimension_numbers<[1], [0], [0], [1], [0, 0, 1, 1], [], []>} : vector<42x256xf32>, vector<256x49xf32>, vector<42x49xf32> -> vector<42x49xf32>
    %cst_53 = arith.constant dense<0.000000e+00> : vector<176x49xf32>
    %67 = tpu.matmul %3, %66, %cst_53 {dimension_numbers = #tpu.dot_dimension_numbers<[1], [0], [0], [1], [0, 0, 1, 1], [], []>} : vector<176x42xf32>, vector<42x49xf32>, vector<176x49xf32> -> vector<176x49xf32>
    %68 = arith.addf %67, %5 : vector<176x49xf32>
    %69 = vector.extract_strided_slice %68 {offsets = [0, 0], sizes = [24, 49], strides = [1, 1]} : vector<176x49xf32> to vector<24x49xf32>
    %70 = vector.extract_strided_slice %68 {offsets = [24, 0], sizes = [24, 49], strides = [1, 1]} : vector<176x49xf32> to vector<24x49xf32>
    %71 = vector.extract_strided_slice %68 {offsets = [48, 0], sizes = [128, 49], strides = [1, 1]} : vector<176x49xf32> to vector<128x49xf32>
    %cst_54 = arith.constant 0.000000e+00 : f32
    %72 = vector.broadcast %cst_54 : f32 to vector<128x49xf32>
    %73 = arith.maximumf %71, %72 : vector<128x49xf32>
    %cst_55 = arith.constant dense<0.000000e+00> : vector<49x49xf32>
    %74 = tpu.matmul %69, %70, %cst_55 {dimension_numbers = #tpu.dot_dimension_numbers<[0], [0], [1], [1], [0, 1, 1, 1], [], []>} : vector<24x49xf32>, vector<24x49xf32>, vector<49x49xf32> -> vector<49x49xf32>
    %cst_56 = arith.constant dense<0xFF800000> : vector<49xf32>
    %75 = vector.multi_reduction <maximumf>, %74, %cst_56 [1] : vector<49x49xf32> to vector<49xf32>
    %76 = vector.shape_cast %75 : vector<49xf32> to vector<49x1xf32>
    %77 = vector.broadcast %76 : vector<49x1xf32> to vector<49x49xf32>
    %78 = arith.subf %74, %77 : vector<49x49xf32>
    %79 = math.exp %78 : vector<49x49xf32>
    %cst_57 = arith.constant dense<0.000000e+00> : vector<49xf32>
    %80 = vector.multi_reduction <add>, %79, %cst_57 [1] : vector<49x49xf32> to vector<49xf32>
    %81 = vector.shape_cast %80 : vector<49xf32> to vector<49x1xf32>
    %82 = tpu.reciprocal %81 {approx = true} : vector<49x1xf32> -> vector<49x1xf32>
    %83 = vector.broadcast %82 : vector<49x1xf32> to vector<49x49xf32>
    %84 = arith.mulf %79, %83 : vector<49x49xf32>
    %cst_58 = arith.constant dense<0.000000e+00> : vector<128x49xf32>
    %85 = tpu.matmul %73, %84, %cst_58 {dimension_numbers = #tpu.dot_dimension_numbers<[1], [1], [0], [0], [0, 0, 1, 0], [], []>} : vector<128x49xf32>, vector<49x49xf32>, vector<128x49xf32> -> vector<128x49xf32>
    %cst_59 = arith.constant dense<0.000000e+00> : vector<10x49xf32>
    %86 = tpu.matmul %7, %85, %cst_59 {dimension_numbers = #tpu.dot_dimension_numbers<[1], [0], [0], [1], [0, 0, 1, 1], [], []>} : vector<10x128xf32>, vector<128x49xf32>, vector<10x49xf32> -> vector<10x49xf32>
    %cst_60 = arith.constant 0.000000e+00 : f32
    %87 = vector.broadcast %cst_60 : f32 to vector<10x49xf32>
    %88 = arith.maximumf %86, %87 : vector<10x49xf32>
    %cst_61 = arith.constant dense<0.000000e+00> : vector<10x256xf32>
    %89 = tpu.matmul %88, %1, %cst_61 {dimension_numbers = #tpu.dot_dimension_numbers<[1], [0], [0], [1], [0, 0, 1, 1], [], []>} : vector<10x49xf32>, vector<49x256xf32>, vector<10x256xf32> -> vector<10x256xf32>
    %cst_62 = arith.constant dense<0.000000e+00> : vector<5x256xf32>
    %90 = tpu.matmul %9, %89, %cst_62 {dimension_numbers = #tpu.dot_dimension_numbers<[1], [0], [0], [1], [0, 0, 1, 1], [], []>} : vector<5x10xf32>, vector<10x256xf32>, vector<5x256xf32> -> vector<5x256xf32>
    %91 = vector.broadcast %11 : vector<5x1xf32> to vector<5x256xf32>
    %92 = arith.addf %90, %91 : vector<5x256xf32>
    %93 = vector.broadcast %13 : vector<5x1xf32> to vector<5x256xf32>
    %94 = arith.addf %92, %93 : vector<5x256xf32>
    %cst_63 = arith.constant dense<0xFF800000> : vector<256xf32>
    %95 = vector.multi_reduction <maximumf>, %94, %cst_63 [0] : vector<5x256xf32> to vector<256xf32>
    %96 = vector.shape_cast %95 : vector<256xf32> to vector<1x256xf32>
    %97 = vector.broadcast %96 : vector<1x256xf32> to vector<5x256xf32>
    %98 = arith.subf %94, %97 : vector<5x256xf32>
    %99 = math.exp %98 : vector<5x256xf32>
    %cst_64 = arith.constant dense<0.000000e+00> : vector<256xf32>
    %100 = vector.multi_reduction <add>, %99, %cst_64 [0] : vector<5x256xf32> to vector<256xf32>
    %101 = vector.shape_cast %100 : vector<256xf32> to vector<1x256xf32>
    %102 = tpu.reciprocal %101 {approx = true} : vector<1x256xf32> -> vector<1x256xf32>
    %103 = vector.broadcast %102 : vector<1x256xf32> to vector<5x256xf32>
    %104 = arith.mulf %99, %103 : vector<5x256xf32>
    %c0_65 = arith.constant 0 : index
    %c1_66 = arith.constant 1 : index
    %c0_67 = arith.constant 0 : index
    %c0_68 = arith.constant 0 : index
    %105 = vector.load %arg10[%c0_65, %c1_66, %c0_67, %c0_68] : memref<1x2x10x256xf32, #tpu.memory_space<vmem>>, vector<1x1x10x256xf32>
    %106 = vector.shape_cast %105 : vector<1x1x10x256xf32> to vector<10x256xf32>
    %107 = vector.shape_cast %89 : vector<10x256xf32> to vector<1x1x10x256xf32>
    tpu.vector_store %arg10[%c0_65, %c1_66, %c0_67, %c0_68], %107 {strides = array<i32>} : memref<1x2x10x256xf32, #tpu.memory_space<vmem>>, vector<1x1x10x256xf32>,
    %c0_69 = arith.constant 0 : index
    %c1_70 = arith.constant 1 : index
    %c0_71 = arith.constant 0 : index
    %c0_72 = arith.constant 0 : index
    %108 = vector.load %arg11[%c0_69, %c1_70, %c0_71, %c0_72] : memref<1x2x5x256xf32, #tpu.memory_space<vmem>>, vector<1x1x5x256xf32>
    %109 = vector.shape_cast %108 : vector<1x1x5x256xf32> to vector<5x256xf32>
    %110 = vector.shape_cast %92 : vector<5x256xf32> to vector<1x1x5x256xf32>
    tpu.vector_store %arg11[%c0_69, %c1_70, %c0_71, %c0_72], %110 {strides = array<i32>} : memref<1x2x5x256xf32, #tpu.memory_space<vmem>>, vector<1x1x5x256xf32>,
    %c0_73 = arith.constant 0 : index
    %c1_74 = arith.constant 1 : index
    %c0_75 = arith.constant 0 : index
    %c0_76 = arith.constant 0 : index
    %111 = vector.load %arg12[%c0_73, %c1_74, %c0_75, %c0_76] : memref<1x2x5x256xf32, #tpu.memory_space<vmem>>, vector<1x1x5x256xf32>
    %112 = vector.shape_cast %111 : vector<1x1x5x256xf32> to vector<5x256xf32>
    %113 = vector.shape_cast %104 : vector<5x256xf32> to vector<1x1x5x256xf32>
    tpu.vector_store %arg12[%c0_73, %c1_74, %c0_75, %c0_76], %113 {strides = array<i32>} : memref<1x2x5x256xf32, #tpu.memory_space<vmem>>, vector<1x1x5x256xf32>,
    return
  }
  func.func @transform_0(%arg0: i32) -> (i32, i32, i32, i32) {
    %c0_i32 = arith.constant 0 : i32
    %c0_i32_0 = arith.constant 0 : i32
    %c0_i32_1 = arith.constant 0 : i32
    %c0_i32_2 = arith.constant 0 : i32
    return %arg0, %c0_i32, %c0_i32_0, %c0_i32_1 : i32, i32, i32, i32
  }
  func.func @transform_1(%arg0: i32) -> (i32, i32) {
    %c0_i32 = arith.constant 0 : i32
    %c0_i32_0 = arith.constant 0 : i32
    %c0_i32_1 = arith.constant 0 : i32
    return %c0_i32, %c0_i32_0 : i32, i32
  }
  func.func @transform_2(%arg0: i32) -> (i32, i32) {
    %c0_i32 = arith.constant 0 : i32
    %c0_i32_0 = arith.constant 0 : i32
    %c0_i32_1 = arith.constant 0 : i32
    return %c0_i32, %c0_i32_0 : i32, i32
  }
  func.func @transform_3(%arg0: i32) -> (i32, i32, i32) {
    %c0_i32 = arith.constant 0 : i32
    %c0_i32_0 = arith.constant 0 : i32
    %c0_i32_1 = arith.constant 0 : i32
    return %arg0, %c0_i32, %c0_i32_0 : i32, i32, i32
  }
  func.func @transform_4(%arg0: i32) -> (i32, i32, i32) {
    %c0_i32 = arith.constant 0 : i32
    %c0_i32_0 = arith.constant 0 : i32
    %c0_i32_1 = arith.constant 0 : i32
    return %arg0, %c0_i32, %c0_i32_0 : i32, i32, i32
  }
  func.func @transform_5(%arg0: i32) -> (i32, i32, i32) {
    %c0_i32 = arith.constant 0 : i32
    %c0_i32_0 = arith.constant 0 : i32
    %c0_i32_1 = arith.constant 0 : i32
    return %arg0, %c0_i32, %c0_i32_0 : i32, i32, i32
  }
  func.func @transform_6(%arg0: i32) -> (i32, i32, i32) {
    %c0_i32 = arith.constant 0 : i32
    %c0_i32_0 = arith.constant 0 : i32
    %c0_i32_1 = arith.constant 0 : i32
    return %arg0, %c0_i32, %c0_i32_0 : i32, i32, i32
  }
  func.func @transform_7(%arg0: i32) -> (i32, i32, i32) {
    %c0_i32 = arith.constant 0 : i32
    %c0_i32_0 = arith.constant 0 : i32
    %c0_i32_1 = arith.constant 0 : i32
    return %arg0, %c0_i32, %c0_i32_0 : i32, i32, i32
  }
  func.func @transform_8(%arg0: i32) -> (i32, i32, i32) {
    %c0_i32 = arith.constant 0 : i32
    %c0_i32_0 = arith.constant 0 : i32
    %c0_i32_1 = arith.constant 0 : i32
    return %arg0, %c0_i32, %c0_i32_0 : i32, i32, i32
  }
  func.func @transform_9(%arg0: i32) -> (i32, i32, i32, i32) {
    %c0_i32 = arith.constant 0 : i32
    %c0_i32_0 = arith.constant 0 : i32
    %c0_i32_1 = arith.constant 0 : i32
    %c0_i32_2 = arith.constant 0 : i32
    return %arg0, %c0_i32, %c0_i32_0, %c0_i32_1 : i32, i32, i32, i32
  }
  func.func @transform_10(%arg0: i32) -> (i32, i32, i32, i32) {
    %c0_i32 = arith.constant 0 : i32
    %c0_i32_0 = arith.constant 0 : i32
    %c0_i32_1 = arith.constant 0 : i32
    %c0_i32_2 = arith.constant 0 : i32
    return %arg0, %c0_i32, %c0_i32_0, %c0_i32_1 : i32, i32, i32, i32
  }
  func.func @transform_11(%arg0: i32) -> (i32, i32, i32, i32) {
    %c0_i32 = arith.constant 0 : i32
    %c0_i32_0 = arith.constant 0 : i32
    %c0_i32_1 = arith.constant 0 : i32
    %c0_i32_2 = arith.constant 0 : i32
    return %arg0, %c0_i32, %c0_i32_0, %c0_i32_1 : i32, i32, i32, i32
  }
}

</mosaic_0001>

<llo_original>
// kernel: squeeze.11
$region0: #{squeeze.11}
  %s0 = inlined_call_operand.vmem [shape: f32[1,2,3,256], index: 0, kind: input, shape index: {}]
  %s1 = inlined_call_operand.vmem [shape: f32[2,3,16,16], index: 1, kind: output, shape index: {}]
  $region1: #{squeeze.11} parent=0
    #allocation0 [shape = 'u8[24576]{0}', space=vmem, size = 0x6000, scoped, tag = 'scoped mem for input reshape']
    %s3 = sshllo.u32 0, 2
    %s4 = smul.addr 2, 5
    %s5 = scalar_lea.vmem %s0, %s4
    %v6 = vld [vmem:[%s5] sm:%s3]
    %s7 = scalar_lea.vmem [#allocation0], 40
    %8 = vst [vmem:[%s7] sm:%s3] %v6
    %s9 = smul.addr 2, 4
    %s10 = scalar_lea.vmem %s0, %s9
    %v11 = vld [vmem:[%s10] sm:%s3]
    %s12 = scalar_lea.vmem [#allocation0], 32
    %13 = vst [vmem:[%s12] sm:%s3] %v11
    %s14 = smul.addr 2, 3
    %s15 = scalar_lea.vmem %s0, %s14
    %v16 = vld [vmem:[%s15] sm:%s3]
    %s17 = scalar_lea.vmem [#allocation0], 24
    %18 = vst [vmem:[%s17] sm:%s3] %v16
    %s19 = smul.addr 2, 2
    %s20 = scalar_lea.vmem %s0, %s19
    %v21 = vld [vmem:[%s20] sm:%s3]
    %s22 = scalar_lea.vmem [#allocation0], 16
    %23 = vst [vmem:[%s22] sm:%s3] %v21
    %s24 = scalar_lea.vmem %s0, 2
    %v25 = vld [vmem:[%s24] sm:%s3]
    %s26 = scalar_lea.vmem [#allocation0], 8
    %27 = vst [vmem:[%s26] sm:%s3] %v25
    %v28 = vld [vmem:[%s0] sm:%s3]
    %29 = vst [vmem:[#allocation0] sm:%s3] %v28
    %v30 = vld [vmem:[#allocation0] sm:$0x3]
    %vm31 = vcmask 130048
    %32 = vst.msk [vmem:[%s1] ss:$16 sm:$0x3] %vm31, %v30
    %s33 = scalar_lea.vmem [#allocation0], 8
    %v34 = vld [vmem:[%s33] sm:$0x3]
    %vm35 = vcmask 130048
    %s36 = scalar_lea.vmem %s1, 8
    %37 = vst.msk [vmem:[%s36] ss:$16 sm:$0x3] %vm35, %v34
    %s38 = scalar_lea.vmem [#allocation0], 16
    %v39 = vld [vmem:[%s38] sm:$0x3]
    %vm40 = vcmask 130048
    %s41 = scalar_lea.vmem %s1, 32
    %42 = vst.msk [vmem:[%s41] ss:$16 sm:$0x3] %vm40, %v39
    %s43 = scalar_lea.vmem [#allocation0], 24
    %v44 = vld [vmem:[%s43] sm:$0x3]
    %vm45 = vcmask 130048
    %s46 = scalar_lea.vmem %s1, 40
    %47 = vst.msk [vmem:[%s46] ss:$16 sm:$0x3] %vm45, %v44
    %s48 = scalar_lea.vmem [#allocation0], 32
    %v49 = vld [vmem:[%s48] sm:$0x3]
    %vm50 = vcmask 130048
    %s51 = scalar_lea.vmem %s1, 64
    %52 = vst.msk [vmem:[%s51] ss:$16 sm:$0x3] %vm50, %v49
    %s53 = scalar_lea.vmem [#allocation0], 40
    %v54 = vld [vmem:[%s53] sm:$0x3]
    %vm55 = vcmask 130048
    %s56 = scalar_lea.vmem %s1, 72
    %57 = vst.msk [vmem:[%s56] ss:$16 sm:$0x3] %vm55, %v54
    %v58 = vld.sshfl [vmem:[#allocation0] sm:$0xff pattern:$0x99999180]
    %s59 = scalar_lea.vmem [#allocation0], 16
    %v60 = vld.sshfl [vmem:[%s59] sm:$0xff pattern:$0x91800000]
    %vm61 = vcmask 1047556
    %v62 = vsel %vm61, %v60, %v58
    %63 = vrot.lane.b32.xlu0 %v62, 112
    %v64 = vpop.permute.xlu0 %63
    %vm65 = vcmask 130048
    %s66 = scalar_lea.vmem %s1, 1
    %67 = vst.msk [vmem:[%s66] ss:$8 sm:$0xf] %vm65, %v64
    %s68 = scalar_lea.vmem %s1, 1
    %69 = vst.msk [vmem:[%s68] ss:$8 sm:$0xf0] %vm65, %v64
    %s70 = scalar_lea.vmem [#allocation0], 32
    %v71 = vld.sshfl [vmem:[%s70] sm:$0xff pattern:$0x99999180]
    %72 = vrot.lane.b32.xlu0 %v71, 112
    %v73 = vpop.permute.xlu0 %72
    %vm74 = vcmask 130048
    %s75 = scalar_lea.vmem %s1, 65
    %76 = vst.msk [vmem:[%s75] ss:$8 sm:$0xf] %vm74, %v73
    %v77 = vld.sshfl [vmem:[#allocation0] sm:$0xff pattern:$0x99999180]
    %s78 = scalar_lea.vmem [#allocation0], 16
    %v79 = vld.sshfl [vmem:[%s78] sm:$0xff pattern:$0x91800000]
    %vm80 = vcmask 1047556
    %v81 = vsel %vm80, %v79, %v77
    %82 = vrot.lane.b32.xlu0 %v81, 96
    %v83 = vpop.permute.xlu0 %82
    %vm84 = vcmask 130048
    %s85 = scalar_lea.vmem %s1, 2
    %86 = vst.msk [vmem:[%s85] ss:$8 sm:$0xf] %vm84, %v83
    %s87 = scalar_lea.vmem %s1, 2
    %88 = vst.msk [vmem:[%s87] ss:$8 sm:$0xf0] %vm84, %v83
    %s89 = scalar_lea.vmem [#allocation0], 32
    %v90 = vld.sshfl [vmem:[%s89] sm:$0xff pattern:$0x99999180]
    %91 = vrot.lane.b32.xlu0 %v90, 96
    %v92 = vpop.permute.xlu0 %91
    %vm93 = vcmask 130048
    %s94 = scalar_lea.vmem %s1, 66
    %95 = vst.msk [vmem:[%s94] ss:$8 sm:$0xf] %vm93, %v92
    %v96 = vld.sshfl [vmem:[#allocation0] sm:$0xff pattern:$0x99999180]
    %s97 = scalar_lea.vmem [#allocation0], 16
    %v98 = vld.sshfl [vmem:[%s97] sm:$0xff pattern:$0x91800000]
    %vm99 = vcmask 1047556
    %v100 = vsel %vm99, %v98, %v96
    %101 = vrot.lane.b32.xlu0 %v100, 80
    %v102 = vpop.permute.xlu0 %101
    %vm103 = vcmask 130048
    %s104 = scalar_lea.vmem %s1, 3
    %105 = vst.msk [vmem:[%s104] ss:$8 sm:$0xf] %vm103, %v102
    %s106 = scalar_lea.vmem %s1, 3
    %107 = vst.msk [vmem:[%s106] ss:$8 sm:$0xf0] %vm103, %v102
    %s108 = scalar_lea.vmem [#allocation0], 32
    %v109 = vld.sshfl [vmem:[%s108] sm:$0xff pattern:$0x99999180]
    %110 = vrot.lane.b32.xlu0 %v109, 80
    %v111 = vpop.permute.xlu0 %110
    %vm112 = vcmask 130048
    %s113 = scalar_lea.vmem %s1, 67
    %114 = vst.msk [vmem:[%s113] ss:$8 sm:$0xf] %vm112, %v111
    %v115 = vld.sshfl [vmem:[#allocation0] sm:$0xff pattern:$0x99999180]
    %s116 = scalar_lea.vmem [#allocation0], 16
    %v117 = vld.sshfl [vmem:[%s116] sm:$0xff pattern:$0x91800000]
    %vm118 = vcmask 1047556
    %v119 = vsel %vm118, %v117, %v115
    %120 = vrot.lane.b32.xlu0 %v119, 64
    %v121 = vpop.permute.xlu0 %120
    %vm122 = vcmask 130048
    %s123 = scalar_lea.vmem %s1, 4
    %124 = vst.msk [vmem:[%s123] ss:$8 sm:$0xf] %vm122, %v121
    %s125 = scalar_lea.vmem %s1, 4
    %126 = vst.msk [vmem:[%s125] ss:$8 sm:$0xf0] %vm122, %v121
    %s127 = scalar_lea.vmem [#allocation0], 32
    %v128 = vld.sshfl [vmem:[%s127] sm:$0xff pattern:$0x99999180]
    %129 = vrot.lane.b32.xlu0 %v128, 64
    %v130 = vpop.permute.xlu0 %129
    %vm131 = vcmask 130048
    %s132 = scalar_lea.vmem %s1, 68
    %133 = vst.msk [vmem:[%s132] ss:$8 sm:$0xf] %vm131, %v130
    %v134 = vld.sshfl [vmem:[#allocation0] sm:$0xff pattern:$0x99999180]
    %s135 = scalar_lea.vmem [#allocation0], 16
    %v136 = vld.sshfl [vmem:[%s135] sm:$0xff pattern:$0x91800000]
    %vm137 = vcmask 1047556
    %v138 = vsel %vm137, %v136, %v134
    %139 = vrot.lane.b32.xlu0 %v138, 48
    %v140 = vpop.permute.xlu0 %139
    %vm141 = vcmask 130048
    %s142 = scalar_lea.vmem %s1, 5
    %143 = vst.msk [vmem:[%s142] ss:$8 sm:$0xf] %vm141, %v140
    %s144 = scalar_lea.vmem %s1, 5
    %145 = vst.msk [vmem:[%s144] ss:$8 sm:$0xf0] %vm141, %v140
    %s146 = scalar_lea.vmem [#allocation0], 32
    %v147 = vld.sshfl [vmem:[%s146] sm:$0xff pattern:$0x99999180]
    %148 = vrot.lane.b32.xlu0 %v147, 48
    %v149 = vpop.permute.xlu0 %148
    %vm150 = vcmask 130048
    %s151 = scalar_lea.vmem %s1, 69
    %152 = vst.msk [vmem:[%s151] ss:$8 sm:$0xf] %vm150, %v149
    %v153 = vld.sshfl [vmem:[#allocation0] sm:$0xff pattern:$0x99999180]
    %s154 = scalar_lea.vmem [#allocation0], 16
    %v155 = vld.sshfl [vmem:[%s154] sm:$0xff pattern:$0x91800000]
    %vm156 = vcmask 1047556
    %v157 = vsel %vm156, %v155, %v153
    %158 = vrot.lane.b32.xlu0 %v157, 32
    %v159 = vpop.permute.xlu0 %158
    %vm160 = vcmask 130048
    %s161 = scalar_lea.vmem %s1, 6
    %162 = vst.msk [vmem:[%s161] ss:$8 sm:$0xf] %vm160, %v159
    %s163 = scalar_lea.vmem %s1, 6
    %164 = vst.msk [vmem:[%s163] ss:$8 sm:$0xf0] %vm160, %v159
    %s165 = scalar_lea.vmem [#allocation0], 32
    %v166 = vld.sshfl [vmem:[%s165] sm:$0xff pattern:$0x99999180]
    %167 = vrot.lane.b32.xlu0 %v166, 32
    %v168 = vpop.permute.xlu0 %167
    %vm169 = vcmask 130048
    %s170 = scalar_lea.vmem %s1, 70
    %171 = vst.msk [vmem:[%s170] ss:$8 sm:$0xf] %vm169, %v168
    %v172 = vld.sshfl [vmem:[#allocation0] sm:$0xff pattern:$0x99999180]
    %s173 = scalar_lea.vmem [#allocation0], 16
    %v174 = vld.sshfl [vmem:[%s173] sm:$0xff pattern:$0x91800000]
    %vm175 = vcmask 1047556
    %v176 = vsel %vm175, %v174, %v172
    %177 = vrot.lane.b32.xlu0 %v176, 16
    %v178 = vpop.permute.xlu0 %177
    %vm179 = vcmask 130048
    %s180 = scalar_lea.vmem %s1, 7
    %181 = vst.msk [vmem:[%s180] ss:$8 sm:$0xf] %vm179, %v178
    %s182 = scalar_lea.vmem %s1, 7
    %183 = vst.msk [vmem:[%s182] ss:$8 sm:$0xf0] %vm179, %v178
    %s184 = scalar_lea.vmem [#allocation0], 32
    %v185 = vld.sshfl [vmem:[%s184] sm:$0xff pattern:$0x99999180]
    %186 = vrot.lane.b32.xlu0 %v185, 16
    %v187 = vpop.permute.xlu0 %186
    %vm188 = vcmask 130048
    %s189 = scalar_lea.vmem %s1, 71
    %190 = vst.msk [vmem:[%s189] ss:$8 sm:$0xf] %vm188, %v187

// kernel: squeeze.8
$region0: #{squeeze.8}
  %s0 = inlined_call_operand.vmem [shape: f32[1,2,5,256], index: 0, kind: input, shape index: {}]
  %s1 = inlined_call_operand.vmem [shape: f32[2,5,16,16], index: 1, kind: output, shape index: {}]
  $region1: #{squeeze.8} parent=0
    #allocation0 [shape = 'u8[40960]{0}', space=vmem, size = 0xa000, scoped, tag = 'scoped mem for input reshape']
    %s3 = sshllo.u32 0, 2
    %s4 = smul.addr 2, 9
    %s5 = scalar_lea.vmem %s0, %s4
    %v6 = vld [vmem:[%s5] sm:%s3]
    %s7 = scalar_lea.vmem [#allocation0], 72
    %8 = vst [vmem:[%s7] sm:%s3] %v6
    %s9 = smul.addr 2, 8
    %s10 = scalar_lea.vmem %s0, %s9
    %v11 = vld [vmem:[%s10] sm:%s3]
    %s12 = scalar_lea.vmem [#allocation0], 64
    %13 = vst [vmem:[%s12] sm:%s3] %v11
    %s14 = smul.addr 2, 7
    %s15 = scalar_lea.vmem %s0, %s14
    %v16 = vld [vmem:[%s15] sm:%s3]
    %s17 = scalar_lea.vmem [#allocation0], 56
    %18 = vst [vmem:[%s17] sm:%s3] %v16
    %s19 = smul.addr 2, 6
    %s20 = scalar_lea.vmem %s0, %s19
    %v21 = vld [vmem:[%s20] sm:%s3]
    %s22 = scalar_lea.vmem [#allocation0], 48
    %23 = vst [vmem:[%s22] sm:%s3] %v21
    %s24 = smul.addr 2, 5
    %s25 = scalar_lea.vmem %s0, %s24
    %v26 = vld [vmem:[%s25] sm:%s3]
    %s27 = scalar_lea.vmem [#allocation0], 40
    %28 = vst [vmem:[%s27] sm:%s3] %v26
    %s29 = smul.addr 2, 4
    %s30 = scalar_lea.vmem %s0, %s29
    %v31 = vld [vmem:[%s30] sm:%s3]
    %s32 = scalar_lea.vmem [#allocation0], 32
    %33 = vst [vmem:[%s32] sm:%s3] %v31
    %s34 = smul.addr 2, 3
    %s35 = scalar_lea.vmem %s0, %s34
    %v36 = vld [vmem:[%s35] sm:%s3]
    %s37 = scalar_lea.vmem [#allocation0], 24
    %38 = vst [vmem:[%s37] sm:%s3] %v36
    %s39 = smul.addr 2, 2
    %s40 = scalar_lea.vmem %s0, %s39
    %v41 = vld [vmem:[%s40] sm:%s3]
    %s42 = scalar_lea.vmem [#allocation0], 16
    %43 = vst [vmem:[%s42] sm:%s3] %v41
    %s44 = scalar_lea.vmem %s0, 2
    %v45 = vld [vmem:[%s44] sm:%s3]
    %s46 = scalar_lea.vmem [#allocation0], 8
    %47 = vst [vmem:[%s46] sm:%s3] %v45
    %v48 = vld [vmem:[%s0] sm:%s3]
    %49 = vst [vmem:[#allocation0] sm:%s3] %v48
    %v50 = vld [vmem:[#allocation0] sm:$0x3]
    %vm51 = vcmask 130048
    %52 = vst.msk [vmem:[%s1] ss:$16 sm:$0x3] %vm51, %v50
    %s53 = scalar_lea.vmem [#allocation0], 8
    %v54 = vld [vmem:[%s53] sm:$0x3]
    %vm55 = vcmask 130048
    %s56 = scalar_lea.vmem %s1, 8
    %57 = vst.msk [vmem:[%s56] ss:$16 sm:$0x3] %vm55, %v54
    %s58 = scalar_lea.vmem [#allocation0], 16
    %v59 = vld [vmem:[%s58] sm:$0x3]
    %vm60 = vcmask 130048
    %s61 = scalar_lea.vmem %s1, 32
    %62 = vst.msk [vmem:[%s61] ss:$16 sm:$0x3] %vm60, %v59
    %s63 = scalar_lea.vmem [#allocation0], 24
    %v64 = vld [vmem:[%s63] sm:$0x3]
    %vm65 = vcmask 130048
    %s66 = scalar_lea.vmem %s1, 40
    %67 = vst.msk [vmem:[%s66] ss:$16 sm:$0x3] %vm65, %v64
    %s68 = scalar_lea.vmem [#allocation0], 32
    %v69 = vld [vmem:[%s68] sm:$0x3]
    %vm70 = vcmask 130048
    %s71 = scalar_lea.vmem %s1, 64
    %72 = vst.msk [vmem:[%s71] ss:$16 sm:$0x3] %vm70, %v69
    %s73 = scalar_lea.vmem [#allocation0], 40
    %v74 = vld [vmem:[%s73] sm:$0x3]
    %vm75 = vcmask 130048
    %s76 = scalar_lea.vmem %s1, 72
    %77 = vst.msk [vmem:[%s76] ss:$16 sm:$0x3] %vm75, %v74
    %s78 = scalar_lea.vmem [#allocation0], 48
    %v79 = vld [vmem:[%s78] sm:$0x3]
    %vm80 = vcmask 130048
    %s81 = scalar_lea.vmem %s1, 96
    %82 = vst.msk [vmem:[%s81] ss:$16 sm:$0x3] %vm80, %v79
    %s83 = scalar_lea.vmem [#allocation0], 56
    %v84 = vld [vmem:[%s83] sm:$0x3]
    %vm85 = vcmask 130048
    %s86 = scalar_lea.vmem %s1, 104
    %87 = vst.msk [vmem:[%s86] ss:$16 sm:$0x3] %vm85, %v84
    %s88 = scalar_lea.vmem [#allocation0], 64
    %v89 = vld [vmem:[%s88] sm:$0x3]
    %vm90 = vcmask 130048
    %s91 = scalar_lea.vmem %s1, 128
    %92 = vst.msk [vmem:[%s91] ss:$16 sm:$0x3] %vm90, %v89
    %s93 = scalar_lea.vmem [#allocation0], 72
    %v94 = vld [vmem:[%s93] sm:$0x3]
    %vm95 = vcmask 130048
    %s96 = scalar_lea.vmem %s1, 136
    %97 = vst.msk [vmem:[%s96] ss:$16 sm:$0x3] %vm95, %v94
    %v98 = vld.sshfl [vmem:[#allocation0] sm:$0xff pattern:$0x99999180]
    %s99 = scalar_lea.vmem [#allocation0], 16
    %v100 = vld.sshfl [vmem:[%s99] sm:$0xff pattern:$0x91800000]
    %vm101 = vcmask 1047556
    %v102 = vsel %vm101, %v100, %v98
    %103 = vrot.lane.b32.xlu0 %v102, 112
    %v104 = vpop.permute.xlu0 %103
    %vm105 = vcmask 130048
    %s106 = scalar_lea.vmem %s1, 1
    %107 = vst.msk [vmem:[%s106] ss:$8 sm:$0xf] %vm105, %v104
    %s108 = scalar_lea.vmem %s1, 1
    %109 = vst.msk [vmem:[%s108] ss:$8 sm:$0xf0] %vm105, %v104
    %s110 = scalar_lea.vmem [#allocation0], 32
    %v111 = vld.sshfl [vmem:[%s110] sm:$0xff pattern:$0x99999180]
    %s112 = scalar_lea.vmem [#allocation0], 48
    %v113 = vld.sshfl [vmem:[%s112] sm:$0xff pattern:$0x91800000]
    %vm114 = vcmask 1047556
    %v115 = vsel %vm114, %v113, %v111
    %116 = vrot.lane.b32.xlu0 %v115, 112
    %v117 = vpop.permute.xlu0 %116
    %vm118 = vcmask 130048
    %s119 = scalar_lea.vmem %s1, 65
    %120 = vst.msk [vmem:[%s119] ss:$8 sm:$0xf] %vm118, %v117
    %s121 = scalar_lea.vmem %s1, 65
    %122 = vst.msk [vmem:[%s121] ss:$8 sm:$0xf0] %vm118, %v117
    %s123 = scalar_lea.vmem [#allocation0], 64
    %v124 = vld.sshfl [vmem:[%s123] sm:$0xff pattern:$0x99999180]
    %125 = vrot.lane.b32.xlu0 %v124, 112
    %v126 = vpop.permute.xlu0 %125
    %vm127 = vcmask 130048
    %s128 = scalar_lea.vmem %s1, 129
    %129 = vst.msk [vmem:[%s128] ss:$8 sm:$0xf] %vm127, %v126
    %v130 = vld.sshfl [vmem:[#allocation0] sm:$0xff pattern:$0x99999180]
    %s131 = scalar_lea.vmem [#allocation0], 16
    %v132 = vld.sshfl [vmem:[%s131] sm:$0xff pattern:$0x91800000]
    %vm133 = vcmask 1047556
    %v134 = vsel %vm133, %v132, %v130
    %135 = vrot.lane.b32.xlu0 %v134, 96
    %v136 = vpop.permute.xlu0 %135
    %vm137 = vcmask 130048
    %s138 = scalar_lea.vmem %s1, 2
    %139 = vst.msk [vmem:[%s138] ss:$8 sm:$0xf] %vm137, %v136
    %s140 = scalar_lea.vmem %s1, 2
    %141 = vst.msk [vmem:[%s140] ss:$8 sm:$0xf0] %vm137, %v136
    %s142 = scalar_lea.vmem [#allocation0], 32
    %v143 = vld.sshfl [vmem:[%s142] sm:$0xff pattern:$0x99999180]
    %s144 = scalar_lea.vmem [#allocation0], 48
    %v145 = vld.sshfl [vmem:[%s144] sm:$0xff pattern:$0x91800000]
    %vm146 = vcmask 1047556
    %v147 = vsel %vm146, %v145, %v143
    %148 = vrot.lane.b32.xlu0 %v147, 96
    %v149 = vpop.permute.xlu0 %148
    %vm150 = vcmask 130048
    %s151 = scalar_lea.vmem %s1, 66
    %152 = vst.msk [vmem:[%s151] ss:$8 sm:$0xf] %vm150, %v149
    %s153 = scalar_lea.vmem %s1, 66
    %154 = vst.msk [vmem:[%s153] ss:$8 sm:$0xf0] %vm150, %v149
    %s155 = scalar_lea.vmem [#allocation0], 64
    %v156 = vld.sshfl [vmem:[%s155] sm:$0xff pattern:$0x99999180]
    %157 = vrot.lane.b32.xlu0 %v156, 96
    %v158 = vpop.permute.xlu0 %157
    %vm159 = vcmask 130048
    %s160 = scalar_lea.vmem %s1, 130
    %161 = vst.msk [vmem:[%s160] ss:$8 sm:$0xf] %vm159, %v158
    %v162 = vld.sshfl [vmem:[#allocation0] sm:$0xff pattern:$0x99999180]
    %s163 = scalar_lea.vmem [#allocation0], 16
    %v164 = vld.sshfl [vmem:[%s163] sm:$0xff pattern:$0x91800000]
    %vm165 = vcmask 1047556
    %v166 = vsel %vm165, %v164, %v162
    %167 = vrot.lane.b32.xlu0 %v166, 80
    %v168 = vpop.permute.xlu0 %167
    %vm169 = vcmask 130048
    %s170 = scalar_lea.vmem %s1, 3
    %171 = vst.msk [vmem:[%s170] ss:$8 sm:$0xf] %vm169, %v168
    %s172 = scalar_lea.vmem %s1, 3
    %173 = vst.msk [vmem:[%s172] ss:$8 sm:$0xf0] %vm169, %v168
    %s174 = scalar_lea.vmem [#allocation0], 32
    %v175 = vld.sshfl [vmem:[%s174] sm:$0xff pattern:$0x99999180]
    %s176 = scalar_lea.vmem [#allocation0], 48
    %v177 = vld.sshfl [vmem:[%s176] sm:$0xff pattern:$0x91800000]
    %vm178 = vcmask 1047556
    %v179 = vsel %vm178, %v177, %v175
    %180 = vrot.lane.b32.xlu0 %v179, 80
    %v181 = vpop.permute.xlu0 %180
    %vm182 = vcmask 130048
    %s183 = scalar_lea.vmem %s1, 67
    %184 = vst.msk [vmem:[%s183] ss:$8 sm:$0xf] %vm182, %v181
    %s185 = scalar_lea.vmem %s1, 67
    %186 = vst.msk [vmem:[%s185] ss:$8 sm:$0xf0] %vm182, %v181
    %s187 = scalar_lea.vmem [#allocation0], 64
    %v188 = vld.sshfl [vmem:[%s187] sm:$0xff pattern:$0x99999180]
    %189 = vrot.lane.b32.xlu0 %v188, 80
    %v190 = vpop.permute.xlu0 %189
    %vm191 = vcmask 130048
    %s192 = scalar_lea.vmem %s1, 131
    %193 = vst.msk [vmem:[%s192] ss:$8 sm:$0xf] %vm191, %v190
    %v194 = vld.sshfl [vmem:[#allocation0] sm:$0xff pattern:$0x99999180]
    %s195 = scalar_lea.vmem [#allocation0], 16
    %v196 = vld.sshfl [vmem:[%s195] sm:$0xff pattern:$0x91800000]
    %vm197 = vcmask 1047556
    %v198 = vsel %vm197, %v196, %v194
    %199 = vrot.lane.b32.xlu0 %v198, 64
    %v200 = vpop.permute.xlu0 %199
    %vm201 = vcmask 130048
    %s202 = scalar_lea.vmem %s1, 4
    %203 = vst.msk [vmem:[%s202] ss:$8 sm:$0xf] %vm201, %v200
    %s204 = scalar_lea.vmem %s1, 4
    %205 = vst.msk [vmem:[%s204] ss:$8 sm:$0xf0] %vm201, %v200
    %s206 = scalar_lea.vmem [#allocation0], 32
    %v207 = vld.sshfl [vmem:[%s206] sm:$0xff pattern:$0x99999180]
    %s208 = scalar_lea.vmem [#allocation0], 48
    %v209 = vld.sshfl [vmem:[%s208] sm:$0xff pattern:$0x91800000]
    %vm210 = vcmask 1047556
    %v211 = vsel %vm210, %v209, %v207
    %212 = vrot.lane.b32.xlu0 %v211, 64
    %v213 = vpop.permute.xlu0 %212
    %vm214 = vcmask 130048
    %s215 = scalar_lea.vmem %s1, 68
    %216 = vst.msk [vmem:[%s215] ss:$8 sm:$0xf] %vm214, %v213
    %s217 = scalar_lea.vmem %s1, 68
    %218 = vst.msk [vmem:[%s217] ss:$8 sm:$0xf0] %vm214, %v213
    %s219 = scalar_lea.vmem [#allocation0], 64
    %v220 = vld.sshfl [vmem:[%s219] sm:$0xff pattern:$0x99999180]
    %221 = vrot.lane.b32.xlu0 %v220, 64
    %v222 = vpop.permute.xlu0 %221
    %vm223 = vcmask 130048
    %s224 = scalar_lea.vmem %s1, 132
    %225 = vst.msk [vmem:[%s224] ss:$8 sm:$0xf] %vm223, %v222
    %v226 = vld.sshfl [vmem:[#allocation0] sm:$0xff pattern:$0x99999180]
    %s227 = scalar_lea.vmem [#allocation0], 16
    %v228 = vld.sshfl [vmem:[%s227] sm:$0xff pattern:$0x91800000]
    %vm229 = vcmask 1047556
    %v230 = vsel %vm229, %v228, %v226
    %231 = vrot.lane.b32.xlu0 %v230, 48
    %v232 = vpop.permute.xlu0 %231
    %vm233 = vcmask 130048
    %s234 = scalar_lea.vmem %s1, 5
    %235 = vst.msk [vmem:[%s234] ss:$8 sm:$0xf] %vm233, %v232
    %s236 = scalar_lea.vmem %s1, 5
    %237 = vst.msk [vmem:[%s236] ss:$8 sm:$0xf0] %vm233, %v232
    %s238 = scalar_lea.vmem [#allocation0], 32
    %v239 = vld.sshfl [vmem:[%s238] sm:$0xff pattern:$0x99999180]
    %s240 = scalar_lea.vmem [#allocation0], 48
    %v241 = vld.sshfl [vmem:[%s240] sm:$0xff pattern:$0x91800000]
    %vm242 = vcmask 1047556
    %v243 = vsel %vm242, %v241, %v239
    %244 = vrot.lane.b32.xlu0 %v243, 48
    %v245 = vpop.permute.xlu0 %244
    %vm246 = vcmask 130048
    %s247 = scalar_lea.vmem %s1, 69
    %248 = vst.msk [vmem:[%s247] ss:$8 sm:$0xf] %vm246, %v245
    %s249 = scalar_lea.vmem %s1, 69
    %250 = vst.msk [vmem:[%s249] ss:$8 sm:$0xf0] %vm246, %v245
    %s251 = scalar_lea.vmem [#allocation0], 64
    %v252 = vld.sshfl [vmem:[%s251] sm:$0xff pattern:$0x99999180]
    %253 = vrot.lane.b32.xlu0 %v252, 48
    %v254 = vpop.permute.xlu0 %253
    %vm255 = vcmask 130048
    %s256 = scalar_lea.vmem %s1, 133
    %257 = vst.msk [vmem:[%s256] ss:$8 sm:$0xf] %vm255, %v254
    %v258 = vld.sshfl [vmem:[#allocation0] sm:$0xff pattern:$0x99999180]
    %s259 = scalar_lea.vmem [#allocation0], 16
    %v260 = vld.sshfl [vmem:[%s259] sm:$0xff pattern:$0x91800000]
    %vm261 = vcmask 1047556
    %v262 = vsel %vm261, %v260, %v258
    %263 = vrot.lane.b32.xlu0 %v262, 32
    %v264 = vpop.permute.xlu0 %263
    %vm265 = vcmask 130048
    %s266 = scalar_lea.vmem %s1, 6
    %267 = vst.msk [vmem:[%s266] ss:$8 sm:$0xf] %vm265, %v264
    %s268 = scalar_lea.vmem %s1, 6
    %269 = vst.msk [vmem:[%s268] ss:$8 sm:$0xf0] %vm265, %v264
    %s270 = scalar_lea.vmem [#allocation0], 32
    %v271 = vld.sshfl [vmem:[%s270] sm:$0xff pattern:$0x99999180]
    %s272 = scalar_lea.vmem [#allocation0], 48
    %v273 = vld.sshfl [vmem:[%s272] sm:$0xff pattern:$0x91800000]
    %vm274 = vcmask 1047556
    %v275 = vsel %vm274, %v273, %v271
    %276 = vrot.lane.b32.xlu0 %v275, 32
    %v277 = vpop.permute.xlu0 %276
    %vm278 = vcmask 130048
    %s279 = scalar_lea.vmem %s1, 70
    %280 = vst.msk [vmem:[%s279] ss:$8 sm:$0xf] %vm278, %v277
    %s281 = scalar_lea.vmem %s1, 70
    %282 = vst.msk [vmem:[%s281] ss:$8 sm:$0xf0] %vm278, %v277
    %s283 = scalar_lea.vmem [#allocation0], 64
    %v284 = vld.sshfl [vmem:[%s283] sm:$0xff pattern:$0x99999180]
    %285 = vrot.lane.b32.xlu0 %v284, 32
    %v286 = vpop.permute.xlu0 %285
    %vm287 = vcmask 130048
    %s288 = scalar_lea.vmem %s1, 134
    %289 = vst.msk [vmem:[%s288] ss:$8 sm:$0xf] %vm287, %v286
    %v290 = vld.sshfl [vmem:[#allocation0] sm:$0xff pattern:$0x99999180]
    %s291 = scalar_lea.vmem [#allocation0], 16
    %v292 = vld.sshfl [vmem:[%s291] sm:$0xff pattern:$0x91800000]
    %vm293 = vcmask 1047556
    %v294 = vsel %vm293, %v292, %v290
    %295 = vrot.lane.b32.xlu0 %v294, 16
    %v296 = vpop.permute.xlu0 %295
    %vm297 = vcmask 130048
    %s298 = scalar_lea.vmem %s1, 7
    %299 = vst.msk [vmem:[%s298] ss:$8 sm:$0xf] %vm297, %v296
    %s300 = scalar_lea.vmem %s1, 7
    %301 = vst.msk [vmem:[%s300] ss:$8 sm:$0xf0] %vm297, %v296
    %s302 = scalar_lea.vmem [#allocation0], 32
    %v303 = vld.sshfl [vmem:[%s302] sm:$0xff pattern:$0x99999180]
    %s304 = scalar_lea.vmem [#allocation0], 48
    %v305 = vld.sshfl [vmem:[%s304] sm:$0xff pattern:$0x91800000]
    %vm306 = vcmask 1047556
    %v307 = vsel %vm306, %v305, %v303
    %308 = vrot.lane.b32.xlu0 %v307, 16
    %v309 = vpop.permute.xlu0 %308
    %vm310 = vcmask 130048
    %s311 = scalar_lea.vmem %s1, 71
    %312 = vst.msk [vmem:[%s311] ss:$8 sm:$0xf] %vm310, %v309
    %s313 = scalar_lea.vmem %s1, 71
    %314 = vst.msk [vmem:[%s313] ss:$8 sm:$0xf0] %vm310, %v309
    %s315 = scalar_lea.vmem [#allocation0], 64
    %v316 = vld.sshfl [vmem:[%s315] sm:$0xff pattern:$0x99999180]
    %317 = vrot.lane.b32.xlu0 %v316, 16
    %v318 = vpop.permute.xlu0 %317
    %vm319 = vcmask 130048
    %s320 = scalar_lea.vmem %s1, 135
    %321 = vst.msk [vmem:[%s320] ss:$8 sm:$0xf] %vm319, %v318

// kernel: contexture_forward.1
$region0: #{contexture_forward.1}
  #allocation0 [shape = 'u32[]', space=smem, size = 0x4, offset = 0x4, fixed_abs, tag = 'smem constant byte address 0x4 - core index']
  #allocation1 [shape = 'u32[144,128]{1,0:T(1,128)}', space=vmem, size = 0x12000, scoped, tag = 'internal scratch']
  %s0 = inlined_call_operand.vmem [shape: f32[2,2,42,256], index: 0, kind: input, shape index: {}]
  %s1 = inlined_call_operand.vmem [shape: f32[256,49], index: 1, kind: input, shape index: {}]
  %s2 = inlined_call_operand.vmem [shape: f32[49,256], index: 2, kind: input, shape index: {}]
  %s3 = inlined_call_operand.vmem [shape: f32[2,176,42], index: 3, kind: input, shape index: {}]
  %s4 = inlined_call_operand.vmem [shape: f32[2,176,49], index: 4, kind: input, shape index: {}]
  %s5 = inlined_call_operand.vmem [shape: f32[2,10,128], index: 5, kind: input, shape index: {}]
  %s6 = inlined_call_operand.vmem [shape: f32[2,5,10], index: 6, kind: input, shape index: {}]
  %s7 = inlined_call_operand.vmem [shape: f32[2,5,1], index: 7, kind: input, shape index: {}]
  %s8 = inlined_call_operand.vmem [shape: f32[2,5,1], index: 8, kind: input, shape index: {}]
  %s9 = inlined_call_operand.vmem [shape: f32[2,2,10,256], index: 9, kind: output, shape index: {0}]
  %s10 = inlined_call_operand.vmem [shape: f32[2,2,5,256], index: 10, kind: output, shape index: {1}]
  %s11 = inlined_call_operand.vmem [shape: f32[2,2,5,256], index: 11, kind: output, shape index: {2}]
  %12 = xla_tuple %s9, %s10, %s11
  %s13 = sld [smem:[#allocation0]]
  $region85: #{contexture_forward.1} parent=0
    _
  %s15 = ssub.s32 1, %s13
  %s16 = scalar_select 0, %s15, %s13
  loop: start=0, step=1, limit=4
  $region2: #{contexture_forward.1} parent=0 // loop_pre_header
    _
  $region3: #{contexture_forward.1} parent=0 // loop_header
    %s18 = sphi 0, %s22
    %p19 = scmp.ge.s32.totalorder %s18, 4
    %s28 = sphi 0, %s30
    %s31 = sphi 0, %s28
    %s32 = sphi 0, %s31
    %s48 = sphi 0, %s32
    %s52 = sphi 0, %s52
    %s54 = sphi 0, %s52
    %s55 = sphi 0, %s54
    %s69 = sphi 0, %s55
    %s73 = sphi 0, %s73
    %s75 = sphi 0, %s73
    %s76 = sphi 0, %s75
    %s90 = sphi 0, %s76
    %s96 = sphi 0, %s98
    %s99 = sphi 0, %s96
    %s100 = sphi 0, %s99
    %s116 = sphi 0, %s100
    %s122 = sphi 0, %s124
    %s125 = sphi 0, %s122
    %s126 = sphi 0, %s125
    %s142 = sphi 0, %s126
    %s148 = sphi 0, %s150
    %s151 = sphi 0, %s148
    %s152 = sphi 0, %s151
    %s168 = sphi 0, %s152
    %s174 = sphi 0, %s176
    %s177 = sphi 0, %s174
    %s178 = sphi 0, %s177
    %s194 = sphi 0, %s178
    %s200 = sphi 0, %s202
    %s203 = sphi 0, %s200
    %s204 = sphi 0, %s203
    %s220 = sphi 0, %s204
    %s226 = sphi 0, %s228
    %s229 = sphi 0, %s226
    %s230 = sphi 0, %s229
    %s246 = sphi 0, %s230
    %s252 = sphi 0, %s254
    %s255 = sphi 0, %s252
    %s256 = sphi 0, %s255
    %s272 = sphi 0, %s256
    %s278 = sphi 0, %s280
    %s281 = sphi 0, %s278
    %s282 = sphi 0, %s281
    %s298 = sphi 0, %s282
    %s304 = sphi 0, %s306
    %s307 = sphi 0, %s304
    %s308 = sphi 0, %s307
    %s324 = sphi 0, %s308
  $region4: #{contexture_forward.1} parent=0 // loop_header_branch
    %21 = sbr.rel (%p19) target = $region8
  $region5: #{contexture_forward.1} parent=0 // loop_body
    %s23 = ssub.s32 %s18, 1
    %s24 = ssub.s32 %s18, 2
    %s25 = sadd.s32 %s18, 1
    %s26 = ssub.s32 %s18, %s25
    %p27 = scmp.eq.s32.totalorder %s26, 0
    %s29 = sadd.s32 %s28, 1
    %s30 = scalar_select %p27, %s28, %s29
    %p33 = pneg %p27
    %p34 = scmp.eq.s32.totalorder %s18, 1
    %p35 = por %p33, %p34
    %p36 = scmp.ne.s32.totalorder %s28, %s31
    %p37 = scmp.eq.s32.totalorder %s18, 0
    %p38 = por %p36, %p37
    %p39 = scmp.ne.s32.totalorder %s28, %s31
    %p40 = scmp.eq.s32.totalorder %s23, 1
    %p41 = por %p39, %p40
    %p42 = scmp.ne.s32.totalorder %s31, %s32
    %p43 = scmp.eq.s32.totalorder %s23, 0
    %p44 = por %p42, %p43
    %p45 = scmp.ne.s32.totalorder %s31, %s32
    %p46 = scmp.eq.s32.totalorder %s24, 1
    %p47 = por %p45, %p46
    %p49 = scmp.ne.s32.totalorder %s32, %s48
    %p50 = scmp.eq.s32.totalorder %s24, 0
    %p51 = por %p49, %p50
    %s53 = sadd.s32 %s52, 1
    %p56 = scmp.eq.s32.totalorder %s18, 1
    %p57 = scmp.ne.s32.totalorder %s52, %s54
    %p58 = scmp.eq.s32.totalorder %s18, 0
    %p59 = por %p57, %p58
    %p60 = scmp.ne.s32.totalorder %s52, %s54
    %p61 = scmp.eq.s32.totalorder %s23, 1
    %p62 = por %p60, %p61
    %p63 = scmp.ne.s32.totalorder %s54, %s55
    %p64 = scmp.eq.s32.totalorder %s23, 0
    %p65 = por %p63, %p64
    %p66 = scmp.ne.s32.totalorder %s54, %s55
    %p67 = scmp.eq.s32.totalorder %s24, 1
    %p68 = por %p66, %p67
    %p70 = scmp.ne.s32.totalorder %s55, %s69
    %p71 = scmp.eq.s32.totalorder %s24, 0
    %p72 = por %p70, %p71
    %s74 = sadd.s32 %s73, 1
    %p77 = scmp.eq.s32.totalorder %s18, 1
    %p78 = scmp.ne.s32.totalorder %s73, %s75
    %p79 = scmp.eq.s32.totalorder %s18, 0
    %p80 = por %p78, %p79
    %p81 = scmp.ne.s32.totalorder %s73, %s75
    %p82 = scmp.eq.s32.totalorder %s23, 1
    %p83 = por %p81, %p82
    %p84 = scmp.ne.s32.totalorder %s75, %s76
    %p85 = scmp.eq.s32.totalorder %s23, 0
    %p86 = por %p84, %p85
    %p87 = scmp.ne.s32.totalorder %s75, %s76
    %p88 = scmp.eq.s32.totalorder %s24, 1
    %p89 = por %p87, %p88
    %p91 = scmp.ne.s32.totalorder %s76, %s90
    %p92 = scmp.eq.s32.totalorder %s24, 0
    %p93 = por %p91, %p92
    %s94 = ssub.s32 %s18, %s25
    %p95 = scmp.eq.s32.totalorder %s94, 0
    %s97 = sadd.s32 %s96, 1
    %s98 = scalar_select %p95, %s96, %s97
    %p101 = pneg %p95
    %p102 = scmp.eq.s32.totalorder %s18, 1
    %p103 = por %p101, %p102
    %p104 = scmp.ne.s32.totalorder %s96, %s99
    %p105 = scmp.eq.s32.totalorder %s18, 0
    %p106 = por %p104, %p105
    %p107 = scmp.ne.s32.totalorder %s96, %s99
    %p108 = scmp.eq.s32.totalorder %s23, 1
    %p109 = por %p107, %p108
    %p110 = scmp.ne.s32.totalorder %s99, %s100
    %p111 = scmp.eq.s32.totalorder %s23, 0
    %p112 = por %p110, %p111
    %p113 = scmp.ne.s32.totalorder %s99, %s100
    %p114 = scmp.eq.s32.totalorder %s24, 1
    %p115 = por %p113, %p114
    %p117 = scmp.ne.s32.totalorder %s100, %s116
    %p118 = scmp.eq.s32.totalorder %s24, 0
    %p119 = por %p117, %p118
    %s120 = ssub.s32 %s18, %s25
    %p121 = scmp.eq.s32.totalorder %s120, 0
    %s123 = sadd.s32 %s122, 1
    %s124 = scalar_select %p121, %s122, %s123
    %p127 = pneg %p121
    %p128 = scmp.eq.s32.totalorder %s18, 1
    %p129 = por %p127, %p128
    %p130 = scmp.ne.s32.totalorder %s122, %s125
    %p131 = scmp.eq.s32.totalorder %s18, 0
    %p132 = por %p130, %p131
    %p133 = scmp.ne.s32.totalorder %s122, %s125
    %p134 = scmp.eq.s32.totalorder %s23, 1
    %p135 = por %p133, %p134
    %p136 = scmp.ne.s32.totalorder %s125, %s126
    %p137 = scmp.eq.s32.totalorder %s23, 0
    %p138 = por %p136, %p137
    %p139 = scmp.ne.s32.totalorder %s125, %s126
    %p140 = scmp.eq.s32.totalorder %s24, 1
    %p141 = por %p139, %p140
    %p143 = scmp.ne.s32.totalorder %s126, %s142
    %p144 = scmp.eq.s32.totalorder %s24, 0
    %p145 = por %p143, %p144
    %s146 = ssub.s32 %s18, %s25
    %p147 = scmp.eq.s32.totalorder %s146, 0
    %s149 = sadd.s32 %s148, 1
    %s150 = scalar_select %p147, %s148, %s149
    %p153 = pneg %p147
    %p154 = scmp.eq.s32.totalorder %s18, 1
    %p155 = por %p153, %p154
    %p156 = scmp.ne.s32.totalorder %s148, %s151
    %p157 = scmp.eq.s32.totalorder %s18, 0
    %p158 = por %p156, %p157
    %p159 = scmp.ne.s32.totalorder %s148, %s151
    %p160 = scmp.eq.s32.totalorder %s23, 1
    %p161 = por %p159, %p160
    %p162 = scmp.ne.s32.totalorder %s151, %s152
    %p163 = scmp.eq.s32.totalorder %s23, 0
    %p164 = por %p162, %p163
    %p165 = scmp.ne.s32.totalorder %s151, %s152
    %p166 = scmp.eq.s32.totalorder %s24, 1
    %p167 = por %p165, %p166
    %p169 = scmp.ne.s32.totalorder %s152, %s168
    %p170 = scmp.eq.s32.totalorder %s24, 0
    %p171 = por %p169, %p170
    %s172 = ssub.s32 %s18, %s25
    %p173 = scmp.eq.s32.totalorder %s172, 0
    %s175 = sadd.s32 %s174, 1
    %s176 = scalar_select %p173, %s174, %s175
    %p179 = pneg %p173
    %p180 = scmp.eq.s32.totalorder %s18, 1
    %p181 = por %p179, %p180
    %p182 = scmp.ne.s32.totalorder %s174, %s177
    %p183 = scmp.eq.s32.totalorder %s18, 0
    %p184 = por %p182, %p183
    %p185 = scmp.ne.s32.totalorder %s174, %s177
    %p186 = scmp.eq.s32.totalorder %s23, 1
    %p187 = por %p185, %p186
    %p188 = scmp.ne.s32.totalorder %s177, %s178
    %p189 = scmp.eq.s32.totalorder %s23, 0
    %p190 = por %p188, %p189
    %p191 = scmp.ne.s32.totalorder %s177, %s178
    %p192 = scmp.eq.s32.totalorder %s24, 1
    %p193 = por %p191, %p192
    %p195 = scmp.ne.s32.totalorder %s178, %s194
    %p196 = scmp.eq.s32.totalorder %s24, 0
    %p197 = por %p195, %p196
    %s198 = ssub.s32 %s18, %s25
    %p199 = scmp.eq.s32.totalorder %s198, 0
    %s201 = sadd.s32 %s200, 1
    %s202 = scalar_select %p199, %s200, %s201
    %p205 = pneg %p199
    %p206 = scmp.eq.s32.totalorder %s18, 1
    %p207 = por %p205, %p206
    %p208 = scmp.ne.s32.totalorder %s200, %s203
    %p209 = scmp.eq.s32.totalorder %s18, 0
    %p210 = por %p208, %p209
    %p211 = scmp.ne.s32.totalorder %s200, %s203
    %p212 = scmp.eq.s32.totalorder %s23, 1
    %p213 = por %p211, %p212
    %p214 = scmp.ne.s32.totalorder %s203, %s204
    %p215 = scmp.eq.s32.totalorder %s23, 0
    %p216 = por %p214, %p215
    %p217 = scmp.ne.s32.totalorder %s203, %s204
    %p218 = scmp.eq.s32.totalorder %s24, 1
    %p219 = por %p217, %p218
    %p221 = scmp.ne.s32.totalorder %s204, %s220
    %p222 = scmp.eq.s32.totalorder %s24, 0
    %p223 = por %p221, %p222
    %s224 = ssub.s32 %s18, %s25
    %p225 = scmp.eq.s32.totalorder %s224, 0
    %s227 = sadd.s32 %s226, 1
    %s228 = scalar_select %p225, %s226, %s227
    %p231 = pneg %p225
    %p232 = scmp.eq.s32.totalorder %s18, 1
    %p233 = por %p231, %p232
    %p234 = scmp.ne.s32.totalorder %s226, %s229
    %p235 = scmp.eq.s32.totalorder %s18, 0
    %p236 = por %p234, %p235
    %p237 = scmp.ne.s32.totalorder %s226, %s229
    %p238 = scmp.eq.s32.totalorder %s23, 1
    %p239 = por %p237, %p238
    %p240 = scmp.ne.s32.totalorder %s229, %s230
    %p241 = scmp.eq.s32.totalorder %s23, 0
    %p242 = por %p240, %p241
    %p243 = scmp.ne.s32.totalorder %s229, %s230
    %p244 = scmp.eq.s32.totalorder %s24, 1
    %p245 = por %p243, %p244
    %p247 = scmp.ne.s32.totalorder %s230, %s246
    %p248 = scmp.eq.s32.totalorder %s24, 0
    %p249 = por %p247, %p248
    %s250 = ssub.s32 %s18, %s25
    %p251 = scmp.eq.s32.totalorder %s250, 0
    %s253 = sadd.s32 %s252, 1
    %s254 = scalar_select %p251, %s252, %s253
    %p257 = pneg %p251
    %p258 = scmp.eq.s32.totalorder %s18, 1
    %p259 = por %p257, %p258
    %p260 = scmp.ne.s32.totalorder %s252, %s255
    %p261 = scmp.eq.s32.totalorder %s18, 0
    %p262 = por %p260, %p261
    %p263 = scmp.ne.s32.totalorder %s252, %s255
    %p264 = scmp.eq.s32.totalorder %s23, 1
    %p265 = por %p263, %p264
    %p266 = scmp.ne.s32.totalorder %s255, %s256
    %p267 = scmp.eq.s32.totalorder %s23, 0
    %p268 = por %p266, %p267
    %p269 = scmp.ne.s32.totalorder %s255, %s256
    %p270 = scmp.eq.s32.totalorder %s24, 1
    %p271 = por %p269, %p270
    %p273 = scmp.ne.s32.totalorder %s256, %s272
    %p274 = scmp.eq.s32.totalorder %s24, 0
    %p275 = por %p273, %p274
    %s276 = ssub.s32 %s18, %s25
    %p277 = scmp.eq.s32.totalorder %s276, 0
    %s279 = sadd.s32 %s278, 1
    %s280 = scalar_select %p277, %s278, %s279
    %p283 = pneg %p277
    %p284 = scmp.eq.s32.totalorder %s18, 1
    %p285 = por %p283, %p284
    %p286 = scmp.ne.s32.totalorder %s278, %s281
    %p287 = scmp.eq.s32.totalorder %s18, 0
    %p288 = por %p286, %p287
    %p289 = scmp.ne.s32.totalorder %s278, %s281
    %p290 = scmp.eq.s32.totalorder %s23, 1
    %p291 = por %p289, %p290
    %p292 = scmp.ne.s32.totalorder %s281, %s282
    %p293 = scmp.eq.s32.totalorder %s23, 0
    %p294 = por %p292, %p293
    %p295 = scmp.ne.s32.totalorder %s281, %s282
    %p296 = scmp.eq.s32.totalorder %s24, 1
    %p297 = por %p295, %p296
    %p299 = scmp.ne.s32.totalorder %s282, %s298
    %p300 = scmp.eq.s32.totalorder %s24, 0
    %p301 = por %p299, %p300
    %s302 = ssub.s32 %s18, %s25
    %p303 = scmp.eq.s32.totalorder %s302, 0
    %s305 = sadd.s32 %s304, 1
    %s306 = scalar_select %p303, %s304, %s305
    %p309 = pneg %p303
    %p310 = scmp.eq.s32.totalorder %s18, 1
    %p311 = por %p309, %p310
    %p312 = scmp.ne.s32.totalorder %s304, %s307
    %p313 = scmp.eq.s32.totalorder %s18, 0
    %p314 = por %p312, %p313
    %p315 = scmp.ne.s32.totalorder %s304, %s307
    %p316 = scmp.eq.s32.totalorder %s23, 1
    %p317 = por %p315, %p316
    %p318 = scmp.ne.s32.totalorder %s307, %s308
    %p319 = scmp.eq.s32.totalorder %s23, 0
    %p320 = por %p318, %p319
    %p321 = scmp.ne.s32.totalorder %s307, %s308
    %p322 = scmp.eq.s32.totalorder %s24, 1
    %p323 = por %p321, %p322
    %p325 = scmp.ne.s32.totalorder %s308, %s324
    %p326 = scmp.eq.s32.totalorder %s24, 0
    %p327 = por %p325, %p326
    %p328 = scmp.le.s32.totalorder 1, %s18
    %p329 = scmp.lt.s32.totalorder %s18, 3
    %p330 = pnand %p328, %p329
    %p331 = pneg %p330
    // Predicated region
    $region9: #{contexture_forward.1} parent=5 // pred_check
      _
    $region10: #{contexture_forward.1} parent=5 // pred_check_branch
      %333 = sbr.rel (%p330) target = $region12
    $region11: #{contexture_forward.1} parent=5 // pred_region
      %s334 = ssub.s32 %s18, 1
      // Predicated region
      $region13: #{contexture_forward.1} parent=11 // pred_check
        %p335 = pneg %p65
      $region14: #{contexture_forward.1} parent=11 // pred_check_branch
        %337 = sbr.rel (%p335) target = $region16
      $region15: #{contexture_forward.1} parent=11 // pred_region
        _
      $region16: #{contexture_forward.1} parent=11 // pred_fallthru
        _
      // Predicated region
      $region17: #{contexture_forward.1} parent=11 // pred_check
        %p338 = pneg %p86
      $region18: #{contexture_forward.1} parent=11 // pred_check_branch
        %340 = sbr.rel (%p338) target = $region20
      $region19: #{contexture_forward.1} parent=11 // pred_region
        _
      $region20: #{contexture_forward.1} parent=11 // pred_fallthru
        _
    $region12: #{contexture_forward.1} parent=5 // pred_fallthru
      _
    %p341 = scmp.lt.s32.totalorder %s18, 2
    // Predicated region
    $region21: #{contexture_forward.1} parent=5 // pred_check
      %p342 = pneg %p341
    $region22: #{contexture_forward.1} parent=5 // pred_check_branch
      %344 = sbr.rel (%p342) target = $region24
    $region23: #{contexture_forward.1} parent=5 // pred_region
      // Predicated region
      $region25: #{contexture_forward.1} parent=23 // pred_check
        %p345 = pneg %p38
      $region26: #{contexture_forward.1} parent=23 // pred_check_branch
        %347 = sbr.rel (%p345) target = $region28
      $region27: #{contexture_forward.1} parent=23 // pred_region
        %p348 = scmp.lt.s32.totalorder %s18, 1
        %s349 = scalar_select %p348, %s18, 1
        %s350 = smul.addr %s349, 24
        %s351 = smul.addr %s350, 8
        %s352 = scalar_lea.vmem %s0, %s351
      $region28: #{contexture_forward.1} parent=23 // pred_fallthru
        _
      // Predicated region
      $region29: #{contexture_forward.1} parent=23 // pred_check
        %p353 = pneg %p106
      $region30: #{contexture_forward.1} parent=23 // pred_check_branch
        %355 = sbr.rel (%p353) target = $region32
      $region31: #{contexture_forward.1} parent=23 // pred_region
        %p356 = scmp.lt.s32.totalorder %s18, 1
        %s357 = scalar_select %p356, %s18, 1
        %s358 = smul.addr %s357, 22
        %s359 = smul.addr %s358, 8
        %s360 = scalar_lea.vmem %s3, %s359
      $region32: #{contexture_forward.1} parent=23 // pred_fallthru
        _
      // Predicated region
      $region33: #{contexture_forward.1} parent=23 // pred_check
        %p361 = pneg %p132
      $region34: #{contexture_forward.1} parent=23 // pred_check_branch
        %363 = sbr.rel (%p361) target = $region36
      $region35: #{contexture_forward.1} parent=23 // pred_region
        %p364 = scmp.lt.s32.totalorder %s18, 1
        %s365 = scalar_select %p364, %s18, 1
        %s366 = smul.addr %s365, 22
        %s367 = smul.addr %s366, 8
        %s368 = scalar_lea.vmem %s4, %s367
      $region36: #{contexture_forward.1} parent=23 // pred_fallthru
        _
      // Predicated region
      $region37: #{contexture_forward.1} parent=23 // pred_check
        %p369 = pneg %p158
      $region38: #{contexture_forward.1} parent=23 // pred_check_branch
        %371 = sbr.rel (%p369) target = $region40
      $region39: #{contexture_forward.1} parent=23 // pred_region
        %p372 = scmp.lt.s32.totalorder %s18, 1
        %s373 = scalar_select %p372, %s18, 1
        %s374 = smul.addr %s373, 2
        %s375 = smul.addr %s374, 8
        %s376 = scalar_lea.vmem %s5, %s375
      $region40: #{contexture_forward.1} parent=23 // pred_fallthru
        _
      // Predicated region
      $region41: #{contexture_forward.1} parent=23 // pred_check
        %p377 = pneg %p184
      $region42: #{contexture_forward.1} parent=23 // pred_check_branch
        %379 = sbr.rel (%p377) target = $region44
      $region43: #{contexture_forward.1} parent=23 // pred_region
        %p380 = scmp.lt.s32.totalorder %s18, 1
        %s381 = scalar_select %p380, %s18, 1
        %s382 = smul.addr %s381, 8
        %s383 = scalar_lea.vmem %s6, %s382
      $region44: #{contexture_forward.1} parent=23 // pred_fallthru
        _
      // Predicated region
      $region45: #{contexture_forward.1} parent=23 // pred_check
        %p384 = pneg %p210
      $region46: #{contexture_forward.1} parent=23 // pred_check_branch
        %386 = sbr.rel (%p384) target = $region48
      $region47: #{contexture_forward.1} parent=23 // pred_region
        %p387 = scmp.lt.s32.totalorder %s18, 1
        %s388 = scalar_select %p387, %s18, 1
        %s389 = smul.addr %s388, 8
        %s390 = scalar_lea.vmem %s7, %s389
      $region48: #{contexture_forward.1} parent=23 // pred_fallthru
        _
      // Predicated region
      $region49: #{contexture_forward.1} parent=23 // pred_check
        %p391 = pneg %p236
      $region50: #{contexture_forward.1} parent=23 // pred_check_branch
        %393 = sbr.rel (%p391) target = $region52
      $region51: #{contexture_forward.1} parent=23 // pred_region
        %p394 = scmp.lt.s32.totalorder %s18, 1
        %s395 = scalar_select %p394, %s18, 1
        %s396 = smul.addr %s395, 8
        %s397 = scalar_lea.vmem %s8, %s396
      $region52: #{contexture_forward.1} parent=23 // pred_fallthru
        _
    $region24: #{contexture_forward.1} parent=5 // pred_fallthru
      _
    %p398 = scmp.le.s32.totalorder 1, %s18
    %p399 = scmp.lt.s32.totalorder %s18, 3
    %p400 = pnand %p398, %p399
    %p401 = pneg %p400
    // Predicated region
    $region53: #{contexture_forward.1} parent=5 // pred_check
      _
    $region54: #{contexture_forward.1} parent=5 // pred_check_branch
      %403 = sbr.rel (%p400) target = $region56
    $region55: #{contexture_forward.1} parent=5 // pred_region
      %s404 = ssub.s32 %s18, 1
      %p405 = scmp.lt.s32.totalorder %s23, 1
      %s406 = scalar_select %p405, %s23, 1
      %s407 = smul.addr %s406, 24
      %s408 = smul.addr %s407, 8
      %s409 = scalar_lea.vmem %s0, %s408
      %p410 = pneg %p44
      %p411 = pneg %p41
      %p412 = pneg %p65
      %p413 = pneg %p62
      %p414 = pneg %p86
      %p415 = pneg %p83
      %p416 = scmp.lt.s32.totalorder %s23, 1
      %s417 = scalar_select %p416, %s23, 1
      %s418 = smul.addr %s417, 22
      %s419 = smul.addr %s418, 8
      %s420 = scalar_lea.vmem %s3, %s419
      %p421 = pneg %p112
      %p422 = pneg %p109
      %p423 = scmp.lt.s32.totalorder %s23, 1
      %s424 = scalar_select %p423, %s23, 1
      %s425 = smul.addr %s424, 22
      %s426 = smul.addr %s425, 8
      %s427 = scalar_lea.vmem %s4, %s426
      %p428 = pneg %p138
      %p429 = pneg %p135
      %p430 = scmp.lt.s32.totalorder %s23, 1
      %s431 = scalar_select %p430, %s23, 1
      %s432 = smul.addr %s431, 2
      %s433 = smul.addr %s432, 8
      %s434 = scalar_lea.vmem %s5, %s433
      %p435 = pneg %p164
      %p436 = pneg %p161
      %p437 = scmp.lt.s32.totalorder %s23, 1
      %s438 = scalar_select %p437, %s23, 1
      %s439 = smul.addr %s438, 8
      %s440 = scalar_lea.vmem %s6, %s439
      %p441 = pneg %p190
      %p442 = pneg %p187
      %p443 = scmp.lt.s32.totalorder %s23, 1
      %s444 = scalar_select %p443, %s23, 1
      %s445 = smul.addr %s444, 8
      %s446 = scalar_lea.vmem %s7, %s445
      %p447 = pneg %p216
      %p448 = pneg %p213
      %p449 = scmp.lt.s32.totalorder %s23, 1
      %s450 = scalar_select %p449, %s23, 1
      %s451 = smul.addr %s450, 8
      %s452 = scalar_lea.vmem %s8, %s451
      %p453 = pneg %p242
      %p454 = pneg %p239
      %p455 = pneg %p268
      %p456 = pneg %p265
      %p457 = scmp.lt.s32.totalorder %s23, 1
      %s458 = scalar_select %p457, %s23, 1
      %s459 = smul.addr %s458, 8
      %s460 = smul.addr %s459, 8
      %s461 = scalar_lea.vmem %s9, %s460
      %p462 = pneg %p294
      %p463 = pneg %p291
      %p464 = scmp.lt.s32.totalorder %s23, 1
      %s465 = scalar_select %p464, %s23, 1
      %s466 = smul.addr %s465, 4
      %s467 = smul.addr %s466, 8
      %s468 = scalar_lea.vmem %s10, %s467
      %p469 = pneg %p320
      %p470 = pneg %p317
      %p471 = scmp.lt.s32.totalorder %s23, 1
      %s472 = scalar_select %p471, %s23, 1
      %s473 = smul.addr %s472, 4
      %s474 = smul.addr %s473, 8
      %s475 = scalar_lea.vmem %s11, %s474
      %p476 = scmp.lt.s32.totalorder %s23, 1
      %s477 = scalar_select %p476, %s23, 1
      %s478 = smul.addr %s477, 24
      %s479 = smul.addr %s478, 8
      %s480 = scalar_lea.vmem %s0, %s479
      %p481 = scmp.lt.s32.totalorder %s23, 1
      %s482 = scalar_select %p481, %s23, 1
      %s483 = smul.addr %s482, 22
      %s484 = smul.addr %s483, 8
      %s485 = scalar_lea.vmem %s3, %s484
      %p486 = scmp.lt.s32.totalorder %s23, 1
      %s487 = scalar_select %p486, %s23, 1
      %s488 = smul.addr %s487, 22
      %s489 = smul.addr %s488, 8
      %s490 = scalar_lea.vmem %s4, %s489
      %p491 = scmp.lt.s32.totalorder %s23, 1
      %s492 = scalar_select %p491, %s23, 1
      %s493 = smul.addr %s492, 2
      %s494 = smul.addr %s493, 8
      %s495 = scalar_lea.vmem %s5, %s494
      %p496 = scmp.lt.s32.totalorder %s23, 1
      %s497 = scalar_select %p496, %s23, 1
      %s498 = smul.addr %s497, 8
      %s499 = scalar_lea.vmem %s6, %s498
      %p500 = scmp.lt.s32.totalorder %s23, 1
      %s501 = scalar_select %p500, %s23, 1
      %s502 = smul.addr %s501, 8
      %s503 = scalar_lea.vmem %s7, %s502
      %p504 = scmp.lt.s32.totalorder %s23, 1
      %s505 = scalar_select %p504, %s23, 1
      %s506 = smul.addr %s505, 8
      %s507 = scalar_lea.vmem %s8, %s506
      %p508 = scmp.lt.s32.totalorder %s23, 1
      %s509 = scalar_select %p508, %s23, 1
      %s510 = smul.addr %s509, 8
      %s511 = smul.addr %s510, 8
      %s512 = scalar_lea.vmem %s9, %s511
      %p513 = scmp.lt.s32.totalorder %s23, 1
      %s514 = scalar_select %p513, %s23, 1
      %s515 = smul.addr %s514, 4
      %s516 = smul.addr %s515, 8
      %s517 = scalar_lea.vmem %s10, %s516
      %p518 = scmp.lt.s32.totalorder %s23, 1
      %s519 = scalar_select %p518, %s23, 1
      %s520 = smul.addr %s519, 4
      %s521 = smul.addr %s520, 8
      %s522 = scalar_lea.vmem %s11, %s521
      %v523 = vld [vmem:[%s1] sm:$0xff]
      %v524 = vld [vmem:[%s1 + $0x8] sm:$0xff]
      %v525 = vld [vmem:[%s1 + $0x10] sm:$0xff]
      %v526 = vld [vmem:[%s1 + $0x18] sm:$0xff]
      %v527 = vld [vmem:[%s1 + $0x20] sm:$0xff]
      %v528 = vld [vmem:[%s1 + $0x28] sm:$0xff]
      %v529 = vld [vmem:[%s1 + $0x30] sm:$0xff]
      %v530 = vld [vmem:[%s1 + $0x38] sm:$0xff]
      %v531 = vld [vmem:[%s1 + $0x40] sm:$0xff]
      %v532 = vld [vmem:[%s1 + $0x48] sm:$0xff]
      %v533 = vld [vmem:[%s1 + $0x50] sm:$0xff]
      %v534 = vld [vmem:[%s1 + $0x58] sm:$0xff]
      %v535 = vld [vmem:[%s1 + $0x60] sm:$0xff]
      %v536 = vld [vmem:[%s1 + $0x68] sm:$0xff]
      %v537 = vld [vmem:[%s1 + $0x70] sm:$0xff]
      %v538 = vld [vmem:[%s1 + $0x78] sm:$0xff]
      %v539 = vld [vmem:[%s1 + $0x80] sm:$0xff]
      %v540 = vld [vmem:[%s1 + $0x88] sm:$0xff]
      %v541 = vld [vmem:[%s1 + $0x90] sm:$0xff]
      %v542 = vld [vmem:[%s1 + $0x98] sm:$0xff]
      %v543 = vld [vmem:[%s1 + $0xa0] sm:$0xff]
      %v544 = vld [vmem:[%s1 + $0xa8] sm:$0xff]
      %v545 = vld [vmem:[%s1 + $0xb0] sm:$0xff]
      %v546 = vld [vmem:[%s1 + $0xb8] sm:$0xff]
      %v547 = vld [vmem:[%s1 + $0xc0] sm:$0xff]
      %v548 = vld [vmem:[%s1 + $0xc8] sm:$0xff]
      %v549 = vld [vmem:[%s1 + $0xd0] sm:$0xff]
      %v550 = vld [vmem:[%s1 + $0xd8] sm:$0xff]
      %v551 = vld [vmem:[%s1 + $0xe0] sm:$0xff]
      %v552 = vld [vmem:[%s1 + $0xe8] sm:$0xff]
      %v553 = vld [vmem:[%s1 + $0xf0] sm:$0xff]
      %v554 = vld [vmem:[%s1 + $0xf8] sm:$0xff]
      %v555 = vld [vmem:[%s2] sm:$0xff]
      %v556 = vld [vmem:[%s2 + $0x8] sm:$0xff]
      %v557 = vld [vmem:[%s2 + $0x10] sm:$0xff]
      %v558 = vld [vmem:[%s2 + $0x18] sm:$0xff]
      %v559 = vld [vmem:[%s2 + $0x20] sm:$0xff]
      %v560 = vld [vmem:[%s2 + $0x28] sm:$0xff]
      %v561 = vld [vmem:[%s2 + $0x30] sm:$0xff]
      %v562 = vld [vmem:[%s2 + $0x38] sm:$0xff]
      %v563 = vld [vmem:[%s2 + $0x40] sm:$0xff]
      %v564 = vld [vmem:[%s2 + $0x48] sm:$0xff]
      %v565 = vld [vmem:[%s2 + $0x50] sm:$0xff]
      %v566 = vld [vmem:[%s2 + $0x58] sm:$0xff]
      %v567 = vld [vmem:[%s2 + $0x60] sm:$0x1]
      %v568 = vld [vmem:[%s2 + $0x68] sm:$0x1]
      %v569 = vld [vmem:[%s485] sm:$0xff]
      %v570 = vld [vmem:[%s485 + $0x8] sm:$0xff]
      %v571 = vld [vmem:[%s485 + $0x10] sm:$0xff]
      %v572 = vld [vmem:[%s485 + $0x18] sm:$0xff]
      %v573 = vld [vmem:[%s485 + $0x20] sm:$0xff]
      %v574 = vld [vmem:[%s485 + $0x28] sm:$0xff]
      %v575 = vld [vmem:[%s485 + $0x30] sm:$0xff]
      %v576 = vld [vmem:[%s485 + $0x38] sm:$0xff]
      %v577 = vld [vmem:[%s485 + $0x40] sm:$0xff]
      %v578 = vld [vmem:[%s485 + $0x48] sm:$0xff]
      %v579 = vld [vmem:[%s485 + $0x50] sm:$0xff]
      %v580 = vld [vmem:[%s485 + $0x58] sm:$0xff]
      %v581 = vld [vmem:[%s485 + $0x60] sm:$0xff]
      %v582 = vld [vmem:[%s485 + $0x68] sm:$0xff]
      %v583 = vld [vmem:[%s485 + $0x70] sm:$0xff]
      %v584 = vld [vmem:[%s485 + $0x78] sm:$0xff]
      %v585 = vld [vmem:[%s485 + $0x80] sm:$0xff]
      %v586 = vld [vmem:[%s485 + $0x88] sm:$0xff]
      %v587 = vld [vmem:[%s485 + $0x90] sm:$0xff]
      %v588 = vld [vmem:[%s485 + $0x98] sm:$0xff]
      %v589 = vld [vmem:[%s485 + $0xa0] sm:$0xff]
      %v590 = vld [vmem:[%s485 + $0xa8] sm:$0xff]
      %v591 = vld [vmem:[%s490] sm:$0xff]
      %v592 = vld [vmem:[%s490 + $0x8] sm:$0xff]
      %v593 = vld [vmem:[%s490 + $0x10] sm:$0xff]
      %v594 = vld [vmem:[%s490 + $0x18] sm:$0xff]
      %v595 = vld [vmem:[%s490 + $0x20] sm:$0xff]
      %v596 = vld [vmem:[%s490 + $0x28] sm:$0xff]
      %v597 = vld [vmem:[%s490 + $0x30] sm:$0xff]
      %v598 = vld [vmem:[%s490 + $0x38] sm:$0xff]
      %v599 = vld [vmem:[%s490 + $0x40] sm:$0xff]
      %v600 = vld [vmem:[%s490 + $0x48] sm:$0xff]
      %v601 = vld [vmem:[%s490 + $0x50] sm:$0xff]
      %v602 = vld [vmem:[%s490 + $0x58] sm:$0xff]
      %v603 = vld [vmem:[%s490 + $0x60] sm:$0xff]
      %v604 = vld [vmem:[%s490 + $0x68] sm:$0xff]
      %v605 = vld [vmem:[%s490 + $0x70] sm:$0xff]
      %v606 = vld [vmem:[%s490 + $0x78] sm:$0xff]
      %v607 = vld [vmem:[%s490 + $0x80] sm:$0xff]
      %v608 = vld [vmem:[%s490 + $0x88] sm:$0xff]
      %v609 = vld [vmem:[%s490 + $0x90] sm:$0xff]
      %v610 = vld [vmem:[%s490 + $0x98] sm:$0xff]
      %v611 = vld [vmem:[%s490 + $0xa0] sm:$0xff]
      %v612 = vld [vmem:[%s490 + $0xa8] sm:$0xff]
      %v613 = vld [vmem:[%s495] sm:$0xff]
      %v614 = vld [vmem:[%s495 + $0x8] sm:$0x3]
      %v615 = vld [vmem:[%s499] sm:$0x1f]
      %v616 = vld [vmem:[%s503] sm:$0x1f]
      %v617 = vld [vmem:[%s507] sm:$0x1f]
      %v618 = vld [vmem:[%s480] sm:$0xff]
      %v619 = vld [vmem:[%s480 + $0x8] sm:$0xff]
      %v620 = vld [vmem:[%s480 + $0x10] sm:$0xff]
      %v621 = vld [vmem:[%s480 + $0x18] sm:$0xff]
      %v622 = vld [vmem:[%s480 + $0x20] sm:$0xff]
      %v623 = vld [vmem:[%s480 + $0x28] sm:$0xff]
      %v624 = vld [vmem:[%s480 + $0x30] sm:$0xff]
      %v625 = vld [vmem:[%s480 + $0x38] sm:$0xff]
      %v626 = vld [vmem:[%s480 + $0x40] sm:$0xff]
      %v627 = vld [vmem:[%s480 + $0x48] sm:$0xff]
      %v628 = vld [vmem:[%s480 + $0x50] sm:$0x3]
      %v629 = vld [vmem:[%s480 + $0x58] sm:$0x3]
      %630 = vmatprep.subr.mxu0 0.0
      %631 = vmatpush1.msra.mxu0 %v523
      %632 = vmatprep.subr.mxu0 0.0
      %633 = vmatpush1.msra.mxu0 %v524
      %634 = vmatprep.subr.mxu0 0.0
      %635 = vmatpush1.msra.mxu0 %v525
      %636 = vmatprep.subr.mxu0 0.0
      %637 = vmatpush1.msra.mxu0 %v526
      %638 = vmatprep.subr.mxu0 0.0
      %639 = vmatpush1.msra.mxu0 %v527
      %640 = vmatprep.subr.mxu0 0.0
      %641 = vmatpush1.msra.mxu0 %v528
      %642 = vmatprep.subr.mxu0 0.0
      %643 = vmatpush1.msra.mxu0 %v529
      %644 = vmatprep.subr.mxu0 0.0
      %645 = vmatpush1.msra.mxu0 %v530
      %646 = vmatprep.subr.mxu0 0.0
      %647 = vmatpush1.msra.mxu0 %v531
      %648 = vmatprep.subr.mxu0 0.0
      %649 = vmatpush1.msra.mxu0 %v532
      %650 = vmatprep.subr.mxu0 0.0
      %651 = vmatpush1.msra.mxu0 %v533
      %652 = vmatprep.subr.mxu0 0.0
      %653 = vmatpush1.msra.mxu0 %v534
      %654 = vmatprep.subr.mxu0 0.0
      %655 = vmatpush1.msra.mxu0 %v535
      %656 = vmatprep.subr.mxu0 0.0
      %657 = vmatpush1.msra.mxu0 %v536
      %658 = vmatprep.subr.mxu0 0.0
      %659 = vmatpush1.msra.mxu0 %v537
      %660 = vmatprep.subr.mxu0 0.0
      %661 = vmatpush1.msra.mxu0 %v538
      %662 = vmatprep.subr.mxu0 0.0
      %663 = vmatpush1.msra.mxu0 %v539
      %664 = vmatprep.subr.mxu0 0.0
      %665 = vmatpush1.msra.mxu0 %v540
      %666 = vmatprep.subr.mxu0 0.0
      %667 = vmatpush1.msra.mxu0 %v541
      %668 = vmatprep.subr.mxu0 0.0
      %669 = vmatpush1.msra.mxu0 %v542
      %670 = vmatprep.subr.mxu0 0.0
      %671 = vmatpush1.msra.mxu0 %v543
      %672 = vmatprep.subr.mxu0 0.0
      %673 = vmatpush1.msra.mxu0 %v544
      %674 = vmatprep.subr.mxu0 0.0
      %675 = vmatpush1.msra.mxu0 %v545
      %676 = vmatprep.subr.mxu0 0.0
      %677 = vmatpush1.msra.mxu0 %v546
      %678 = vmatprep.subr.mxu0 0.0
      %679 = vmatpush1.msra.mxu0 %v547
      %680 = vmatprep.subr.mxu0 0.0
      %681 = vmatpush1.msra.mxu0 %v548
      %682 = vmatprep.subr.mxu0 0.0
      %683 = vmatpush1.msra.mxu0 %v549
      %684 = vmatprep.subr.mxu0 0.0
      %685 = vmatpush1.msra.mxu0 %v550
      %686 = vmatprep.subr.mxu0 0.0
      %687 = vmatpush1.msra.mxu0 %v551
      %688 = vmatprep.subr.mxu0 0.0
      %689 = vmatpush1.msra.mxu0 %v552
      %690 = vmatprep.subr.mxu0 0.0
      %691 = vmatpush1.msra.mxu0 %v553
      %692 = vmatprep.subr.mxu0 0.0
      %693 = vmatpush1.msra.mxu0 %v554
      %694 = vmatprep.mubr.f32.mxu0 %v619
      %695 = vmatmul.mubr.f32.gmra.mrb[0].mxu0 %v618
      %v696 = vpop.f32.mrb[0].mxu0
      %v697 = vadd.f32 0.0, %v696
      %v698 = vpop.f32.mrb[0].mxu0
      %699 = vmatprep.mubr.f32.mxu0 %v621
      %700 = vmatmul.mubr.f32.gmra.mrb[0].mxu0 %v620
      %v701 = vpop.f32.mrb[0].mxu0
      %v702 = vadd.f32 0.0, %v701
      %v703 = vpop.f32.mrb[0].mxu0
      %704 = vmatprep.mubr.f32.mxu0 %v623
      %705 = vmatmul.mubr.f32.gmra.mrb[0].mxu0 %v622
      %v706 = vpop.f32.mrb[0].mxu0
      %v707 = vadd.f32 0.0, %v706
      %v708 = vpop.f32.mrb[0].mxu0
      %709 = vmatprep.mubr.f32.mxu0 %v625
      %710 = vmatmul.mubr.f32.gmra.mrb[0].mxu0 %v624
      %v711 = vpop.f32.mrb[0].mxu0
      %v712 = vadd.f32 0.0, %v711
      %v713 = vpop.f32.mrb[0].mxu0
      %714 = vmatprep.mubr.f32.mxu0 %v627
      %715 = vmatmul.mubr.f32.gmra.mrb[0].mxu0 %v626
      %v716 = vpop.f32.mrb[0].mxu0
      %v717 = vadd.f32 0.0, %v716
      %v718 = vpop.f32.mrb[0].mxu0
      %719 = vmatprep.mubr.f32.mxu0 %v629
      %720 = vmatmul.mubr.f32.gmra.mrb[0].mxu0 %v628
      %v721 = vpop.f32.mrb[0].mxu0
      %v722 = vadd.f32 0.0, %v721
      %v723 = vpop.f32.mrb[0].mxu0
      %724 = vdwg.mxu0
      %vm725 = vcmask 343040
      %v727 = vsel %vm725, %v569, 0
      %v730 = vsel %vm725, %v570, 0
      %v733 = vsel %vm725, %v571, 0
      %v736 = vsel %vm725, %v572, 0
      %v739 = vsel %vm725, %v573, 0
      %v742 = vsel %vm725, %v574, 0
      %v745 = vsel %vm725, %v575, 0
      %v748 = vsel %vm725, %v576, 0
      %v751 = vsel %vm725, %v577, 0
      %v754 = vsel %vm725, %v578, 0
      %v757 = vsel %vm725, %v579, 0
      %v760 = vsel %vm725, %v580, 0
      %v763 = vsel %vm725, %v581, 0
      %v766 = vsel %vm725, %v582, 0
      %v769 = vsel %vm725, %v583, 0
      %v772 = vsel %vm725, %v584, 0
      %v775 = vsel %vm725, %v585, 0
      %v778 = vsel %vm725, %v586, 0
      %v781 = vsel %vm725, %v587, 0
      %v784 = vsel %vm725, %v588, 0
      %v787 = vsel %vm725, %v589, 0
      %v790 = vsel %vm725, %v590, 0
      %vm792 = vcmask 1041408
      %v794 = vsel %vm792, %v722, 0
      %796 = vmatprep.subr.mxu0 0.0
      %797 = vmatpush1.msra.mxu0 %v697
      %798 = vmatprep.subr.mxu0 0.0
      %799 = vmatpush1.msra.mxu0 %v702
      %800 = vmatprep.subr.mxu0 0.0
      %801 = vmatpush1.msra.mxu0 %v707
      %802 = vmatprep.subr.mxu0 0.0
      %803 = vmatpush1.msra.mxu0 %v712
      %804 = vmatprep.subr.mxu0 0.0
      %805 = vmatpush1.msra.mxu0 %v717
      %806 = vmatprep.subr.mxu0 0.0
      %807 = vmatpush1.msra.mxu0 %v794
      %808 = vmatprep.subr.mxu0 0.0
      %809 = vmatpush1.msra.mxu0 0.0
      %810 = vmatprep.subr.mxu0 0.0
      %811 = vmatpush1.msra.mxu0 0.0
      %812 = vmatprep.subr.mxu0 0.0
      %813 = vmatpush1.msra.mxu0 0.0
      %814 = vmatprep.subr.mxu0 0.0
      %815 = vmatpush1.msra.mxu0 0.0
      %816 = vmatprep.subr.mxu0 0.0
      %817 = vmatpush1.msra.mxu0 0.0
      %818 = vmatprep.subr.mxu0 0.0
      %819 = vmatpush1.msra.mxu0 0.0
      %820 = vmatprep.subr.mxu0 0.0
      %821 = vmatpush1.msra.mxu0 0.0
      %822 = vmatprep.subr.mxu0 0.0
      %823 = vmatpush1.msra.mxu0 0.0
      %824 = vmatprep.subr.mxu0 0.0
      %825 = vmatpush1.msra.mxu0 0.0
      %826 = vmatprep.subr.mxu0 0.0
      %827 = vmatpush1.msra.mxu0 0.0
      %828 = vmatprep.subr.mxu0 0.0
      %829 = vmatpush1.msra.mxu0 0.0
      %830 = vmatprep.subr.mxu0 0.0
      %831 = vmatpush1.msra.mxu0 0.0
      %832 = vmatprep.subr.mxu0 0.0
      %833 = vmatpush1.msra.mxu0 0.0
      %834 = vmatprep.subr.mxu0 0.0
      %835 = vmatpush1.msra.mxu0 0.0
      %836 = vmatprep.subr.mxu0 0.0
      %837 = vmatpush1.msra.mxu0 0.0
      %838 = vmatprep.subr.mxu0 0.0
      %839 = vmatpush1.msra.mxu0 0.0
      %840 = vmatprep.subr.mxu0 0.0
      %841 = vmatpush1.msra.mxu0 0.0
      %842 = vmatprep.subr.mxu0 0.0
      %843 = vmatpush1.msra.mxu0 0.0
      %844 = vmatprep.subr.mxu0 0.0
      %845 = vmatpush1.msra.mxu0 0.0
      %846 = vmatprep.subr.mxu0 0.0
      %847 = vmatpush1.msra.mxu0 0.0
      %848 = vmatprep.subr.mxu0 0.0
      %849 = vmatpush1.msra.mxu0 0.0
      %850 = vmatprep.subr.mxu0 0.0
      %851 = vmatpush1.msra.mxu0 0.0
      %852 = vmatprep.subr.mxu0 0.0
      %853 = vmatpush1.msra.mxu0 0.0
      %854 = vmatprep.subr.mxu0 0.0
      %855 = vmatpush1.msra.mxu0 0.0
      %856 = vmatprep.subr.mxu0 0.0
      %857 = vmatpush1.msra.mxu0 0.0
      %858 = vmatprep.subr.mxu0 0.0
      %859 = vmatpush1.msra.mxu0 0.0
      %860 = vmatprep.mubr.f32.mxu0 0.0
      %861 = vmatmul.mubr.f32.gmra.mrb[0].mxu0 %v727
      %v862 = vpop.f32.mrb[0].mxu0
      %v863 = vadd.f32 %v591, %v862
      %v864 = vpop.f32.mrb[0].mxu0
      %865 = vmatprep.mubr.f32.mxu0 0.0
      %866 = vmatmul.mubr.f32.gmra.mrb[0].mxu0 %v730
      %v867 = vpop.f32.mrb[0].mxu0
      %v868 = vadd.f32 %v592, %v867
      %v869 = vpop.f32.mrb[0].mxu0
      %870 = vmatprep.mubr.f32.mxu0 0.0
      %871 = vmatmul.mubr.f32.gmra.mrb[0].mxu0 %v733
      %v872 = vpop.f32.mrb[0].mxu0
      %v873 = vadd.f32 %v593, %v872
      %v874 = vpop.f32.mrb[0].mxu0
      %875 = vmatprep.mubr.f32.mxu0 0.0
      %876 = vmatmul.mubr.f32.gmra.mrb[0].mxu0 %v736
      %v877 = vpop.f32.mrb[0].mxu0
      %v878 = vadd.f32 %v594, %v877
      %v879 = vpop.f32.mrb[0].mxu0
      %880 = vmatprep.mubr.f32.mxu0 0.0
      %881 = vmatmul.mubr.f32.gmra.mrb[0].mxu0 %v739
      %v882 = vpop.f32.mrb[0].mxu0
      %v883 = vadd.f32 %v595, %v882
      %v884 = vpop.f32.mrb[0].mxu0
      %885 = vmatprep.mubr.f32.mxu0 0.0
      %886 = vmatmul.mubr.f32.gmra.mrb[0].mxu0 %v742
      %v887 = vpop.f32.mrb[0].mxu0
      %v888 = vadd.f32 %v596, %v887
      %v889 = vpop.f32.mrb[0].mxu0
      %890 = vmatprep.mubr.f32.mxu0 0.0
      %891 = vmatmul.mubr.f32.gmra.mrb[0].mxu0 %v745
      %v892 = vpop.f32.mrb[0].mxu0
      %v893 = vadd.f32 %v597, %v892
      %v894 = vpop.f32.mrb[0].mxu0
      %895 = vmatprep.mubr.f32.mxu0 0.0
      %896 = vmatmul.mubr.f32.gmra.mrb[0].mxu0 %v748
      %v897 = vpop.f32.mrb[0].mxu0
      %v898 = vadd.f32 %v598, %v897
      %v899 = vpop.f32.mrb[0].mxu0
      %900 = vmatprep.mubr.f32.mxu0 0.0
      %901 = vmatmul.mubr.f32.gmra.mrb[0].mxu0 %v751
      %v902 = vpop.f32.mrb[0].mxu0
      %v903 = vadd.f32 %v599, %v902
      %v904 = vpop.f32.mrb[0].mxu0
      %905 = vmatprep.mubr.f32.mxu0 0.0
      %906 = vmatmul.mubr.f32.gmra.mrb[0].mxu0 %v754
      %v907 = vpop.f32.mrb[0].mxu0
      %v908 = vadd.f32 %v600, %v907
      %v909 = vpop.f32.mrb[0].mxu0
      %910 = vmatprep.mubr.f32.mxu0 0.0
      %911 = vmatmul.mubr.f32.gmra.mrb[0].mxu0 %v757
      %v912 = vpop.f32.mrb[0].mxu0
      %v913 = vadd.f32 %v601, %v912
      %v914 = vpop.f32.mrb[0].mxu0
      %915 = vmatprep.mubr.f32.mxu0 0.0
      %916 = vmatmul.mubr.f32.gmra.mrb[0].mxu0 %v760
      %v917 = vpop.f32.mrb[0].mxu0
      %v918 = vadd.f32 %v602, %v917
      %v919 = vpop.f32.mrb[0].mxu0
      %920 = vmatprep.mubr.f32.mxu0 0.0
      %921 = vmatmul.mubr.f32.gmra.mrb[0].mxu0 %v763
      %v922 = vpop.f32.mrb[0].mxu0
      %v923 = vadd.f32 %v603, %v922
      %v924 = vpop.f32.mrb[0].mxu0
      %925 = vmatprep.mubr.f32.mxu0 0.0
      %926 = vmatmul.mubr.f32.gmra.mrb[0].mxu0 %v766
      %v927 = vpop.f32.mrb[0].mxu0
      %v928 = vadd.f32 %v604, %v927
      %v929 = vpop.f32.mrb[0].mxu0
      %930 = vmatprep.mubr.f32.mxu0 0.0
      %931 = vmatmul.mubr.f32.gmra.mrb[0].mxu0 %v769
      %v932 = vpop.f32.mrb[0].mxu0
      %v933 = vadd.f32 %v605, %v932
      %v934 = vpop.f32.mrb[0].mxu0
      %935 = vmatprep.mubr.f32.mxu0 0.0
      %936 = vmatmul.mubr.f32.gmra.mrb[0].mxu0 %v772
      %v937 = vpop.f32.mrb[0].mxu0
      %v938 = vadd.f32 %v606, %v937
      %v939 = vpop.f32.mrb[0].mxu0
      %940 = vmatprep.mubr.f32.mxu0 0.0
      %941 = vmatmul.mubr.f32.gmra.mrb[0].mxu0 %v775
      %v942 = vpop.f32.mrb[0].mxu0
      %v943 = vadd.f32 %v607, %v942
      %v944 = vpop.f32.mrb[0].mxu0
      %945 = vmatprep.mubr.f32.mxu0 0.0
      %946 = vmatmul.mubr.f32.gmra.mrb[0].mxu0 %v778
      %v947 = vpop.f32.mrb[0].mxu0
      %v948 = vadd.f32 %v608, %v947
      %v949 = vpop.f32.mrb[0].mxu0
      %950 = vmatprep.mubr.f32.mxu0 0.0
      %951 = vmatmul.mubr.f32.gmra.mrb[0].mxu0 %v781
      %v952 = vpop.f32.mrb[0].mxu0
      %v953 = vadd.f32 %v609, %v952
      %v954 = vpop.f32.mrb[0].mxu0
      %955 = vmatprep.mubr.f32.mxu0 0.0
      %956 = vmatmul.mubr.f32.gmra.mrb[0].mxu0 %v784
      %v957 = vpop.f32.mrb[0].mxu0
      %v958 = vadd.f32 %v610, %v957
      %v959 = vpop.f32.mrb[0].mxu0
      %960 = vmatprep.mubr.f32.mxu0 0.0
      %961 = vmatmul.mubr.f32.gmra.mrb[0].mxu0 %v787
      %v962 = vpop.f32.mrb[0].mxu0
      %v963 = vadd.f32 %v611, %v962
      %v964 = vpop.f32.mrb[0].mxu0
      %965 = vmatprep.mubr.f32.mxu0 0.0
      %966 = vmatmul.mubr.f32.gmra.mrb[0].mxu0 %v790
      %v967 = vpop.f32.mrb[0].mxu0
      %v968 = vadd.f32 %v612, %v967
      %v969 = vpop.f32.mrb[0].mxu0
      %970 = vdwg.mxu0
      %v971 = vmax.f32 %v893, 0.0
      %v972 = vmax.f32 %v898, 0.0
      %v973 = vmax.f32 %v903, 0.0
      %v974 = vmax.f32 %v908, 0.0
      %v975 = vmax.f32 %v913, 0.0
      %v976 = vmax.f32 %v918, 0.0
      %v977 = vmax.f32 %v923, 0.0
      %v978 = vmax.f32 %v928, 0.0
      %v979 = vmax.f32 %v933, 0.0
      %v980 = vmax.f32 %v938, 0.0
      %v981 = vmax.f32 %v943, 0.0
      %v982 = vmax.f32 %v948, 0.0
      %v983 = vmax.f32 %v953, 0.0
      %v984 = vmax.f32 %v958, 0.0
      %v985 = vmax.f32 %v963, 0.0
      %v986 = vmax.f32 %v968, 0.0
      %987 = vxpose.xlu0.b32.start [1/16] %v863, 128
      %988 = vxpose.xlu0.b32.cont [2/16] %v868, 128
      %989 = vxpose.xlu0.b32.cont [3/16] %v873, 128
      %990 = vxpose.xlu0.b32.cont [4/16] 0.0, 128
      %991 = vxpose.xlu0.b32.cont [5/16] 0.0, 128
      %992 = vxpose.xlu0.b32.cont [6/16] 0.0, 128
      %993 = vxpose.xlu0.b32.cont [7/16] 0.0, 128
      %994 = vxpose.xlu0.b32.cont [8/16] 0.0, 128
      %995 = vxpose.xlu0.b32.cont [9/16] 0.0, 128
      %996 = vxpose.xlu0.b32.cont [10/16] 0.0, 128
      %997 = vxpose.xlu0.b32.cont [11/16] 0.0, 128
      %998 = vxpose.xlu0.b32.cont [12/16] 0.0, 128
      %999 = vxpose.xlu0.b32.cont [13/16] 0.0, 128
      %1000 = vxpose.xlu0.b32.cont [14/16] 0.0, 128
      %1001 = vxpose.xlu0.b32.cont [15/16] 0.0, 128
      %1002 = vxpose.xlu0.b32.end [16/16] 0.0, 128
      %v1003 = vpop.trf.xlu0
      %v1004 = vpop.trf.xlu0
      %v1005 = vpop.trf.xlu0
      %v1006 = vpop.trf.xlu0
      %v1007 = vpop.trf.xlu0
      %v1008 = vpop.trf.xlu0
      %v1009 = vpop.trf.xlu0
      %v1010 = vpop.trf.xlu0
      %v1011 = vpop.trf.xlu0
      %v1012 = vpop.trf.xlu0
      %v1013 = vpop.trf.xlu0
      %v1014 = vpop.trf.xlu0
      %v1015 = vpop.trf.xlu0
      %v1016 = vpop.trf.xlu0
      %v1017 = vpop.trf.xlu0
      %v1018 = vpop.trf.xlu0
      %vm1019 = vcmask 195584
      %v1021 = vsel %vm1019, %v1003, 0
      %v1024 = vsel %vm1019, %v1004, 0
      %v1027 = vsel %vm1019, %v1005, 0
      %v1030 = vsel %vm1019, %v1006, 0
      %v1033 = vsel %vm1019, %v1007, 0
      %v1036 = vsel %vm1019, %v1008, 0
      %v1039 = vsel %vm1019, %v1009, 0
      %1041 = vmatprep.subr.mxu0 0.0
      %1042 = vmatpush1.msra.mxu0 %v878
      %1043 = vmatprep.subr.mxu0 0.0
      %1044 = vmatpush1.msra.mxu0 %v883
      %1045 = vmatprep.subr.mxu0 0.0
      %1046 = vmatpush1.msra.mxu0 %v888
      %1047 = vmatprep.subr.mxu0 0.0
      %1048 = vmatpush1.msra.mxu0 0.0
      %1049 = vmatprep.subr.mxu0 0.0
      %1050 = vmatpush1.msra.mxu0 0.0
      %1051 = vmatprep.subr.mxu0 0.0
      %1052 = vmatpush1.msra.mxu0 0.0
      %1053 = vmatprep.subr.mxu0 0.0
      %1054 = vmatpush1.msra.mxu0 0.0
      %1055 = vmatprep.subr.mxu0 0.0
      %1056 = vmatpush1.msra.mxu0 0.0
      %1057 = vmatprep.subr.mxu0 0.0
      %1058 = vmatpush1.msra.mxu0 0.0
      %1059 = vmatprep.subr.mxu0 0.0
      %1060 = vmatpush1.msra.mxu0 0.0
      %1061 = vmatprep.subr.mxu0 0.0
      %1062 = vmatpush1.msra.mxu0 0.0
      %1063 = vmatprep.subr.mxu0 0.0
      %1064 = vmatpush1.msra.mxu0 0.0
      %1065 = vmatprep.subr.mxu0 0.0
      %1066 = vmatpush1.msra.mxu0 0.0
      %1067 = vmatprep.subr.mxu0 0.0
      %1068 = vmatpush1.msra.mxu0 0.0
      %1069 = vmatprep.subr.mxu0 0.0
      %1070 = vmatpush1.msra.mxu0 0.0
      %1071 = vmatprep.subr.mxu0 0.0
      %1072 = vmatpush1.msra.mxu0 0.0
      %1073 = vmatprep.subr.mxu0 0.0
      %1074 = vmatpush1.msra.mxu0 0.0
      %1075 = vmatprep.subr.mxu0 0.0
      %1076 = vmatpush1.msra.mxu0 0.0
      %1077 = vmatprep.subr.mxu0 0.0
      %1078 = vmatpush1.msra.mxu0 0.0
      %1079 = vmatprep.subr.mxu0 0.0
      %1080 = vmatpush1.msra.mxu0 0.0
      %1081 = vmatprep.subr.mxu0 0.0
      %1082 = vmatpush1.msra.mxu0 0.0
      %1083 = vmatprep.subr.mxu0 0.0
      %1084 = vmatpush1.msra.mxu0 0.0
      %1085 = vmatprep.subr.mxu0 0.0
      %1086 = vmatpush1.msra.mxu0 0.0
      %1087 = vmatprep.subr.mxu0 0.0
      %1088 = vmatpush1.msra.mxu0 0.0
      %1089 = vmatprep.subr.mxu0 0.0
      %1090 = vmatpush1.msra.mxu0 0.0
      %1091 = vmatprep.subr.mxu0 0.0
      %1092 = vmatpush1.msra.mxu0 0.0
      %1093 = vmatprep.subr.mxu0 0.0
      %1094 = vmatpush1.msra.mxu0 0.0
      %1095 = vmatprep.subr.mxu0 0.0
      %1096 = vmatpush1.msra.mxu0 0.0
      %1097 = vmatprep.subr.mxu0 0.0
      %1098 = vmatpush1.msra.mxu0 0.0
      %1099 = vmatprep.subr.mxu0 0.0
      %1100 = vmatpush1.msra.mxu0 0.0
      %1101 = vmatprep.subr.mxu0 0.0
      %1102 = vmatpush1.msra.mxu0 0.0
      %1103 = vmatprep.subr.mxu0 0.0
      %1104 = vmatpush1.msra.mxu0 0.0
      %1105 = vmatprep.mubr.f32.mxu0 0.0
      %1106 = vmatmul.mubr.f32.gmra.mrb[0].mxu0 %v1021
      %v1107 = vpop.f32.mrb[0].mxu0
      %v1108 = vadd.f32 0.0, %v1107
      %v1109 = vpop.f32.mrb[0].mxu0
      %1110 = vmatprep.mubr.f32.mxu0 0.0
      %1111 = vmatmul.mubr.f32.gmra.mrb[0].mxu0 %v1024
      %v1112 = vpop.f32.mrb[0].mxu0
      %v1113 = vadd.f32 0.0, %v1112
      %v1114 = vpop.f32.mrb[0].mxu0
      %1115 = vmatprep.mubr.f32.mxu0 0.0
      %1116 = vmatmul.mubr.f32.gmra.mrb[0].mxu0 %v1027
      %v1117 = vpop.f32.mrb[0].mxu0
      %v1118 = vadd.f32 0.0, %v1117
      %v1119 = vpop.f32.mrb[0].mxu0
      %1120 = vmatprep.mubr.f32.mxu0 0.0
      %1121 = vmatmul.mubr.f32.gmra.mrb[0].mxu0 %v1030
      %v1122 = vpop.f32.mrb[0].mxu0
      %v1123 = vadd.f32 0.0, %v1122
      %v1124 = vpop.f32.mrb[0].mxu0
      %1125 = vmatprep.mubr.f32.mxu0 0.0
      %1126 = vmatmul.mubr.f32.gmra.mrb[0].mxu0 %v1033
      %v1127 = vpop.f32.mrb[0].mxu0
      %v1128 = vadd.f32 0.0, %v1127
      %v1129 = vpop.f32.mrb[0].mxu0
      %1130 = vmatprep.mubr.f32.mxu0 0.0
      %1131 = vmatmul.mubr.f32.gmra.mrb[0].mxu0 %v1036
      %v1132 = vpop.f32.mrb[0].mxu0
      %v1133 = vadd.f32 0.0, %v1132
      %v1134 = vpop.f32.mrb[0].mxu0
      %1135 = vmatprep.mubr.f32.mxu0 0.0
      %1136 = vmatmul.mubr.f32.gmra.mrb[0].mxu0 %v1039
      %v1137 = vpop.f32.mrb[0].mxu0
      %v1138 = vadd.f32 0.0, %v1137
      %v1139 = vpop.f32.mrb[0].mxu0
      %1140 = vdwg.mxu0
      %vm1141 = vcmask 400384
      %v1142 = vsel %vm1141, %v1108, -inf
      %1143 = vmax.xlane.f32.xlu0 %v1142
      %v1144 = vpop.xlane.xlu0 %1143
      %v1145 = vsel %vm1141, %v1113, -inf
      %1146 = vmax.xlane.f32.xlu0 %v1145
      %v1147 = vpop.xlane.xlu0 %1146
      %v1148 = vsel %vm1141, %v1118, -inf
      %1149 = vmax.xlane.f32.xlu0 %v1148
      %v1150 = vpop.xlane.xlu0 %1149
      %v1151 = vsel %vm1141, %v1123, -inf
      %1152 = vmax.xlane.f32.xlu0 %v1151
      %v1153 = vpop.xlane.xlu0 %1152
      %v1154 = vsel %vm1141, %v1128, -inf
      %1155 = vmax.xlane.f32.xlu0 %v1154
      %v1156 = vpop.xlane.xlu0 %1155
      %v1157 = vsel %vm1141, %v1133, -inf
      %1158 = vmax.xlane.f32.xlu0 %v1157
      %v1159 = vpop.xlane.xlu0 %1158
      %vm1160 = vcmask 393216
      %v1161 = vsel %vm1160, %v1138, -inf
      %1162 = vmax.xlane.f32.xlu0 %v1161
      %v1163 = vpop.xlane.xlu0 %1162
      %v1164 = vsub.f32 %v1108, %v1144
      %v1165 = vsub.f32 %v1113, %v1147
      %v1166 = vsub.f32 %v1118, %v1150
      %v1167 = vsub.f32 %v1123, %v1153
      %v1168 = vsub.f32 %v1128, %v1156
      %v1169 = vsub.f32 %v1133, %v1159
      %v1170 = vsub.f32 %v1138, %v1163
      %v1171 = vmul.f32 %v1164, 1.442695
      %v1172 = vpow.pop %v1171
      %v1173 = vmul.f32 %v1165, 1.442695
      %v1174 = vpow.pop %v1173
      %v1175 = vmul.f32 %v1166, 1.442695
      %v1176 = vpow.pop %v1175
      %v1177 = vmul.f32 %v1167, 1.442695
      %v1178 = vpow.pop %v1177
      %v1179 = vmul.f32 %v1168, 1.442695
      %v1180 = vpow.pop %v1179
      %v1181 = vmul.f32 %v1169, 1.442695
      %v1182 = vpow.pop %v1181
      %v1183 = vmul.f32 %v1170, 1.442695
      %v1184 = vpow.pop %v1183
      %v1185 = vsel %vm1141, %v1172, 0.0
      %1186 = vadd.xlane.f32.xlu0 %v1185
      %v1187 = vpop.xlane.xlu0 %1186
      %v1188 = vsel %vm1141, %v1174, 0.0
      %1189 = vadd.xlane.f32.xlu0 %v1188
      %v1190 = vpop.xlane.xlu0 %1189
      %v1191 = vsel %vm1141, %v1176, 0.0
      %1192 = vadd.xlane.f32.xlu0 %v1191
      %v1193 = vpop.xlane.xlu0 %1192
      %v1194 = vsel %vm1141, %v1178, 0.0
      %1195 = vadd.xlane.f32.xlu0 %v1194
      %v1196 = vpop.xlane.xlu0 %1195
      %v1197 = vsel %vm1141, %v1180, 0.0
      %1198 = vadd.xlane.f32.xlu0 %v1197
      %v1199 = vpop.xlane.xlu0 %1198
      %v1200 = vsel %vm1141, %v1182, 0.0
      %1201 = vadd.xlane.f32.xlu0 %v1200
      %v1202 = vpop.xlane.xlu0 %1201
      %v1203 = vsel %vm1160, %v1184, 0.0
      %1204 = vadd.xlane.f32.xlu0 %v1203
      %v1205 = vpop.xlane.xlu0 %1204
      %v1206 = vrcp.pop %v1187
      %v1207 = vrcp.pop %v1190
      %v1208 = vrcp.pop %v1193
      %v1209 = vrcp.pop %v1196
      %v1210 = vrcp.pop %v1199
      %v1211 = vrcp.pop %v1202
      %v1212 = vrcp.pop %v1205
      %v1213 = vmul.f32 %v1172, %v1206
      %v1214 = vmul.f32 %v1174, %v1207
      %v1215 = vmul.f32 %v1176, %v1208
      %v1216 = vmul.f32 %v1178, %v1209
      %v1217 = vmul.f32 %v1180, %v1210
      %v1218 = vmul.f32 %v1182, %v1211
      %v1219 = vmul.f32 %v1184, %v1212
      %v1221 = vsel %vm1141, %v971, 0
      %v1224 = vsel %vm1141, %v972, 0
      %v1227 = vsel %vm1141, %v973, 0
      %v1230 = vsel %vm1141, %v974, 0
      %v1233 = vsel %vm1141, %v975, 0
      %v1236 = vsel %vm1141, %v976, 0
      %v1239 = vsel %vm1141, %v977, 0
      %v1242 = vsel %vm1141, %v978, 0
      %v1245 = vsel %vm1141, %v979, 0
      %v1248 = vsel %vm1141, %v980, 0
      %v1251 = vsel %vm1141, %v981, 0
      %v1254 = vsel %vm1141, %v982, 0
      %v1257 = vsel %vm1141, %v983, 0
      %v1260 = vsel %vm1141, %v984, 0
      %v1263 = vsel %vm1141, %v985, 0
      %v1266 = vsel %vm1141, %v986, 0
      %v1269 = vsel %vm1141, %v1213, 0
      %v1272 = vsel %vm1141, %v1214, 0
      %v1275 = vsel %vm1141, %v1215, 0
      %v1278 = vsel %vm1141, %v1216, 0
      %v1281 = vsel %vm1141, %v1217, 0
      %v1284 = vsel %vm1141, %v1218, 0
      %v1287 = vsel %vm1141, %v1219, 0
      %1289 = vmatprep.subr.mxu0 0.0
      %1290 = vmatpush1.xpose.msra.mxu0 %v1269
      %1291 = vmatprep.subr.mxu0 0.0
      %1292 = vmatpush1.xpose.msra.mxu0 %v1272
      %1293 = vmatprep.subr.mxu0 0.0
      %1294 = vmatpush1.xpose.msra.mxu0 %v1275
      %1295 = vmatprep.subr.mxu0 0.0
      %1296 = vmatpush1.xpose.msra.mxu0 %v1278
      %1297 = vmatprep.subr.mxu0 0.0
      %1298 = vmatpush1.xpose.msra.mxu0 %v1281
      %1299 = vmatprep.subr.mxu0 0.0
      %1300 = vmatpush1.xpose.msra.mxu0 %v1284
      %1301 = vmatprep.subr.mxu0 0.0
      %1302 = vmatpush1.xpose.msra.mxu0 %v1287
      %1303 = vmatprep.subr.mxu0 0.0
      %1304 = vmatpush1.xpose.msra.mxu0 0.0
      %1305 = vmatprep.subr.mxu0 0.0
      %1306 = vmatpush1.xpose.msra.mxu0 0.0
      %1307 = vmatprep.subr.mxu0 0.0
      %1308 = vmatpush1.xpose.msra.mxu0 0.0
      %1309 = vmatprep.subr.mxu0 0.0
      %1310 = vmatpush1.xpose.msra.mxu0 0.0
      %1311 = vmatprep.subr.mxu0 0.0
      %1312 = vmatpush1.xpose.msra.mxu0 0.0
      %1313 = vmatprep.subr.mxu0 0.0
      %1314 = vmatpush1.xpose.msra.mxu0 0.0
      %1315 = vmatprep.subr.mxu0 0.0
      %1316 = vmatpush1.xpose.msra.mxu0 0.0
      %1317 = vmatprep.subr.mxu0 0.0
      %1318 = vmatpush1.xpose.msra.mxu0 0.0
      %1319 = vmatprep.subr.mxu0 0.0
      %1320 = vmatpush1.xpose.msra.mxu0 0.0
      %1321 = vmatprep.subr.mxu0 0.0
      %1322 = vmatpush1.xpose.msra.mxu0 0.0
      %1323 = vmatprep.subr.mxu0 0.0
      %1324 = vmatpush1.xpose.msra.mxu0 0.0
      %1325 = vmatprep.subr.mxu0 0.0
      %1326 = vmatpush1.xpose.msra.mxu0 0.0
      %1327 = vmatprep.subr.mxu0 0.0
      %1328 = vmatpush1.xpose.msra.mxu0 0.0
      %1329 = vmatprep.subr.mxu0 0.0
      %1330 = vmatpush1.xpose.msra.mxu0 0.0
      %1331 = vmatprep.subr.mxu0 0.0
      %1332 = vmatpush1.xpose.msra.mxu0 0.0
      %1333 = vmatprep.subr.mxu0 0.0
      %1334 = vmatpush1.xpose.msra.mxu0 0.0
      %1335 = vmatprep.subr.mxu0 0.0
      %1336 = vmatpush1.xpose.msra.mxu0 0.0
      %1337 = vmatprep.subr.mxu0 0.0
      %1338 = vmatpush1.xpose.msra.mxu0 0.0
      %1339 = vmatprep.subr.mxu0 0.0
      %1340 = vmatpush1.xpose.msra.mxu0 0.0
      %1341 = vmatprep.subr.mxu0 0.0
      %1342 = vmatpush1.xpose.msra.mxu0 0.0
      %1343 = vmatprep.subr.mxu0 0.0
      %1344 = vmatpush1.xpose.msra.mxu0 0.0
      %1345 = vmatprep.subr.mxu0 0.0
      %1346 = vmatpush1.xpose.msra.mxu0 0.0
      %1347 = vmatprep.subr.mxu0 0.0
      %1348 = vmatpush1.xpose.msra.mxu0 0.0
      %1349 = vmatprep.subr.mxu0 0.0
      %1350 = vmatpush1.xpose.msra.mxu0 0.0
      %1351 = vmatprep.subr.mxu0 0.0
      %1352 = vmatpush1.xpose.msra.mxu0 0.0
      %1353 = vmatprep.mubr.f32.mxu0 0.0
      %1354 = vmatmul.mubr.f32.gmra.mrb[0].mxu0 %v1221
      %v1355 = vpop.f32.mrb[0].mxu0
      %v1356 = vadd.f32 0.0, %v1355
      %v1357 = vpop.f32.mrb[0].mxu0
      %1358 = vmatprep.mubr.f32.mxu0 0.0
      %1359 = vmatmul.mubr.f32.gmra.mrb[0].mxu0 %v1224
      %v1360 = vpop.f32.mrb[0].mxu0
      %v1361 = vadd.f32 0.0, %v1360
      %v1362 = vpop.f32.mrb[0].mxu0
      %1363 = vmatprep.mubr.f32.mxu0 0.0
      %1364 = vmatmul.mubr.f32.gmra.mrb[0].mxu0 %v1227
      %v1365 = vpop.f32.mrb[0].mxu0
      %v1366 = vadd.f32 0.0, %v1365
      %v1367 = vpop.f32.mrb[0].mxu0
      %1368 = vmatprep.mubr.f32.mxu0 0.0
      %1369 = vmatmul.mubr.f32.gmra.mrb[0].mxu0 %v1230
      %v1370 = vpop.f32.mrb[0].mxu0
      %v1371 = vadd.f32 0.0, %v1370
      %v1372 = vpop.f32.mrb[0].mxu0
      %1373 = vmatprep.mubr.f32.mxu0 0.0
      %1374 = vmatmul.mubr.f32.gmra.mrb[0].mxu0 %v1233
      %v1375 = vpop.f32.mrb[0].mxu0
      %v1376 = vadd.f32 0.0, %v1375
      %v1377 = vpop.f32.mrb[0].mxu0
      %1378 = vmatprep.mubr.f32.mxu0 0.0
      %1379 = vmatmul.mubr.f32.gmra.mrb[0].mxu0 %v1236
      %v1380 = vpop.f32.mrb[0].mxu0
      %v1381 = vadd.f32 0.0, %v1380
      %v1382 = vpop.f32.mrb[0].mxu0
      %1383 = vmatprep.mubr.f32.mxu0 0.0
      %1384 = vmatmul.mubr.f32.gmra.mrb[0].mxu0 %v1239
      %v1385 = vpop.f32.mrb[0].mxu0
      %v1386 = vadd.f32 0.0, %v1385
      %v1387 = vpop.f32.mrb[0].mxu0
      %1388 = vmatprep.mubr.f32.mxu0 0.0
      %1389 = vmatmul.mubr.f32.gmra.mrb[0].mxu0 %v1242
      %v1390 = vpop.f32.mrb[0].mxu0
      %v1391 = vadd.f32 0.0, %v1390
      %v1392 = vpop.f32.mrb[0].mxu0
      %1393 = vmatprep.mubr.f32.mxu0 0.0
      %1394 = vmatmul.mubr.f32.gmra.mrb[0].mxu0 %v1245
      %v1395 = vpop.f32.mrb[0].mxu0
      %v1396 = vadd.f32 0.0, %v1395
      %v1397 = vpop.f32.mrb[0].mxu0
      %1398 = vmatprep.mubr.f32.mxu0 0.0
      %1399 = vmatmul.mubr.f32.gmra.mrb[0].mxu0 %v1248
      %v1400 = vpop.f32.mrb[0].mxu0
      %v1401 = vadd.f32 0.0, %v1400
      %v1402 = vpop.f32.mrb[0].mxu0
      %1403 = vmatprep.mubr.f32.mxu0 0.0
      %1404 = vmatmul.mubr.f32.gmra.mrb[0].mxu0 %v1251
      %v1405 = vpop.f32.mrb[0].mxu0
      %v1406 = vadd.f32 0.0, %v1405
      %v1407 = vpop.f32.mrb[0].mxu0
      %1408 = vmatprep.mubr.f32.mxu0 0.0
      %1409 = vmatmul.mubr.f32.gmra.mrb[0].mxu0 %v1254
      %v1410 = vpop.f32.mrb[0].mxu0
      %v1411 = vadd.f32 0.0, %v1410
      %v1412 = vpop.f32.mrb[0].mxu0
      %1413 = vmatprep.mubr.f32.mxu0 0.0
      %1414 = vmatmul.mubr.f32.gmra.mrb[0].mxu0 %v1257
      %v1415 = vpop.f32.mrb[0].mxu0
      %v1416 = vadd.f32 0.0, %v1415
      %v1417 = vpop.f32.mrb[0].mxu0
      %1418 = vmatprep.mubr.f32.mxu0 0.0
      %1419 = vmatmul.mubr.f32.gmra.mrb[0].mxu0 %v1260
      %v1420 = vpop.f32.mrb[0].mxu0
      %v1421 = vadd.f32 0.0, %v1420
      %v1422 = vpop.f32.mrb[0].mxu0
      %1423 = vmatprep.mubr.f32.mxu0 0.0
      %1424 = vmatmul.mubr.f32.gmra.mrb[0].mxu0 %v1263
      %v1425 = vpop.f32.mrb[0].mxu0
      %v1426 = vadd.f32 0.0, %v1425
      %v1427 = vpop.f32.mrb[0].mxu0
      %1428 = vmatprep.mubr.f32.mxu0 0.0
      %1429 = vmatmul.mubr.f32.gmra.mrb[0].mxu0 %v1266
      %v1430 = vpop.f32.mrb[0].mxu0
      %v1431 = vadd.f32 0.0, %v1430
      %v1432 = vpop.f32.mrb[0].mxu0
      %1433 = vdwg.mxu0
      %1434 = vmatprep.subr.mxu0 0.0
      %1435 = vmatpush1.msra.mxu0 %v1356
      %1436 = vmatprep.subr.mxu0 0.0
      %1437 = vmatpush1.msra.mxu0 %v1361
      %1438 = vmatprep.subr.mxu0 0.0
      %1439 = vmatpush1.msra.mxu0 %v1366
      %1440 = vmatprep.subr.mxu0 0.0
      %1441 = vmatpush1.msra.mxu0 %v1371
      %1442 = vmatprep.subr.mxu0 0.0
      %1443 = vmatpush1.msra.mxu0 %v1376
      %1444 = vmatprep.subr.mxu0 0.0
      %1445 = vmatpush1.msra.mxu0 %v1381
      %1446 = vmatprep.subr.mxu0 0.0
      %1447 = vmatpush1.msra.mxu0 %v1386
      %1448 = vmatprep.subr.mxu0 0.0
      %1449 = vmatpush1.msra.mxu0 %v1391
      %1450 = vmatprep.subr.mxu0 0.0
      %1451 = vmatpush1.msra.mxu0 %v1396
      %1452 = vmatprep.subr.mxu0 0.0
      %1453 = vmatpush1.msra.mxu0 %v1401
      %1454 = vmatprep.subr.mxu0 0.0
      %1455 = vmatpush1.msra.mxu0 %v1406
      %1456 = vmatprep.subr.mxu0 0.0
      %1457 = vmatpush1.msra.mxu0 %v1411
      %1458 = vmatprep.subr.mxu0 0.0
      %1459 = vmatpush1.msra.mxu0 %v1416
      %1460 = vmatprep.subr.mxu0 0.0
      %1461 = vmatpush1.msra.mxu0 %v1421
      %1462 = vmatprep.subr.mxu0 0.0
      %1463 = vmatpush1.msra.mxu0 %v1426
      %1464 = vmatprep.subr.mxu0 0.0
      %1465 = vmatpush1.msra.mxu0 %v1431
      %1466 = vmatprep.subr.mxu0 0.0
      %1467 = vmatpush1.msra.mxu0 0.0
      %1468 = vmatprep.subr.mxu0 0.0
      %1469 = vmatpush1.msra.mxu0 0.0
      %1470 = vmatprep.subr.mxu0 0.0
      %1471 = vmatpush1.msra.mxu0 0.0
      %1472 = vmatprep.subr.mxu0 0.0
      %1473 = vmatpush1.msra.mxu0 0.0
      %1474 = vmatprep.subr.mxu0 0.0
      %1475 = vmatpush1.msra.mxu0 0.0
      %1476 = vmatprep.subr.mxu0 0.0
      %1477 = vmatpush1.msra.mxu0 0.0
      %1478 = vmatprep.subr.mxu0 0.0
      %1479 = vmatpush1.msra.mxu0 0.0
      %1480 = vmatprep.subr.mxu0 0.0
      %1481 = vmatpush1.msra.mxu0 0.0
      %1482 = vmatprep.subr.mxu0 0.0
      %1483 = vmatpush1.msra.mxu0 0.0
      %1484 = vmatprep.subr.mxu0 0.0
      %1485 = vmatpush1.msra.mxu0 0.0
      %1486 = vmatprep.subr.mxu0 0.0
      %1487 = vmatpush1.msra.mxu0 0.0
      %1488 = vmatprep.subr.mxu0 0.0
      %1489 = vmatpush1.msra.mxu0 0.0
      %1490 = vmatprep.subr.mxu0 0.0
      %1491 = vmatpush1.msra.mxu0 0.0
      %1492 = vmatprep.subr.mxu0 0.0
      %1493 = vmatpush1.msra.mxu0 0.0
      %1494 = vmatprep.subr.mxu0 0.0
      %1495 = vmatpush1.msra.mxu0 0.0
      %1496 = vmatprep.subr.mxu0 0.0
      %1497 = vmatpush1.msra.mxu0 0.0
      %1498 = vmatprep.mubr.f32.mxu0 0.0
      %1499 = vmatmul.mubr.f32.gmra.mrb[0].mxu0 %v613
      %v1500 = vpop.f32.mrb[0].mxu0
      %v1501 = vadd.f32 0.0, %v1500
      %v1502 = vpop.f32.mrb[0].mxu0
      %1503 = vmatprep.mubr.f32.mxu0 0.0
      %1504 = vmatmul.mubr.f32.gmra.mrb[0].mxu0 %v614
      %v1505 = vpop.f32.mrb[0].mxu0
      %v1506 = vadd.f32 0.0, %v1505
      %v1507 = vpop.f32.mrb[0].mxu0
      %1508 = vdwg.mxu0
      %v1509 = vmax.f32 %v1501, 0.0
      %v1510 = vmax.f32 %v1506, 0.0
      %v1512 = vsel %vm1141, %v1509, 0
      %v1515 = vsel %vm1141, %v1510, 0
      %vm1517 = vcmask 1040384
      %v1519 = vsel %vm1517, %v567, 0
      %v1522 = vsel %vm1517, %v568, 0
      %1524 = vmatprep.subr.mxu0 %v556
      %1525 = vmatpush1.msra.mxu0 %v555
      %1526 = vmatprep.subr.mxu0 %v558
      %1527 = vmatpush1.msra.mxu0 %v557
      %1528 = vmatprep.subr.mxu0 %v560
      %1529 = vmatpush1.msra.mxu0 %v559
      %1530 = vmatprep.subr.mxu0 %v562
      %1531 = vmatpush1.msra.mxu0 %v561
      %1532 = vmatprep.subr.mxu0 %v564
      %1533 = vmatpush1.msra.mxu0 %v563
      %1534 = vmatprep.subr.mxu0 %v566
      %1535 = vmatpush1.msra.mxu0 %v565
      %1536 = vmatprep.subr.mxu0 %v1522
      %1537 = vmatpush1.msra.mxu0 %v1519
      %1538 = vmatprep.subr.mxu0 0.0
      %1539 = vmatpush1.msra.mxu0 0.0
      %1540 = vmatprep.subr.mxu0 0.0
      %1541 = vmatpush1.msra.mxu0 0.0
      %1542 = vmatprep.subr.mxu0 0.0
      %1543 = vmatpush1.msra.mxu0 0.0
      %1544 = vmatprep.subr.mxu0 0.0
      %1545 = vmatpush1.msra.mxu0 0.0
      %1546 = vmatprep.subr.mxu0 0.0
      %1547 = vmatpush1.msra.mxu0 0.0
      %1548 = vmatprep.subr.mxu0 0.0
      %1549 = vmatpush1.msra.mxu0 0.0
      %1550 = vmatprep.subr.mxu0 0.0
      %1551 = vmatpush1.msra.mxu0 0.0
      %1552 = vmatprep.subr.mxu0 0.0
      %1553 = vmatpush1.msra.mxu0 0.0
      %1554 = vmatprep.subr.mxu0 0.0
      %1555 = vmatpush1.msra.mxu0 0.0
      %1556 = vmatprep.subr.mxu0 0.0
      %1557 = vmatpush1.msra.mxu0 0.0
      %1558 = vmatprep.subr.mxu0 0.0
      %1559 = vmatpush1.msra.mxu0 0.0
      %1560 = vmatprep.subr.mxu0 0.0
      %1561 = vmatpush1.msra.mxu0 0.0
      %1562 = vmatprep.subr.mxu0 0.0
      %1563 = vmatpush1.msra.mxu0 0.0
      %1564 = vmatprep.subr.mxu0 0.0
      %1565 = vmatpush1.msra.mxu0 0.0
      %1566 = vmatprep.subr.mxu0 0.0
      %1567 = vmatpush1.msra.mxu0 0.0
      %1568 = vmatprep.subr.mxu0 0.0
      %1569 = vmatpush1.msra.mxu0 0.0
      %1570 = vmatprep.subr.mxu0 0.0
      %1571 = vmatpush1.msra.mxu0 0.0
      %1572 = vmatprep.subr.mxu0 0.0
      %1573 = vmatpush1.msra.mxu0 0.0
      %1574 = vmatprep.subr.mxu0 0.0
      %1575 = vmatpush1.msra.mxu0 0.0
      %1576 = vmatprep.subr.mxu0 0.0
      %1577 = vmatpush1.msra.mxu0 0.0
      %1578 = vmatprep.subr.mxu0 0.0
      %1579 = vmatpush1.msra.mxu0 0.0
      %1580 = vmatprep.subr.mxu0 0.0
      %1581 = vmatpush1.msra.mxu0 0.0
      %1582 = vmatprep.subr.mxu0 0.0
      %1583 = vmatpush1.msra.mxu0 0.0
      %1584 = vmatprep.subr.mxu0 0.0
      %1585 = vmatpush1.msra.mxu0 0.0
      %1586 = vmatprep.subr.mxu0 0.0
      %1587 = vmatpush1.msra.mxu0 0.0
      %1588 = vmatprep.mubr.f32.mxu0 0.0
      %1589 = vmatmul.mubr.f32.gmra.mrb[0].mxu0 %v1512
      %v1590 = vpop.f32.mrb[0].mxu0
      %v1591 = vadd.f32 0.0, %v1590
      %v1592 = vpop.f32.mrb[0].mxu0
      %v1593 = vadd.f32 0.0, %v1592
      %1594 = vmatprep.mubr.f32.mxu0 0.0
      %1595 = vmatmul.mubr.f32.gmra.mrb[0].mxu0 %v1515
      %v1596 = vpop.f32.mrb[0].mxu0
      %v1597 = vadd.f32 0.0, %v1596
      %v1598 = vpop.f32.mrb[0].mxu0
      %v1599 = vadd.f32 0.0, %v1598
      %1600 = vdwg.mxu0
      %1602 = vset.pattern.permute.xlu0 0
      %1603 = vperm.xlu0 %1602, %v616
      %v1604 = vpop.permute.xlu0 %1603
      %vm1606 = vcmask 80896
      %v1608 = vsel %vm1606, %v615, 0
      %v1611 = vsel %vm792, %v1597, 0
      %v1614 = vsel %vm792, %v1599, 0
      %1616 = vmatprep.subr.mxu0 %v1593
      %1617 = vmatpush1.msra.mxu0 %v1591
      %1618 = vmatprep.subr.mxu0 %v1614
      %1619 = vmatpush1.msra.mxu0 %v1611
      %1620 = vmatprep.subr.mxu0 0.0
      %1621 = vmatpush1.msra.mxu0 0.0
      %1622 = vmatprep.subr.mxu0 0.0
      %1623 = vmatpush1.msra.mxu0 0.0
      %1624 = vmatprep.subr.mxu0 0.0
      %1625 = vmatpush1.msra.mxu0 0.0
      %1626 = vmatprep.subr.mxu0 0.0
      %1627 = vmatpush1.msra.mxu0 0.0
      %1628 = vmatprep.subr.mxu0 0.0
      %1629 = vmatpush1.msra.mxu0 0.0
      %1630 = vmatprep.subr.mxu0 0.0
      %1631 = vmatpush1.msra.mxu0 0.0
      %1632 = vmatprep.subr.mxu0 0.0
      %1633 = vmatpush1.msra.mxu0 0.0
      %1634 = vmatprep.subr.mxu0 0.0
      %1635 = vmatpush1.msra.mxu0 0.0
      %1636 = vmatprep.subr.mxu0 0.0
      %1637 = vmatpush1.msra.mxu0 0.0
      %1638 = vmatprep.subr.mxu0 0.0
      %1639 = vmatpush1.msra.mxu0 0.0
      %1640 = vmatprep.subr.mxu0 0.0
      %1641 = vmatpush1.msra.mxu0 0.0
      %1642 = vmatprep.subr.mxu0 0.0
      %1643 = vmatpush1.msra.mxu0 0.0
      %1644 = vmatprep.subr.mxu0 0.0
      %1645 = vmatpush1.msra.mxu0 0.0
      %1646 = vmatprep.subr.mxu0 0.0
      %1647 = vmatpush1.msra.mxu0 0.0
      %1648 = vmatprep.subr.mxu0 0.0
      %1649 = vmatpush1.msra.mxu0 0.0
      %1650 = vmatprep.subr.mxu0 0.0
      %1651 = vmatpush1.msra.mxu0 0.0
      %1652 = vmatprep.subr.mxu0 0.0
      %1653 = vmatpush1.msra.mxu0 0.0
      %1654 = vmatprep.subr.mxu0 0.0
      %1655 = vmatpush1.msra.mxu0 0.0
      %1656 = vmatprep.subr.mxu0 0.0
      %1657 = vmatpush1.msra.mxu0 0.0
      %1658 = vmatprep.subr.mxu0 0.0
      %1659 = vmatpush1.msra.mxu0 0.0
      %1660 = vmatprep.subr.mxu0 0.0
      %1661 = vmatpush1.msra.mxu0 0.0
      %1662 = vmatprep.subr.mxu0 0.0
      %1663 = vmatpush1.msra.mxu0 0.0
      %1664 = vmatprep.subr.mxu0 0.0
      %1665 = vmatpush1.msra.mxu0 0.0
      %1666 = vmatprep.subr.mxu0 0.0
      %1667 = vmatpush1.msra.mxu0 0.0
      %1668 = vmatprep.subr.mxu0 0.0
      %1669 = vmatpush1.msra.mxu0 0.0
      %1670 = vmatprep.subr.mxu0 0.0
      %1671 = vmatpush1.msra.mxu0 0.0
      %1672 = vmatprep.subr.mxu0 0.0
      %1673 = vmatpush1.msra.mxu0 0.0
      %1674 = vmatprep.subr.mxu0 0.0
      %1675 = vmatpush1.msra.mxu0 0.0
      %1676 = vmatprep.subr.mxu0 0.0
      %1677 = vmatpush1.msra.mxu0 0.0
      %1678 = vmatprep.subr.mxu0 0.0
      %1679 = vmatpush1.msra.mxu0 0.0
      %1680 = vmatprep.mubr.f32.mxu0 0.0
      %1681 = vmatmul.mubr.f32.gmra.mrb[0].mxu0 %v1608
      %v1682 = vpop.f32.mrb[0].mxu0
      %v1683 = vadd.f32 %v1604, %v1682
      %v1684 = vpop.f32.mrb[0].mxu0
      %v1685 = vadd.f32 %v1604, %v1684
      %1686 = vdwg.mxu0
      %1688 = vset.pattern.permute.xlu0 0
      %1689 = vperm.xlu0 %1688, %v617
      %v1690 = vpop.permute.xlu0 %1689
      %v1692 = vadd.f32 %v1683, %v1690
      %v1693 = vadd.f32 %v1685, %v1690
      %vm1694 = vcmask 1044480
      %v1695 = vsel %vm1694, %v1692, -inf
      %v1696 = vrot.slane %v1695, 4
      %v1697 = vmax.f32 %v1695, %v1696
      %v1698 = vrot.slane %v1697, 2
      %v1699 = vmax.f32 %v1697, %v1698
      %v1700 = vrot.slane %v1699, 1
      %v1701 = vmax.f32 %v1699, %v1700
      %v1702 = vsel %vm1694, %v1693, -inf
      %v1703 = vrot.slane %v1702, 4
      %v1704 = vmax.f32 %v1702, %v1703
      %v1705 = vrot.slane %v1704, 2
      %v1706 = vmax.f32 %v1704, %v1705
      %v1707 = vrot.slane %v1706, 1
      %v1708 = vmax.f32 %v1706, %v1707
      %v1709 = vsub.f32 %v1692, %v1701
      %v1710 = vsub.f32 %v1693, %v1708
      %v1711 = vmul.f32 %v1709, 1.442695
      %v1712 = vpow.pop %v1711
      %v1713 = vmul.f32 %v1710, 1.442695
      %v1714 = vpow.pop %v1713
      %v1715 = vsel %vm1694, %v1712, 0.0
      %v1716 = vrot.slane %v1715, 4
      %v1717 = vadd.f32 %v1715, %v1716
      %v1718 = vrot.slane %v1717, 2
      %v1719 = vadd.f32 %v1717, %v1718
      %v1720 = vrot.slane %v1719, 1
      %v1721 = vadd.f32 %v1719, %v1720
      %v1722 = vsel %vm1694, %v1714, 0.0
      %v1723 = vrot.slane %v1722, 4
      %v1724 = vadd.f32 %v1722, %v1723
      %v1725 = vrot.slane %v1724, 2
      %v1726 = vadd.f32 %v1724, %v1725
      %v1727 = vrot.slane %v1726, 1
      %v1728 = vadd.f32 %v1726, %v1727
      %v1729 = vrcp.pop %v1721
      %v1730 = vrcp.pop %v1728
      %v1731 = vmul.f32 %v1712, %v1729
      %v1732 = vmul.f32 %v1714, %v1730
      %1733 = vst [vmem:[%s512] sm:$0xff] %v1591
      %1734 = vst [vmem:[%s512 + $0x8] sm:$0xff] %v1593
      %1735 = vst [vmem:[%s512 + $0x10] sm:$0x3] %v1597
      %1736 = vst [vmem:[%s512 + $0x18] sm:$0x3] %v1599
      %1737 = vst [vmem:[%s517] sm:$0x1f] %v1683
      %1738 = vst [vmem:[%s517 + $0x8] sm:$0x1f] %v1685
      %1739 = vst [vmem:[%s522] sm:$0x1f] %v1731
      %1740 = vst [vmem:[%s522 + $0x8] sm:$0x1f] %v1732
      %s1741 = scalar_lea.vmem %s480, 96
      %v1742 = vld [vmem:[%s1741] sm:$0xff]
      %v1743 = vld [vmem:[%s1741 + $0x8] sm:$0xff]
      %v1744 = vld [vmem:[%s1741 + $0x10] sm:$0xff]
      %v1745 = vld [vmem:[%s1741 + $0x18] sm:$0xff]
      %v1746 = vld [vmem:[%s1741 + $0x20] sm:$0xff]
      %v1747 = vld [vmem:[%s1741 + $0x28] sm:$0xff]
      %v1748 = vld [vmem:[%s1741 + $0x30] sm:$0xff]
      %v1749 = vld [vmem:[%s1741 + $0x38] sm:$0xff]
      %v1750 = vld [vmem:[%s1741 + $0x40] sm:$0xff]
      %v1751 = vld [vmem:[%s1741 + $0x48] sm:$0xff]
      %v1752 = vld [vmem:[%s1741 + $0x50] sm:$0x3]
      %v1753 = vld [vmem:[%s1741 + $0x58] sm:$0x3]
      %1754 = vmatprep.subr.mxu0 0.0
      %1755 = vmatpush1.msra.mxu0 %v523
      %1756 = vmatprep.subr.mxu0 0.0
      %1757 = vmatpush1.msra.mxu0 %v524
      %1758 = vmatprep.subr.mxu0 0.0
      %1759 = vmatpush1.msra.mxu0 %v525
      %1760 = vmatprep.subr.mxu0 0.0
      %1761 = vmatpush1.msra.mxu0 %v526
      %1762 = vmatprep.subr.mxu0 0.0
      %1763 = vmatpush1.msra.mxu0 %v527
      %1764 = vmatprep.subr.mxu0 0.0
      %1765 = vmatpush1.msra.mxu0 %v528
      %1766 = vmatprep.subr.mxu0 0.0
      %1767 = vmatpush1.msra.mxu0 %v529
      %1768 = vmatprep.subr.mxu0 0.0
      %1769 = vmatpush1.msra.mxu0 %v530
      %1770 = vmatprep.subr.mxu0 0.0
      %1771 = vmatpush1.msra.mxu0 %v531
      %1772 = vmatprep.subr.mxu0 0.0
      %1773 = vmatpush1.msra.mxu0 %v532
      %1774 = vmatprep.subr.mxu0 0.0
      %1775 = vmatpush1.msra.mxu0 %v533
      %1776 = vmatprep.subr.mxu0 0.0
      %1777 = vmatpush1.msra.mxu0 %v534
      %1778 = vmatprep.subr.mxu0 0.0
      %1779 = vmatpush1.msra.mxu0 %v535
      %1780 = vmatprep.subr.mxu0 0.0
      %1781 = vmatpush1.msra.mxu0 %v536
      %1782 = vmatprep.subr.mxu0 0.0
      %1783 = vmatpush1.msra.mxu0 %v537
      %1784 = vmatprep.subr.mxu0 0.0
      %1785 = vmatpush1.msra.mxu0 %v538
      %1786 = vmatprep.subr.mxu0 0.0
      %1787 = vmatpush1.msra.mxu0 %v539
      %1788 = vmatprep.subr.mxu0 0.0
      %1789 = vmatpush1.msra.mxu0 %v540
      %1790 = vmatprep.subr.mxu0 0.0
      %1791 = vmatpush1.msra.mxu0 %v541
      %1792 = vmatprep.subr.mxu0 0.0
      %1793 = vmatpush1.msra.mxu0 %v542
      %1794 = vmatprep.subr.mxu0 0.0
      %1795 = vmatpush1.msra.mxu0 %v543
      %1796 = vmatprep.subr.mxu0 0.0
      %1797 = vmatpush1.msra.mxu0 %v544
      %1798 = vmatprep.subr.mxu0 0.0
      %1799 = vmatpush1.msra.mxu0 %v545
      %1800 = vmatprep.subr.mxu0 0.0
      %1801 = vmatpush1.msra.mxu0 %v546
      %1802 = vmatprep.subr.mxu0 0.0
      %1803 = vmatpush1.msra.mxu0 %v547
      %1804 = vmatprep.subr.mxu0 0.0
      %1805 = vmatpush1.msra.mxu0 %v548
      %1806 = vmatprep.subr.mxu0 0.0
      %1807 = vmatpush1.msra.mxu0 %v549
      %1808 = vmatprep.subr.mxu0 0.0
      %1809 = vmatpush1.msra.mxu0 %v550
      %1810 = vmatprep.subr.mxu0 0.0
      %1811 = vmatpush1.msra.mxu0 %v551
      %1812 = vmatprep.subr.mxu0 0.0
      %1813 = vmatpush1.msra.mxu0 %v552
      %1814 = vmatprep.subr.mxu0 0.0
      %1815 = vmatpush1.msra.mxu0 %v553
      %1816 = vmatprep.subr.mxu0 0.0
      %1817 = vmatpush1.msra.mxu0 %v554
      %1818 = vmatprep.mubr.f32.mxu0 %v1743
      %1819 = vmatmul.mubr.f32.gmra.mrb[0].mxu0 %v1742
      %v1820 = vpop.f32.mrb[0].mxu0
      %v1821 = vadd.f32 0.0, %v1820
      %v1822 = vpop.f32.mrb[0].mxu0
      %1823 = vmatprep.mubr.f32.mxu0 %v1745
      %1824 = vmatmul.mubr.f32.gmra.mrb[0].mxu0 %v1744
      %v1825 = vpop.f32.mrb[0].mxu0
      %v1826 = vadd.f32 0.0, %v1825
      %v1827 = vpop.f32.mrb[0].mxu0
      %1828 = vmatprep.mubr.f32.mxu0 %v1747
      %1829 = vmatmul.mubr.f32.gmra.mrb[0].mxu0 %v1746
      %v1830 = vpop.f32.mrb[0].mxu0
      %v1831 = vadd.f32 0.0, %v1830
      %v1832 = vpop.f32.mrb[0].mxu0
      %1833 = vmatprep.mubr.f32.mxu0 %v1749
      %1834 = vmatmul.mubr.f32.gmra.mrb[0].mxu0 %v1748
      %v1835 = vpop.f32.mrb[0].mxu0
      %v1836 = vadd.f32 0.0, %v1835
      %v1837 = vpop.f32.mrb[0].mxu0
      %1838 = vmatprep.mubr.f32.mxu0 %v1751
      %1839 = vmatmul.mubr.f32.gmra.mrb[0].mxu0 %v1750
      %v1840 = vpop.f32.mrb[0].mxu0
      %v1841 = vadd.f32 0.0, %v1840
      %v1842 = vpop.f32.mrb[0].mxu0
      %1843 = vmatprep.mubr.f32.mxu0 %v1753
      %1844 = vmatmul.mubr.f32.gmra.mrb[0].mxu0 %v1752
      %v1845 = vpop.f32.mrb[0].mxu0
      %v1846 = vadd.f32 0.0, %v1845
      %v1847 = vpop.f32.mrb[0].mxu0
      %1848 = vdwg.mxu0
      %v1850 = vsel %vm792, %v1846, 0
      %1852 = vmatprep.subr.mxu0 0.0
      %1853 = vmatpush1.msra.mxu0 %v1821
      %1854 = vmatprep.subr.mxu0 0.0
      %1855 = vmatpush1.msra.mxu0 %v1826
      %1856 = vmatprep.subr.mxu0 0.0
      %1857 = vmatpush1.msra.mxu0 %v1831
      %1858 = vmatprep.subr.mxu0 0.0
      %1859 = vmatpush1.msra.mxu0 %v1836
      %1860 = vmatprep.subr.mxu0 0.0
      %1861 = vmatpush1.msra.mxu0 %v1841
      %1862 = vmatprep.subr.mxu0 0.0
      %1863 = vmatpush1.msra.mxu0 %v1850
      %1864 = vmatprep.subr.mxu0 0.0
      %1865 = vmatpush1.msra.mxu0 0.0
      %1866 = vmatprep.subr.mxu0 0.0
      %1867 = vmatpush1.msra.mxu0 0.0
      %1868 = vmatprep.subr.mxu0 0.0
      %1869 = vmatpush1.msra.mxu0 0.0
      %1870 = vmatprep.subr.mxu0 0.0
      %1871 = vmatpush1.msra.mxu0 0.0
      %1872 = vmatprep.subr.mxu0 0.0
      %1873 = vmatpush1.msra.mxu0 0.0
      %1874 = vmatprep.subr.mxu0 0.0
      %1875 = vmatpush1.msra.mxu0 0.0
      %1876 = vmatprep.subr.mxu0 0.0
      %1877 = vmatpush1.msra.mxu0 0.0
      %1878 = vmatprep.subr.mxu0 0.0
      %1879 = vmatpush1.msra.mxu0 0.0
      %1880 = vmatprep.subr.mxu0 0.0
      %1881 = vmatpush1.msra.mxu0 0.0
      %1882 = vmatprep.subr.mxu0 0.0
      %1883 = vmatpush1.msra.mxu0 0.0
      %1884 = vmatprep.subr.mxu0 0.0
      %1885 = vmatpush1.msra.mxu0 0.0
      %1886 = vmatprep.subr.mxu0 0.0
      %1887 = vmatpush1.msra.mxu0 0.0
      %1888 = vmatprep.subr.mxu0 0.0
      %1889 = vmatpush1.msra.mxu0 0.0
      %1890 = vmatprep.subr.mxu0 0.0
      %1891 = vmatpush1.msra.mxu0 0.0
      %1892 = vmatprep.subr.mxu0 0.0
      %1893 = vmatpush1.msra.mxu0 0.0
      %1894 = vmatprep.subr.mxu0 0.0
      %1895 = vmatpush1.msra.mxu0 0.0
      %1896 = vmatprep.subr.mxu0 0.0
      %1897 = vmatpush1.msra.mxu0 0.0
      %1898 = vmatprep.subr.mxu0 0.0
      %1899 = vmatpush1.msra.mxu0 0.0
      %1900 = vmatprep.subr.mxu0 0.0
      %1901 = vmatpush1.msra.mxu0 0.0
      %1902 = vmatprep.subr.mxu0 0.0
      %1903 = vmatpush1.msra.mxu0 0.0
      %1904 = vmatprep.subr.mxu0 0.0
      %1905 = vmatpush1.msra.mxu0 0.0
      %1906 = vmatprep.subr.mxu0 0.0
      %1907 = vmatpush1.msra.mxu0 0.0
      %1908 = vmatprep.subr.mxu0 0.0
      %1909 = vmatpush1.msra.mxu0 0.0
      %1910 = vmatprep.subr.mxu0 0.0
      %1911 = vmatpush1.msra.mxu0 0.0
      %1912 = vmatprep.subr.mxu0 0.0
      %1913 = vmatpush1.msra.mxu0 0.0
      %1914 = vmatprep.subr.mxu0 0.0
      %1915 = vmatpush1.msra.mxu0 0.0
      %1916 = vmatprep.mubr.f32.mxu0 0.0
      %1917 = vmatmul.mubr.f32.gmra.mrb[0].mxu0 %v727
      %v1918 = vpop.f32.mrb[0].mxu0
      %v1919 = vadd.f32 %v591, %v1918
      %v1920 = vpop.f32.mrb[0].mxu0
      %1921 = vmatprep.mubr.f32.mxu0 0.0
      %1922 = vmatmul.mubr.f32.gmra.mrb[0].mxu0 %v730
      %v1923 = vpop.f32.mrb[0].mxu0
      %v1924 = vadd.f32 %v592, %v1923
      %v1925 = vpop.f32.mrb[0].mxu0
      %1926 = vmatprep.mubr.f32.mxu0 0.0
      %1927 = vmatmul.mubr.f32.gmra.mrb[0].mxu0 %v733
      %v1928 = vpop.f32.mrb[0].mxu0
      %v1929 = vadd.f32 %v593, %v1928
      %v1930 = vpop.f32.mrb[0].mxu0
      %1931 = vmatprep.mubr.f32.mxu0 0.0
      %1932 = vmatmul.mubr.f32.gmra.mrb[0].mxu0 %v736
      %v1933 = vpop.f32.mrb[0].mxu0
      %v1934 = vadd.f32 %v594, %v1933
      %v1935 = vpop.f32.mrb[0].mxu0
      %1936 = vmatprep.mubr.f32.mxu0 0.0
      %1937 = vmatmul.mubr.f32.gmra.mrb[0].mxu0 %v739
      %v1938 = vpop.f32.mrb[0].mxu0
      %v1939 = vadd.f32 %v595, %v1938
      %v1940 = vpop.f32.mrb[0].mxu0
      %1941 = vmatprep.mubr.f32.mxu0 0.0
      %1942 = vmatmul.mubr.f32.gmra.mrb[0].mxu0 %v742
      %v1943 = vpop.f32.mrb[0].mxu0
      %v1944 = vadd.f32 %v596, %v1943
      %v1945 = vpop.f32.mrb[0].mxu0
      %1946 = vmatprep.mubr.f32.mxu0 0.0
      %1947 = vmatmul.mubr.f32.gmra.mrb[0].mxu0 %v745
      %v1948 = vpop.f32.mrb[0].mxu0
      %v1949 = vadd.f32 %v597, %v1948
      %v1950 = vpop.f32.mrb[0].mxu0
      %1951 = vmatprep.mubr.f32.mxu0 0.0
      %1952 = vmatmul.mubr.f32.gmra.mrb[0].mxu0 %v748
      %v1953 = vpop.f32.mrb[0].mxu0
      %v1954 = vadd.f32 %v598, %v1953
      %v1955 = vpop.f32.mrb[0].mxu0
      %1956 = vmatprep.mubr.f32.mxu0 0.0
      %1957 = vmatmul.mubr.f32.gmra.mrb[0].mxu0 %v751
      %v1958 = vpop.f32.mrb[0].mxu0
      %v1959 = vadd.f32 %v599, %v1958
      %v1960 = vpop.f32.mrb[0].mxu0
      %1961 = vmatprep.mubr.f32.mxu0 0.0
      %1962 = vmatmul.mubr.f32.gmra.mrb[0].mxu0 %v754
      %v1963 = vpop.f32.mrb[0].mxu0
      %v1964 = vadd.f32 %v600, %v1963
      %v1965 = vpop.f32.mrb[0].mxu0
      %1966 = vmatprep.mubr.f32.mxu0 0.0
      %1967 = vmatmul.mubr.f32.gmra.mrb[0].mxu0 %v757
      %v1968 = vpop.f32.mrb[0].mxu0
      %v1969 = vadd.f32 %v601, %v1968
      %v1970 = vpop.f32.mrb[0].mxu0
      %1971 = vmatprep.mubr.f32.mxu0 0.0
      %1972 = vmatmul.mubr.f32.gmra.mrb[0].mxu0 %v760
      %v1973 = vpop.f32.mrb[0].mxu0
      %v1974 = vadd.f32 %v602, %v1973
      %v1975 = vpop.f32.mrb[0].mxu0
      %1976 = vmatprep.mubr.f32.mxu0 0.0
      %1977 = vmatmul.mubr.f32.gmra.mrb[0].mxu0 %v763
      %v1978 = vpop.f32.mrb[0].mxu0
      %v1979 = vadd.f32 %v603, %v1978
      %v1980 = vpop.f32.mrb[0].mxu0
      %1981 = vmatprep.mubr.f32.mxu0 0.0
      %1982 = vmatmul.mubr.f32.gmra.mrb[0].mxu0 %v766
      %v1983 = vpop.f32.mrb[0].mxu0
      %v1984 = vadd.f32 %v604, %v1983
      %v1985 = vpop.f32.mrb[0].mxu0
      %1986 = vmatprep.mubr.f32.mxu0 0.0
      %1987 = vmatmul.mubr.f32.gmra.mrb[0].mxu0 %v769
      %v1988 = vpop.f32.mrb[0].mxu0
      %v1989 = vadd.f32 %v605, %v1988
      %v1990 = vpop.f32.mrb[0].mxu0
      %1991 = vmatprep.mubr.f32.mxu0 0.0
      %1992 = vmatmul.mubr.f32.gmra.mrb[0].mxu0 %v772
      %v1993 = vpop.f32.mrb[0].mxu0
      %v1994 = vadd.f32 %v606, %v1993
      %v1995 = vpop.f32.mrb[0].mxu0
      %1996 = vmatprep.mubr.f32.mxu0 0.0
      %1997 = vmatmul.mubr.f32.gmra.mrb[0].mxu0 %v775
      %v1998 = vpop.f32.mrb[0].mxu0
      %v1999 = vadd.f32 %v607, %v1998
      %v2000 = vpop.f32.mrb[0].mxu0
      %2001 = vmatprep.mubr.f32.mxu0 0.0
      %2002 = vmatmul.mubr.f32.gmra.mrb[0].mxu0 %v778
      %v2003 = vpop.f32.mrb[0].mxu0
      %v2004 = vadd.f32 %v608, %v2003
      %v2005 = vpop.f32.mrb[0].mxu0
      %2006 = vmatprep.mubr.f32.mxu0 0.0
      %2007 = vmatmul.mubr.f32.gmra.mrb[0].mxu0 %v781
      %v2008 = vpop.f32.mrb[0].mxu0
      %v2009 = vadd.f32 %v609, %v2008
      %v2010 = vpop.f32.mrb[0].mxu0
      %2011 = vmatprep.mubr.f32.mxu0 0.0
      %2012 = vmatmul.mubr.f32.gmra.mrb[0].mxu0 %v784
      %v2013 = vpop.f32.mrb[0].mxu0
      %v2014 = vadd.f32 %v610, %v2013
      %v2015 = vpop.f32.mrb[0].mxu0
      %2016 = vmatprep.mubr.f32.mxu0 0.0
      %2017 = vmatmul.mubr.f32.gmra.mrb[0].mxu0 %v787
      %v2018 = vpop.f32.mrb[0].mxu0
      %v2019 = vadd.f32 %v611, %v2018
      %v2020 = vpop.f32.mrb[0].mxu0
      %2021 = vmatprep.mubr.f32.mxu0 0.0
      %2022 = vmatmul.mubr.f32.gmra.mrb[0].mxu0 %v790
      %v2023 = vpop.f32.mrb[0].mxu0
      %v2024 = vadd.f32 %v612, %v2023
      %v2025 = vpop.f32.mrb[0].mxu0
      %2026 = vdwg.mxu0
      %v2027 = vmax.f32 %v1949, 0.0
      %v2028 = vmax.f32 %v1954, 0.0
      %v2029 = vmax.f32 %v1959, 0.0
      %v2030 = vmax.f32 %v1964, 0.0
      %v2031 = vmax.f32 %v1969, 0.0
      %v2032 = vmax.f32 %v1974, 0.0
      %v2033 = vmax.f32 %v1979, 0.0
      %v2034 = vmax.f32 %v1984, 0.0
      %v2035 = vmax.f32 %v1989, 0.0
      %v2036 = vmax.f32 %v1994, 0.0
      %v2037 = vmax.f32 %v1999, 0.0
      %v2038 = vmax.f32 %v2004, 0.0
      %v2039 = vmax.f32 %v2009, 0.0
      %v2040 = vmax.f32 %v2014, 0.0
      %v2041 = vmax.f32 %v2019, 0.0
      %v2042 = vmax.f32 %v2024, 0.0
      %2043 = vxpose.xlu0.b32.start [1/16] %v1919, 128
      %2044 = vxpose.xlu0.b32.cont [2/16] %v1924, 128
      %2045 = vxpose.xlu0.b32.cont [3/16] %v1929, 128
      %2046 = vxpose.xlu0.b32.cont [4/16] 0.0, 128
      %2047 = vxpose.xlu0.b32.cont [5/16] 0.0, 128
      %2048 = vxpose.xlu0.b32.cont [6/16] 0.0, 128
      %2049 = vxpose.xlu0.b32.cont [7/16] 0.0, 128
      %2050 = vxpose.xlu0.b32.cont [8/16] 0.0, 128
      %2051 = vxpose.xlu0.b32.cont [9/16] 0.0, 128
      %2052 = vxpose.xlu0.b32.cont [10/16] 0.0, 128
      %2053 = vxpose.xlu0.b32.cont [11/16] 0.0, 128
      %2054 = vxpose.xlu0.b32.cont [12/16] 0.0, 128
      %2055 = vxpose.xlu0.b32.cont [13/16] 0.0, 128
      %2056 = vxpose.xlu0.b32.cont [14/16] 0.0, 128
      %2057 = vxpose.xlu0.b32.cont [15/16] 0.0, 128
      %2058 = vxpose.xlu0.b32.end [16/16] 0.0, 128
      %v2059 = vpop.trf.xlu0
      %v2060 = vpop.trf.xlu0
      %v2061 = vpop.trf.xlu0
      %v2062 = vpop.trf.xlu0
      %v2063 = vpop.trf.xlu0
      %v2064 = vpop.trf.xlu0
      %v2065 = vpop.trf.xlu0
      %v2066 = vpop.trf.xlu0
      %v2067 = vpop.trf.xlu0
      %v2068 = vpop.trf.xlu0
      %v2069 = vpop.trf.xlu0
      %v2070 = vpop.trf.xlu0
      %v2071 = vpop.trf.xlu0
      %v2072 = vpop.trf.xlu0
      %v2073 = vpop.trf.xlu0
      %v2074 = vpop.trf.xlu0
      %v2076 = vsel %vm1019, %v2059, 0
      %v2079 = vsel %vm1019, %v2060, 0
      %v2082 = vsel %vm1019, %v2061, 0
      %v2085 = vsel %vm1019, %v2062, 0
      %v2088 = vsel %vm1019, %v2063, 0
      %v2091 = vsel %vm1019, %v2064, 0
      %v2094 = vsel %vm1019, %v2065, 0
      %2096 = vmatprep.subr.mxu0 0.0
      %2097 = vmatpush1.msra.mxu0 %v1934
      %2098 = vmatprep.subr.mxu0 0.0
      %2099 = vmatpush1.msra.mxu0 %v1939
      %2100 = vmatprep.subr.mxu0 0.0
      %2101 = vmatpush1.msra.mxu0 %v1944
      %2102 = vmatprep.subr.mxu0 0.0
      %2103 = vmatpush1.msra.mxu0 0.0
      %2104 = vmatprep.subr.mxu0 0.0
      %2105 = vmatpush1.msra.mxu0 0.0
      %2106 = vmatprep.subr.mxu0 0.0
      %2107 = vmatpush1.msra.mxu0 0.0
      %2108 = vmatprep.subr.mxu0 0.0
      %2109 = vmatpush1.msra.mxu0 0.0
      %2110 = vmatprep.subr.mxu0 0.0
      %2111 = vmatpush1.msra.mxu0 0.0
      %2112 = vmatprep.subr.mxu0 0.0
      %2113 = vmatpush1.msra.mxu0 0.0
      %2114 = vmatprep.subr.mxu0 0.0
      %2115 = vmatpush1.msra.mxu0 0.0
      %2116 = vmatprep.subr.mxu0 0.0
      %2117 = vmatpush1.msra.mxu0 0.0
      %2118 = vmatprep.subr.mxu0 0.0
      %2119 = vmatpush1.msra.mxu0 0.0
      %2120 = vmatprep.subr.mxu0 0.0
      %2121 = vmatpush1.msra.mxu0 0.0
      %2122 = vmatprep.subr.mxu0 0.0
      %2123 = vmatpush1.msra.mxu0 0.0
      %2124 = vmatprep.subr.mxu0 0.0
      %2125 = vmatpush1.msra.mxu0 0.0
      %2126 = vmatprep.subr.mxu0 0.0
      %2127 = vmatpush1.msra.mxu0 0.0
      %2128 = vmatprep.subr.mxu0 0.0
      %2129 = vmatpush1.msra.mxu0 0.0
      %2130 = vmatprep.subr.mxu0 0.0
      %2131 = vmatpush1.msra.mxu0 0.0
      %2132 = vmatprep.subr.mxu0 0.0
      %2133 = vmatpush1.msra.mxu0 0.0
      %2134 = vmatprep.subr.mxu0 0.0
      %2135 = vmatpush1.msra.mxu0 0.0
      %2136 = vmatprep.subr.mxu0 0.0
      %2137 = vmatpush1.msra.mxu0 0.0
      %2138 = vmatprep.subr.mxu0 0.0
      %2139 = vmatpush1.msra.mxu0 0.0
      %2140 = vmatprep.subr.mxu0 0.0
      %2141 = vmatpush1.msra.mxu0 0.0
      %2142 = vmatprep.subr.mxu0 0.0
      %2143 = vmatpush1.msra.mxu0 0.0
      %2144 = vmatprep.subr.mxu0 0.0
      %2145 = vmatpush1.msra.mxu0 0.0
      %2146 = vmatprep.subr.mxu0 0.0
      %2147 = vmatpush1.msra.mxu0 0.0
      %2148 = vmatprep.subr.mxu0 0.0
      %2149 = vmatpush1.msra.mxu0 0.0
      %2150 = vmatprep.subr.mxu0 0.0
      %2151 = vmatpush1.msra.mxu0 0.0
      %2152 = vmatprep.subr.mxu0 0.0
      %2153 = vmatpush1.msra.mxu0 0.0
      %2154 = vmatprep.subr.mxu0 0.0
      %2155 = vmatpush1.msra.mxu0 0.0
      %2156 = vmatprep.subr.mxu0 0.0
      %2157 = vmatpush1.msra.mxu0 0.0
      %2158 = vmatprep.subr.mxu0 0.0
      %2159 = vmatpush1.msra.mxu0 0.0
      %2160 = vmatprep.mubr.f32.mxu0 0.0
      %2161 = vmatmul.mubr.f32.gmra.mrb[0].mxu0 %v2076
      %v2162 = vpop.f32.mrb[0].mxu0
      %v2163 = vadd.f32 0.0, %v2162
      %v2164 = vpop.f32.mrb[0].mxu0
      %2165 = vmatprep.mubr.f32.mxu0 0.0
      %2166 = vmatmul.mubr.f32.gmra.mrb[0].mxu0 %v2079
      %v2167 = vpop.f32.mrb[0].mxu0
      %v2168 = vadd.f32 0.0, %v2167
      %v2169 = vpop.f32.mrb[0].mxu0
      %2170 = vmatprep.mubr.f32.mxu0 0.0
      %2171 = vmatmul.mubr.f32.gmra.mrb[0].mxu0 %v2082
      %v2172 = vpop.f32.mrb[0].mxu0
      %v2173 = vadd.f32 0.0, %v2172
      %v2174 = vpop.f32.mrb[0].mxu0
      %2175 = vmatprep.mubr.f32.mxu0 0.0
      %2176 = vmatmul.mubr.f32.gmra.mrb[0].mxu0 %v2085
      %v2177 = vpop.f32.mrb[0].mxu0
      %v2178 = vadd.f32 0.0, %v2177
      %v2179 = vpop.f32.mrb[0].mxu0
      %2180 = vmatprep.mubr.f32.mxu0 0.0
      %2181 = vmatmul.mubr.f32.gmra.mrb[0].mxu0 %v2088
      %v2182 = vpop.f32.mrb[0].mxu0
      %v2183 = vadd.f32 0.0, %v2182
      %v2184 = vpop.f32.mrb[0].mxu0
      %2185 = vmatprep.mubr.f32.mxu0 0.0
      %2186 = vmatmul.mubr.f32.gmra.mrb[0].mxu0 %v2091
      %v2187 = vpop.f32.mrb[0].mxu0
      %v2188 = vadd.f32 0.0, %v2187
      %v2189 = vpop.f32.mrb[0].mxu0
      %2190 = vmatprep.mubr.f32.mxu0 0.0
      %2191 = vmatmul.mubr.f32.gmra.mrb[0].mxu0 %v2094
      %v2192 = vpop.f32.mrb[0].mxu0
      %v2193 = vadd.f32 0.0, %v2192
      %v2194 = vpop.f32.mrb[0].mxu0
      %2195 = vdwg.mxu0
      %v2196 = vsel %vm1141, %v2163, -inf
      %2197 = vmax.xlane.f32.xlu0 %v2196
      %v2198 = vpop.xlane.xlu0 %2197
      %v2199 = vsel %vm1141, %v2168, -inf
      %2200 = vmax.xlane.f32.xlu0 %v2199
      %v2201 = vpop.xlane.xlu0 %2200
      %v2202 = vsel %vm1141, %v2173, -inf
      %2203 = vmax.xlane.f32.xlu0 %v2202
      %v2204 = vpop.xlane.xlu0 %2203
      %v2205 = vsel %vm1141, %v2178, -inf
      %2206 = vmax.xlane.f32.xlu0 %v2205
      %v2207 = vpop.xlane.xlu0 %2206
      %v2208 = vsel %vm1141, %v2183, -inf
      %2209 = vmax.xlane.f32.xlu0 %v2208
      %v2210 = vpop.xlane.xlu0 %2209
      %v2211 = vsel %vm1141, %v2188, -inf
      %2212 = vmax.xlane.f32.xlu0 %v2211
      %v2213 = vpop.xlane.xlu0 %2212
      %v2214 = vsel %vm1160, %v2193, -inf
      %2215 = vmax.xlane.f32.xlu0 %v2214
      %v2216 = vpop.xlane.xlu0 %2215
      %v2217 = vsub.f32 %v2163, %v2198
      %v2218 = vsub.f32 %v2168, %v2201
      %v2219 = vsub.f32 %v2173, %v2204
      %v2220 = vsub.f32 %v2178, %v2207
      %v2221 = vsub.f32 %v2183, %v2210
      %v2222 = vsub.f32 %v2188, %v2213
      %v2223 = vsub.f32 %v2193, %v2216
      %v2224 = vmul.f32 %v2217, 1.442695
      %v2225 = vpow.pop %v2224
      %v2226 = vmul.f32 %v2218, 1.442695
      %v2227 = vpow.pop %v2226
      %v2228 = vmul.f32 %v2219, 1.442695
      %v2229 = vpow.pop %v2228
      %v2230 = vmul.f32 %v2220, 1.442695
      %v2231 = vpow.pop %v2230
      %v2232 = vmul.f32 %v2221, 1.442695
      %v2233 = vpow.pop %v2232
      %v2234 = vmul.f32 %v2222, 1.442695
      %v2235 = vpow.pop %v2234
      %v2236 = vmul.f32 %v2223, 1.442695
      %v2237 = vpow.pop %v2236
      %v2238 = vsel %vm1141, %v2225, 0.0
      %2239 = vadd.xlane.f32.xlu0 %v2238
      %v2240 = vpop.xlane.xlu0 %2239
      %v2241 = vsel %vm1141, %v2227, 0.0
      %2242 = vadd.xlane.f32.xlu0 %v2241
      %v2243 = vpop.xlane.xlu0 %2242
      %v2244 = vsel %vm1141, %v2229, 0.0
      %2245 = vadd.xlane.f32.xlu0 %v2244
      %v2246 = vpop.xlane.xlu0 %2245
      %v2247 = vsel %vm1141, %v2231, 0.0
      %2248 = vadd.xlane.f32.xlu0 %v2247
      %v2249 = vpop.xlane.xlu0 %2248
      %v2250 = vsel %vm1141, %v2233, 0.0
      %2251 = vadd.xlane.f32.xlu0 %v2250
      %v2252 = vpop.xlane.xlu0 %2251
      %v2253 = vsel %vm1141, %v2235, 0.0
      %2254 = vadd.xlane.f32.xlu0 %v2253
      %v2255 = vpop.xlane.xlu0 %2254
      %v2256 = vsel %vm1160, %v2237, 0.0
      %2257 = vadd.xlane.f32.xlu0 %v2256
      %v2258 = vpop.xlane.xlu0 %2257
      %v2259 = vrcp.pop %v2240
      %v2260 = vrcp.pop %v2243
      %v2261 = vrcp.pop %v2246
      %v2262 = vrcp.pop %v2249
      %v2263 = vrcp.pop %v2252
      %v2264 = vrcp.pop %v2255
      %v2265 = vrcp.pop %v2258
      %v2266 = vmul.f32 %v2225, %v2259
      %v2267 = vmul.f32 %v2227, %v2260
      %v2268 = vmul.f32 %v2229, %v2261
      %v2269 = vmul.f32 %v2231, %v2262
      %v2270 = vmul.f32 %v2233, %v2263
      %v2271 = vmul.f32 %v2235, %v2264
      %v2272 = vmul.f32 %v2237, %v2265
      %v2274 = vsel %vm1141, %v2027, 0
      %v2277 = vsel %vm1141, %v2028, 0
      %v2280 = vsel %vm1141, %v2029, 0
      %v2283 = vsel %vm1141, %v2030, 0
      %v2286 = vsel %vm1141, %v2031, 0
      %v2289 = vsel %vm1141, %v2032, 0
      %v2292 = vsel %vm1141, %v2033, 0
      %v2295 = vsel %vm1141, %v2034, 0
      %v2298 = vsel %vm1141, %v2035, 0
      %v2301 = vsel %vm1141, %v2036, 0
      %v2304 = vsel %vm1141, %v2037, 0
      %v2307 = vsel %vm1141, %v2038, 0
      %v2310 = vsel %vm1141, %v2039, 0
      %v2313 = vsel %vm1141, %v2040, 0
      %v2316 = vsel %vm1141, %v2041, 0
      %v2319 = vsel %vm1141, %v2042, 0
      %v2322 = vsel %vm1141, %v2266, 0
      %v2325 = vsel %vm1141, %v2267, 0
      %v2328 = vsel %vm1141, %v2268, 0
      %v2331 = vsel %vm1141, %v2269, 0
      %v2334 = vsel %vm1141, %v2270, 0
      %v2337 = vsel %vm1141, %v2271, 0
      %v2340 = vsel %vm1141, %v2272, 0
      %2342 = vmatprep.subr.mxu0 0.0
      %2343 = vmatpush1.xpose.msra.mxu0 %v2322
      %2344 = vmatprep.subr.mxu0 0.0
      %2345 = vmatpush1.xpose.msra.mxu0 %v2325
      %2346 = vmatprep.subr.mxu0 0.0
      %2347 = vmatpush1.xpose.msra.mxu0 %v2328
      %2348 = vmatprep.subr.mxu0 0.0
      %2349 = vmatpush1.xpose.msra.mxu0 %v2331
      %2350 = vmatprep.subr.mxu0 0.0
      %2351 = vmatpush1.xpose.msra.mxu0 %v2334
      %2352 = vmatprep.subr.mxu0 0.0
      %2353 = vmatpush1.xpose.msra.mxu0 %v2337
      %2354 = vmatprep.subr.mxu0 0.0
      %2355 = vmatpush1.xpose.msra.mxu0 %v2340
      %2356 = vmatprep.subr.mxu0 0.0
      %2357 = vmatpush1.xpose.msra.mxu0 0.0
      %2358 = vmatprep.subr.mxu0 0.0
      %2359 = vmatpush1.xpose.msra.mxu0 0.0
      %2360 = vmatprep.subr.mxu0 0.0
      %2361 = vmatpush1.xpose.msra.mxu0 0.0
      %2362 = vmatprep.subr.mxu0 0.0
      %2363 = vmatpush1.xpose.msra.mxu0 0.0
      %2364 = vmatprep.subr.mxu0 0.0
      %2365 = vmatpush1.xpose.msra.mxu0 0.0
      %2366 = vmatprep.subr.mxu0 0.0
      %2367 = vmatpush1.xpose.msra.mxu0 0.0
      %2368 = vmatprep.subr.mxu0 0.0
      %2369 = vmatpush1.xpose.msra.mxu0 0.0
      %2370 = vmatprep.subr.mxu0 0.0
      %2371 = vmatpush1.xpose.msra.mxu0 0.0
      %2372 = vmatprep.subr.mxu0 0.0
      %2373 = vmatpush1.xpose.msra.mxu0 0.0
      %2374 = vmatprep.subr.mxu0 0.0
      %2375 = vmatpush1.xpose.msra.mxu0 0.0
      %2376 = vmatprep.subr.mxu0 0.0
      %2377 = vmatpush1.xpose.msra.mxu0 0.0
      %2378 = vmatprep.subr.mxu0 0.0
      %2379 = vmatpush1.xpose.msra.mxu0 0.0
      %2380 = vmatprep.subr.mxu0 0.0
      %2381 = vmatpush1.xpose.msra.mxu0 0.0
      %2382 = vmatprep.subr.mxu0 0.0
      %2383 = vmatpush1.xpose.msra.mxu0 0.0
      %2384 = vmatprep.subr.mxu0 0.0
      %2385 = vmatpush1.xpose.msra.mxu0 0.0
      %2386 = vmatprep.subr.mxu0 0.0
      %2387 = vmatpush1.xpose.msra.mxu0 0.0
      %2388 = vmatprep.subr.mxu0 0.0
      %2389 = vmatpush1.xpose.msra.mxu0 0.0
      %2390 = vmatprep.subr.mxu0 0.0
      %2391 = vmatpush1.xpose.msra.mxu0 0.0
      %2392 = vmatprep.subr.mxu0 0.0
      %2393 = vmatpush1.xpose.msra.mxu0 0.0
      %2394 = vmatprep.subr.mxu0 0.0
      %2395 = vmatpush1.xpose.msra.mxu0 0.0
      %2396 = vmatprep.subr.mxu0 0.0
      %2397 = vmatpush1.xpose.msra.mxu0 0.0
      %2398 = vmatprep.subr.mxu0 0.0
      %2399 = vmatpush1.xpose.msra.mxu0 0.0
      %2400 = vmatprep.subr.mxu0 0.0
      %2401 = vmatpush1.xpose.msra.mxu0 0.0
      %2402 = vmatprep.subr.mxu0 0.0
      %2403 = vmatpush1.xpose.msra.mxu0 0.0
      %2404 = vmatprep.subr.mxu0 0.0
      %2405 = vmatpush1.xpose.msra.mxu0 0.0
      %2406 = vmatprep.mubr.f32.mxu0 0.0
      %2407 = vmatmul.mubr.f32.gmra.mrb[0].mxu0 %v2274
      %v2408 = vpop.f32.mrb[0].mxu0
      %v2409 = vadd.f32 0.0, %v2408
      %v2410 = vpop.f32.mrb[0].mxu0
      %2411 = vmatprep.mubr.f32.mxu0 0.0
      %2412 = vmatmul.mubr.f32.gmra.mrb[0].mxu0 %v2277
      %v2413 = vpop.f32.mrb[0].mxu0
      %v2414 = vadd.f32 0.0, %v2413
      %v2415 = vpop.f32.mrb[0].mxu0
      %2416 = vmatprep.mubr.f32.mxu0 0.0
      %2417 = vmatmul.mubr.f32.gmra.mrb[0].mxu0 %v2280
      %v2418 = vpop.f32.mrb[0].mxu0
      %v2419 = vadd.f32 0.0, %v2418
      %v2420 = vpop.f32.mrb[0].mxu0
      %2421 = vmatprep.mubr.f32.mxu0 0.0
      %2422 = vmatmul.mubr.f32.gmra.mrb[0].mxu0 %v2283
      %v2423 = vpop.f32.mrb[0].mxu0
      %v2424 = vadd.f32 0.0, %v2423
      %v2425 = vpop.f32.mrb[0].mxu0
      %2426 = vmatprep.mubr.f32.mxu0 0.0
      %2427 = vmatmul.mubr.f32.gmra.mrb[0].mxu0 %v2286
      %v2428 = vpop.f32.mrb[0].mxu0
      %v2429 = vadd.f32 0.0, %v2428
      %v2430 = vpop.f32.mrb[0].mxu0
      %2431 = vmatprep.mubr.f32.mxu0 0.0
      %2432 = vmatmul.mubr.f32.gmra.mrb[0].mxu0 %v2289
      %v2433 = vpop.f32.mrb[0].mxu0
      %v2434 = vadd.f32 0.0, %v2433
      %v2435 = vpop.f32.mrb[0].mxu0
      %2436 = vmatprep.mubr.f32.mxu0 0.0
      %2437 = vmatmul.mubr.f32.gmra.mrb[0].mxu0 %v2292
      %v2438 = vpop.f32.mrb[0].mxu0
      %v2439 = vadd.f32 0.0, %v2438
      %v2440 = vpop.f32.mrb[0].mxu0
      %2441 = vmatprep.mubr.f32.mxu0 0.0
      %2442 = vmatmul.mubr.f32.gmra.mrb[0].mxu0 %v2295
      %v2443 = vpop.f32.mrb[0].mxu0
      %v2444 = vadd.f32 0.0, %v2443
      %v2445 = vpop.f32.mrb[0].mxu0
      %2446 = vmatprep.mubr.f32.mxu0 0.0
      %2447 = vmatmul.mubr.f32.gmra.mrb[0].mxu0 %v2298
      %v2448 = vpop.f32.mrb[0].mxu0
      %v2449 = vadd.f32 0.0, %v2448
      %v2450 = vpop.f32.mrb[0].mxu0
      %2451 = vmatprep.mubr.f32.mxu0 0.0
      %2452 = vmatmul.mubr.f32.gmra.mrb[0].mxu0 %v2301
      %v2453 = vpop.f32.mrb[0].mxu0
      %v2454 = vadd.f32 0.0, %v2453
      %v2455 = vpop.f32.mrb[0].mxu0
      %2456 = vmatprep.mubr.f32.mxu0 0.0
      %2457 = vmatmul.mubr.f32.gmra.mrb[0].mxu0 %v2304
      %v2458 = vpop.f32.mrb[0].mxu0
      %v2459 = vadd.f32 0.0, %v2458
      %v2460 = vpop.f32.mrb[0].mxu0
      %2461 = vmatprep.mubr.f32.mxu0 0.0
      %2462 = vmatmul.mubr.f32.gmra.mrb[0].mxu0 %v2307
      %v2463 = vpop.f32.mrb[0].mxu0
      %v2464 = vadd.f32 0.0, %v2463
      %v2465 = vpop.f32.mrb[0].mxu0
      %2466 = vmatprep.mubr.f32.mxu0 0.0
      %2467 = vmatmul.mubr.f32.gmra.mrb[0].mxu0 %v2310
      %v2468 = vpop.f32.mrb[0].mxu0
      %v2469 = vadd.f32 0.0, %v2468
      %v2470 = vpop.f32.mrb[0].mxu0
      %2471 = vmatprep.mubr.f32.mxu0 0.0
      %2472 = vmatmul.mubr.f32.gmra.mrb[0].mxu0 %v2313
      %v2473 = vpop.f32.mrb[0].mxu0
      %v2474 = vadd.f32 0.0, %v2473
      %v2475 = vpop.f32.mrb[0].mxu0
      %2476 = vmatprep.mubr.f32.mxu0 0.0
      %2477 = vmatmul.mubr.f32.gmra.mrb[0].mxu0 %v2316
      %v2478 = vpop.f32.mrb[0].mxu0
      %v2479 = vadd.f32 0.0, %v2478
      %v2480 = vpop.f32.mrb[0].mxu0
      %2481 = vmatprep.mubr.f32.mxu0 0.0
      %2482 = vmatmul.mubr.f32.gmra.mrb[0].mxu0 %v2319
      %v2483 = vpop.f32.mrb[0].mxu0
      %v2484 = vadd.f32 0.0, %v2483
      %v2485 = vpop.f32.mrb[0].mxu0
      %2486 = vdwg.mxu0
      %2487 = vmatprep.subr.mxu0 0.0
      %2488 = vmatpush1.msra.mxu0 %v2409
      %2489 = vmatprep.subr.mxu0 0.0
      %2490 = vmatpush1.msra.mxu0 %v2414
      %2491 = vmatprep.subr.mxu0 0.0
      %2492 = vmatpush1.msra.mxu0 %v2419
      %2493 = vmatprep.subr.mxu0 0.0
      %2494 = vmatpush1.msra.mxu0 %v2424
      %2495 = vmatprep.subr.mxu0 0.0
      %2496 = vmatpush1.msra.mxu0 %v2429
      %2497 = vmatprep.subr.mxu0 0.0
      %2498 = vmatpush1.msra.mxu0 %v2434
      %2499 = vmatprep.subr.mxu0 0.0
      %2500 = vmatpush1.msra.mxu0 %v2439
      %2501 = vmatprep.subr.mxu0 0.0
      %2502 = vmatpush1.msra.mxu0 %v2444
      %2503 = vmatprep.subr.mxu0 0.0
      %2504 = vmatpush1.msra.mxu0 %v2449
      %2505 = vmatprep.subr.mxu0 0.0
      %2506 = vmatpush1.msra.mxu0 %v2454
      %2507 = vmatprep.subr.mxu0 0.0
      %2508 = vmatpush1.msra.mxu0 %v2459
      %2509 = vmatprep.subr.mxu0 0.0
      %2510 = vmatpush1.msra.mxu0 %v2464
      %2511 = vmatprep.subr.mxu0 0.0
      %2512 = vmatpush1.msra.mxu0 %v2469
      %2513 = vmatprep.subr.mxu0 0.0
      %2514 = vmatpush1.msra.mxu0 %v2474
      %2515 = vmatprep.subr.mxu0 0.0
      %2516 = vmatpush1.msra.mxu0 %v2479
      %2517 = vmatprep.subr.mxu0 0.0
      %2518 = vmatpush1.msra.mxu0 %v2484
      %2519 = vmatprep.subr.mxu0 0.0
      %2520 = vmatpush1.msra.mxu0 0.0
      %2521 = vmatprep.subr.mxu0 0.0
      %2522 = vmatpush1.msra.mxu0 0.0
      %2523 = vmatprep.subr.mxu0 0.0
      %2524 = vmatpush1.msra.mxu0 0.0
      %2525 = vmatprep.subr.mxu0 0.0
      %2526 = vmatpush1.msra.mxu0 0.0
      %2527 = vmatprep.subr.mxu0 0.0
      %2528 = vmatpush1.msra.mxu0 0.0
      %2529 = vmatprep.subr.mxu0 0.0
      %2530 = vmatpush1.msra.mxu0 0.0
      %2531 = vmatprep.subr.mxu0 0.0
      %2532 = vmatpush1.msra.mxu0 0.0
      %2533 = vmatprep.subr.mxu0 0.0
      %2534 = vmatpush1.msra.mxu0 0.0
      %2535 = vmatprep.subr.mxu0 0.0
      %2536 = vmatpush1.msra.mxu0 0.0
      %2537 = vmatprep.subr.mxu0 0.0
      %2538 = vmatpush1.msra.mxu0 0.0
      %2539 = vmatprep.subr.mxu0 0.0
      %2540 = vmatpush1.msra.mxu0 0.0
      %2541 = vmatprep.subr.mxu0 0.0
      %2542 = vmatpush1.msra.mxu0 0.0
      %2543 = vmatprep.subr.mxu0 0.0
      %2544 = vmatpush1.msra.mxu0 0.0
      %2545 = vmatprep.subr.mxu0 0.0
      %2546 = vmatpush1.msra.mxu0 0.0
      %2547 = vmatprep.subr.mxu0 0.0
      %2548 = vmatpush1.msra.mxu0 0.0
      %2549 = vmatprep.subr.mxu0 0.0
      %2550 = vmatpush1.msra.mxu0 0.0
      %2551 = vmatprep.mubr.f32.mxu0 0.0
      %2552 = vmatmul.mubr.f32.gmra.mrb[0].mxu0 %v613
      %v2553 = vpop.f32.mrb[0].mxu0
      %v2554 = vadd.f32 0.0, %v2553
      %v2555 = vpop.f32.mrb[0].mxu0
      %2556 = vmatprep.mubr.f32.mxu0 0.0
      %2557 = vmatmul.mubr.f32.gmra.mrb[0].mxu0 %v614
      %v2558 = vpop.f32.mrb[0].mxu0
      %v2559 = vadd.f32 0.0, %v2558
      %v2560 = vpop.f32.mrb[0].mxu0
      %2561 = vdwg.mxu0
      %v2562 = vmax.f32 %v2554, 0.0
      %v2563 = vmax.f32 %v2559, 0.0
      %v2565 = vsel %vm1141, %v2562, 0
      %v2568 = vsel %vm1141, %v2563, 0
      %2570 = vmatprep.subr.mxu0 %v556
      %2571 = vmatpush1.msra.mxu0 %v555
      %2572 = vmatprep.subr.mxu0 %v558
      %2573 = vmatpush1.msra.mxu0 %v557
      %2574 = vmatprep.subr.mxu0 %v560
      %2575 = vmatpush1.msra.mxu0 %v559
      %2576 = vmatprep.subr.mxu0 %v562
      %2577 = vmatpush1.msra.mxu0 %v561
      %2578 = vmatprep.subr.mxu0 %v564
      %2579 = vmatpush1.msra.mxu0 %v563
      %2580 = vmatprep.subr.mxu0 %v566
      %2581 = vmatpush1.msra.mxu0 %v565
      %2582 = vmatprep.subr.mxu0 %v1522
      %2583 = vmatpush1.msra.mxu0 %v1519
      %2584 = vmatprep.subr.mxu0 0.0
      %2585 = vmatpush1.msra.mxu0 0.0
      %2586 = vmatprep.subr.mxu0 0.0
      %2587 = vmatpush1.msra.mxu0 0.0
      %2588 = vmatprep.subr.mxu0 0.0
      %2589 = vmatpush1.msra.mxu0 0.0
      %2590 = vmatprep.subr.mxu0 0.0
      %2591 = vmatpush1.msra.mxu0 0.0
      %2592 = vmatprep.subr.mxu0 0.0
      %2593 = vmatpush1.msra.mxu0 0.0
      %2594 = vmatprep.subr.mxu0 0.0
      %2595 = vmatpush1.msra.mxu0 0.0
      %2596 = vmatprep.subr.mxu0 0.0
      %2597 = vmatpush1.msra.mxu0 0.0
      %2598 = vmatprep.subr.mxu0 0.0
      %2599 = vmatpush1.msra.mxu0 0.0
      %2600 = vmatprep.subr.mxu0 0.0
      %2601 = vmatpush1.msra.mxu0 0.0
      %2602 = vmatprep.subr.mxu0 0.0
      %2603 = vmatpush1.msra.mxu0 0.0
      %2604 = vmatprep.subr.mxu0 0.0
      %2605 = vmatpush1.msra.mxu0 0.0
      %2606 = vmatprep.subr.mxu0 0.0
      %2607 = vmatpush1.msra.mxu0 0.0
      %2608 = vmatprep.subr.mxu0 0.0
      %2609 = vmatpush1.msra.mxu0 0.0
      %2610 = vmatprep.subr.mxu0 0.0
      %2611 = vmatpush1.msra.mxu0 0.0
      %2612 = vmatprep.subr.mxu0 0.0
      %2613 = vmatpush1.msra.mxu0 0.0
      %2614 = vmatprep.subr.mxu0 0.0
      %2615 = vmatpush1.msra.mxu0 0.0
      %2616 = vmatprep.subr.mxu0 0.0
      %2617 = vmatpush1.msra.mxu0 0.0
      %2618 = vmatprep.subr.mxu0 0.0
      %2619 = vmatpush1.msra.mxu0 0.0
      %2620 = vmatprep.subr.mxu0 0.0
      %2621 = vmatpush1.msra.mxu0 0.0
      %2622 = vmatprep.subr.mxu0 0.0
      %2623 = vmatpush1.msra.mxu0 0.0
      %2624 = vmatprep.subr.mxu0 0.0
      %2625 = vmatpush1.msra.mxu0 0.0
      %2626 = vmatprep.subr.mxu0 0.0
      %2627 = vmatpush1.msra.mxu0 0.0
      %2628 = vmatprep.subr.mxu0 0.0
      %2629 = vmatpush1.msra.mxu0 0.0
      %2630 = vmatprep.subr.mxu0 0.0
      %2631 = vmatpush1.msra.mxu0 0.0
      %2632 = vmatprep.subr.mxu0 0.0
      %2633 = vmatpush1.msra.mxu0 0.0
      %2634 = vmatprep.mubr.f32.mxu0 0.0
      %2635 = vmatmul.mubr.f32.gmra.mrb[0].mxu0 %v2565
      %v2636 = vpop.f32.mrb[0].mxu0
      %v2637 = vadd.f32 0.0, %v2636
      %v2638 = vpop.f32.mrb[0].mxu0
      %v2639 = vadd.f32 0.0, %v2638
      %2640 = vmatprep.mubr.f32.mxu0 0.0
      %2641 = vmatmul.mubr.f32.gmra.mrb[0].mxu0 %v2568
      %v2642 = vpop.f32.mrb[0].mxu0
      %v2643 = vadd.f32 0.0, %v2642
      %v2644 = vpop.f32.mrb[0].mxu0
      %v2645 = vadd.f32 0.0, %v2644
      %2646 = vdwg.mxu0
      %v2648 = vsel %vm792, %v2643, 0
      %v2651 = vsel %vm792, %v2645, 0
      %2653 = vmatprep.subr.mxu0 %v2639
      %2654 = vmatpush1.msra.mxu0 %v2637
      %2655 = vmatprep.subr.mxu0 %v2651
      %2656 = vmatpush1.msra.mxu0 %v2648
      %2657 = vmatprep.subr.mxu0 0.0
      %2658 = vmatpush1.msra.mxu0 0.0
      %2659 = vmatprep.subr.mxu0 0.0
      %2660 = vmatpush1.msra.mxu0 0.0
      %2661 = vmatprep.subr.mxu0 0.0
      %2662 = vmatpush1.msra.mxu0 0.0
      %2663 = vmatprep.subr.mxu0 0.0
      %2664 = vmatpush1.msra.mxu0 0.0
      %2665 = vmatprep.subr.mxu0 0.0
      %2666 = vmatpush1.msra.mxu0 0.0
      %2667 = vmatprep.subr.mxu0 0.0
      %2668 = vmatpush1.msra.mxu0 0.0
      %2669 = vmatprep.subr.mxu0 0.0
      %2670 = vmatpush1.msra.mxu0 0.0
      %2671 = vmatprep.subr.mxu0 0.0
      %2672 = vmatpush1.msra.mxu0 0.0
      %2673 = vmatprep.subr.mxu0 0.0
      %2674 = vmatpush1.msra.mxu0 0.0
      %2675 = vmatprep.subr.mxu0 0.0
      %2676 = vmatpush1.msra.mxu0 0.0
      %2677 = vmatprep.subr.mxu0 0.0
      %2678 = vmatpush1.msra.mxu0 0.0
      %2679 = vmatprep.subr.mxu0 0.0
      %2680 = vmatpush1.msra.mxu0 0.0
      %2681 = vmatprep.subr.mxu0 0.0
      %2682 = vmatpush1.msra.mxu0 0.0
      %2683 = vmatprep.subr.mxu0 0.0
      %2684 = vmatpush1.msra.mxu0 0.0
      %2685 = vmatprep.subr.mxu0 0.0
      %2686 = vmatpush1.msra.mxu0 0.0
      %2687 = vmatprep.subr.mxu0 0.0
      %2688 = vmatpush1.msra.mxu0 0.0
      %2689 = vmatprep.subr.mxu0 0.0
      %2690 = vmatpush1.msra.mxu0 0.0
      %2691 = vmatprep.subr.mxu0 0.0
      %2692 = vmatpush1.msra.mxu0 0.0
      %2693 = vmatprep.subr.mxu0 0.0
      %2694 = vmatpush1.msra.mxu0 0.0
      %2695 = vmatprep.subr.mxu0 0.0
      %2696 = vmatpush1.msra.mxu0 0.0
      %2697 = vmatprep.subr.mxu0 0.0
      %2698 = vmatpush1.msra.mxu0 0.0
      %2699 = vmatprep.subr.mxu0 0.0
      %2700 = vmatpush1.msra.mxu0 0.0
      %2701 = vmatprep.subr.mxu0 0.0
      %2702 = vmatpush1.msra.mxu0 0.0
      %2703 = vmatprep.subr.mxu0 0.0
      %2704 = vmatpush1.msra.mxu0 0.0
      %2705 = vmatprep.subr.mxu0 0.0
      %2706 = vmatpush1.msra.mxu0 0.0
      %2707 = vmatprep.subr.mxu0 0.0
      %2708 = vmatpush1.msra.mxu0 0.0
      %2709 = vmatprep.subr.mxu0 0.0
      %2710 = vmatpush1.msra.mxu0 0.0
      %2711 = vmatprep.subr.mxu0 0.0
      %2712 = vmatpush1.msra.mxu0 0.0
      %2713 = vmatprep.subr.mxu0 0.0
      %2714 = vmatpush1.msra.mxu0 0.0
      %2715 = vmatprep.subr.mxu0 0.0
      %2716 = vmatpush1.msra.mxu0 0.0
      %2717 = vmatprep.mubr.f32.mxu0 0.0
      %2718 = vmatmul.mubr.f32.gmra.mrb[0].mxu0 %v1608
      %v2719 = vpop.f32.mrb[0].mxu0
      %v2720 = vadd.f32 %v1604, %v2719
      %v2721 = vpop.f32.mrb[0].mxu0
      %v2722 = vadd.f32 %v1604, %v2721
      %2723 = vdwg.mxu0
      %v2724 = vadd.f32 %v2720, %v1690
      %v2725 = vadd.f32 %v2722, %v1690
      %v2726 = vsel %vm1694, %v2724, -inf
      %v2727 = vrot.slane %v2726, 4
      %v2728 = vmax.f32 %v2726, %v2727
      %v2729 = vrot.slane %v2728, 2
      %v2730 = vmax.f32 %v2728, %v2729
      %v2731 = vrot.slane %v2730, 1
      %v2732 = vmax.f32 %v2730, %v2731
      %v2733 = vsel %vm1694, %v2725, -inf
      %v2734 = vrot.slane %v2733, 4
      %v2735 = vmax.f32 %v2733, %v2734
      %v2736 = vrot.slane %v2735, 2
      %v2737 = vmax.f32 %v2735, %v2736
      %v2738 = vrot.slane %v2737, 1
      %v2739 = vmax.f32 %v2737, %v2738
      %v2740 = vsub.f32 %v2724, %v2732
      %v2741 = vsub.f32 %v2725, %v2739
      %v2742 = vmul.f32 %v2740, 1.442695
      %v2743 = vpow.pop %v2742
      %v2744 = vmul.f32 %v2741, 1.442695
      %v2745 = vpow.pop %v2744
      %v2746 = vsel %vm1694, %v2743, 0.0
      %v2747 = vrot.slane %v2746, 4
      %v2748 = vadd.f32 %v2746, %v2747
      %v2749 = vrot.slane %v2748, 2
      %v2750 = vadd.f32 %v2748, %v2749
      %v2751 = vrot.slane %v2750, 1
      %v2752 = vadd.f32 %v2750, %v2751
      %v2753 = vsel %vm1694, %v2745, 0.0
      %v2754 = vrot.slane %v2753, 4
      %v2755 = vadd.f32 %v2753, %v2754
      %v2756 = vrot.slane %v2755, 2
      %v2757 = vadd.f32 %v2755, %v2756
      %v2758 = vrot.slane %v2757, 1
      %v2759 = vadd.f32 %v2757, %v2758
      %v2760 = vrcp.pop %v2752
      %v2761 = vrcp.pop %v2759
      %v2762 = vmul.f32 %v2743, %v2760
      %v2763 = vmul.f32 %v2745, %v2761
      %s2764 = scalar_lea.vmem %s512, 32
      %2765 = vst [vmem:[%s2764] sm:$0xff] %v2637
      %2766 = vst [vmem:[%s2764 + $0x8] sm:$0xff] %v2639
      %2767 = vst [vmem:[%s2764 + $0x10] sm:$0x3] %v2643
      %2768 = vst [vmem:[%s2764 + $0x18] sm:$0x3] %v2645
      %s2769 = scalar_lea.vmem %s517, 16
      %2770 = vst [vmem:[%s2769] sm:$0x1f] %v2720
      %2771 = vst [vmem:[%s2769 + $0x8] sm:$0x1f] %v2722
      %s2772 = scalar_lea.vmem %s522, 16
      %2773 = vst [vmem:[%s2772] sm:$0x1f] %v2762
      %2774 = vst [vmem:[%s2772 + $0x8] sm:$0x1f] %v2763
      %p2775 = scmp.lt.s32.totalorder %s23, 1
      %s2776 = scalar_select %p2775, %s23, 1
      %s2777 = smul.addr %s2776, 8
      %s2778 = smul.addr %s2777, 8
      %s2779 = scalar_lea.vmem %s9, %s2778
      %p2780 = scmp.lt.s32.totalorder %s23, 1
      %s2781 = scalar_select %p2780, %s23, 1
      %s2782 = smul.addr %s2781, 4
      %s2783 = smul.addr %s2782, 8
      %s2784 = scalar_lea.vmem %s10, %s2783
      %p2785 = scmp.lt.s32.totalorder %s23, 1
      %s2786 = scalar_select %p2785, %s23, 1
      %s2787 = smul.addr %s2786, 4
      %s2788 = smul.addr %s2787, 8
      %s2789 = scalar_lea.vmem %s11, %s2788
      // Predicated region
      $region57: #{contexture_forward.1} parent=55 // pred_check
        %p2790 = pneg %p265
      $region58: #{contexture_forward.1} parent=55 // pred_check_branch
        %2792 = sbr.rel (%p2790) target = $region60
      $region59: #{contexture_forward.1} parent=55 // pred_region
        _
      $region60: #{contexture_forward.1} parent=55 // pred_fallthru
        _
      // Predicated region
      $region61: #{contexture_forward.1} parent=55 // pred_check
        %p2793 = pneg %p291
      $region62: #{contexture_forward.1} parent=55 // pred_check_branch
        %2795 = sbr.rel (%p2793) target = $region64
      $region63: #{contexture_forward.1} parent=55 // pred_region
        _
      $region64: #{contexture_forward.1} parent=55 // pred_fallthru
        _
      // Predicated region
      $region65: #{contexture_forward.1} parent=55 // pred_check
        %p2796 = pneg %p317
      $region66: #{contexture_forward.1} parent=55 // pred_check_branch
        %2798 = sbr.rel (%p2796) target = $region68
      $region67: #{contexture_forward.1} parent=55 // pred_region
        _
      $region68: #{contexture_forward.1} parent=55 // pred_fallthru
        _
    $region56: #{contexture_forward.1} parent=5 // pred_fallthru
      _
    %p2799 = scmp.le.s32.totalorder 2, %s18
    // Predicated region
    $region69: #{contexture_forward.1} parent=5 // pred_check
      %p2800 = pneg %p2799
    $region70: #{contexture_forward.1} parent=5 // pred_check_branch
      %2802 = sbr.rel (%p2800) target = $region72
    $region71: #{contexture_forward.1} parent=5 // pred_region
      %s2803 = ssub.s32 %s18, 2
      // Predicated region
      $region73: #{contexture_forward.1} parent=71 // pred_check
        %p2804 = pneg %p271
      $region74: #{contexture_forward.1} parent=71 // pred_check_branch
        %2806 = sbr.rel (%p2804) target = $region76
      $region75: #{contexture_forward.1} parent=71 // pred_region
        %p2807 = scmp.lt.s32.totalorder %s24, 1
        %s2808 = scalar_select %p2807, %s24, 1
        %s2809 = smul.addr %s2808, 8
        %s2810 = smul.addr %s2809, 8
        %s2811 = scalar_lea.vmem %s9, %s2810
      $region76: #{contexture_forward.1} parent=71 // pred_fallthru
        _
      // Predicated region
      $region77: #{contexture_forward.1} parent=71 // pred_check
        %p2812 = pneg %p297
      $region78: #{contexture_forward.1} parent=71 // pred_check_branch
        %2814 = sbr.rel (%p2812) target = $region80
      $region79: #{contexture_forward.1} parent=71 // pred_region
        %p2815 = scmp.lt.s32.totalorder %s24, 1
        %s2816 = scalar_select %p2815, %s24, 1
        %s2817 = smul.addr %s2816, 4
        %s2818 = smul.addr %s2817, 8
        %s2819 = scalar_lea.vmem %s10, %s2818
      $region80: #{contexture_forward.1} parent=71 // pred_fallthru
        _
      // Predicated region
      $region81: #{contexture_forward.1} parent=71 // pred_check
        %p2820 = pneg %p323
      $region82: #{contexture_forward.1} parent=71 // pred_check_branch
        %2822 = sbr.rel (%p2820) target = $region84
      $region83: #{contexture_forward.1} parent=71 // pred_region
        %p2823 = scmp.lt.s32.totalorder %s24, 1
        %s2824 = scalar_select %p2823, %s24, 1
        %s2825 = smul.addr %s2824, 4
        %s2826 = smul.addr %s2825, 8
        %s2827 = scalar_lea.vmem %s11, %s2826
      $region84: #{contexture_forward.1} parent=71 // pred_fallthru
        _
    $region72: #{contexture_forward.1} parent=5 // pred_fallthru
      _
  $region6: #{contexture_forward.1} parent=0 // loop_footer
    %s22 = sadd.s32 1, %s18
  $region7: #{contexture_forward.1} parent=0 // loop_footer_branch
    %17 = sbr.rel target = $region3
  $region8: #{contexture_forward.1} parent=0 // loop_exit
    _

</llo_original>
